<compile_context>
chip_gen: v7x
topology: tpu7x:2x2x1
jax: 0.10.0
libtpu: 0.0.40
codegen_flags: <defaults>
</compile_context>

<pallas_src>
import jax
import jax.numpy as jnp
from jax.experimental import pallas as pl
from jax.experimental.pallas import tpu as pltpu

INPUT_DIM = 1280
PROJ_DIM = 96
HID = 64                 # LSTM hidden size
GATES = 4 * HID          # 256 gate columns, kernel order [i, f, o, g]
OUT_PAD = 128            # 2*HID; also the (lane-dense) padded logits width
NUM_CLASSES = 2
LN_EPS = 1e-5


# ------------------------------- the kernel -------------------------------- #
def bilstm_kernel(x_ref, wgate_f_ref, whh_f_ref, wgate_b_ref, wfc_ref, small_ref,
                  out_ref):
    tb = x_ref.shape[0]
    S = x_ref.shape[1] // INPUT_DIM

    sp = small_ref[...]                          # packed small params (8, 256) f32
    b_fwd = sp[0:1, :]                           # folded fwd gate bias (1, 256)
    b_bwd = sp[1:2, :]                           # folded bwd gate bias (1, 256)
    gamma_f = sp[2:3, 0:HID]
    gamma_b = sp[2:3, HID:2 * HID]
    beta_f = sp[2:3, 2 * HID:3 * HID]
    beta_b = sp[2:3, 3 * HID:4 * HID]
    fc_bias = sp[3:4, 0:OUT_PAD]

    def xt_bf16(t):
        # Static, lane-aligned slice of the batch-major x block; bf16 cast feeds the MXU.
        return x_ref[:, t * INPUT_DIM:(t + 1) * INPUT_DIM].astype(jnp.bfloat16)

    # ---- hoisted, serially-independent phase: x -> gate pre-activations -------------
    wgate_f = wgate_f_ref[...]                                   # (1280, 256) bf16
    b_fwd_full = jnp.broadcast_to(b_fwd, (tb, GATES))            # broadcast ONCE
    g_in = []
    for t in range(S):
        g_in.append(jnp.dot(xt_bf16(t), wgate_f,
                            preferred_element_type=jnp.float32) + b_fwd_full)

    # ---- serial recurrence: only h@W_hh (tiny) + nonlinearities on the chain --------
    whh_f = whh_f_ref[...]                                       # (64, 256) bf16
    h = jnp.zeros((tb, HID), jnp.float32)
    c = jnp.zeros((tb, HID), jnp.float32)
    for t in range(S):
        g = g_in[t] + jnp.dot(h.astype(jnp.bfloat16), whh_f,
                              preferred_element_type=jnp.float32)
        sig = jax.nn.sigmoid(g[:, 0:3 * HID])                    # [i, f, o] in one slab
        i_g = sig[:, 0:HID]
        f_g = sig[:, HID:2 * HID]
        o_g = sig[:, 2 * HID:3 * HID]
        g_g = jnp.tanh(g[:, 3 * HID:4 * HID])
        c = f_g * c + i_g * g_g
        h = o_g * jnp.tanh(c)

    # ---- backward direction: ONE cell step on x[S-1] from a zero state --------------
    # (forget gate is irrelevant because c_prev == 0; W_hh_reverse drops out entirely).
    gb = jnp.dot(xt_bf16(S - 1), wgate_b_ref[...],
                 preferred_element_type=jnp.float32) + b_bwd
    sig_b = jax.nn.sigmoid(gb[:, 0:3 * HID])
    i_b = sig_b[:, 0:HID]
    o_b = sig_b[:, 2 * HID:3 * HID]
    g_b = jnp.tanh(gb[:, 3 * HID:4 * HID])
    h_b = o_b * jnp.tanh(i_b * g_b)

    # ---- LayerNorm over concat(h, h_b) without materializing the concat -------------
    inv_n = 1.0 / (2 * HID)
    mu = (jnp.sum(h, axis=-1, keepdims=True)
          + jnp.sum(h_b, axis=-1, keepdims=True)) * inv_n
    ex2 = (jnp.sum(h * h, axis=-1, keepdims=True)
           + jnp.sum(h_b * h_b, axis=-1, keepdims=True)) * inv_n
    var = jnp.maximum(ex2 - mu * mu, 0.0)        # clamp: garbage padded rows stay finite
    inv = jax.lax.rsqrt(var + LN_EPS)
    hf_n = (h - mu) * inv * gamma_f + beta_f
    hb_n = (h_b - mu) * inv * gamma_b + beta_b

    # ---- fc as a sum of two split-weight matmuls (== concat @ W_fc), lane-dense ------
    wfc = wfc_ref[...]                           # (128, 128) f32, cols >= 2 are zero
    logits = (jnp.dot(hf_n, wfc[0:HID, :], preferred_element_type=jnp.float32)
              + jnp.dot(hb_n, wfc[HID:2 * HID, :], preferred_element_type=jnp.float32)
              + fc_bias)
    out_ref[...] = logits.astype(out_ref.dtype)


# --------------------------- wrapper-side packing --------------------------- #
def _reorder_gates(w):
    """Permute the last (4*HID) axis from PyTorch order [i, f, g, o] to [i, f, o, g]."""
    return jnp.concatenate([w[..., 0:2 * HID], w[..., 3 * HID:4 * HID],
                            w[..., 2 * HID:3 * HID]], axis=-1)


def prepare_params(raw):
    (w_proj, b_proj,
     w_ih_f, w_hh_f, b_ih_f, b_hh_f,
     w_ih_b, w_hh_b, b_ih_b, b_hh_b,
     gamma, beta, w_fc, b_fc) = raw
    f32 = jnp.float32

    # Fold Linear(1280->96) into the LSTM input->gate weights (x only reaches the LSTM
    # through W_ih): W_gate = W_proj @ W_ih (1280, 256); projection bias folds into the
    # gate biases.  w_hh_b is NOT needed (backward runs a single step from a zero state).
    wgate_f = w_proj @ w_ih_f
    wgate_b = w_proj @ w_ih_b
    b_fwd_eff = (b_proj.reshape(1, -1) @ w_ih_f
                 + b_ih_f.reshape(1, -1) + b_hh_f.reshape(1, -1))
    b_bwd_eff = (b_proj.reshape(1, -1) @ w_ih_b
                 + b_ih_b.reshape(1, -1) + b_hh_b.reshape(1, -1))

    # Gate-column reorder [i,f,g,o] -> [i,f,o,g] + bf16 cast for the MXU bf16 path.
    wgate_f = _reorder_gates(wgate_f).astype(jnp.bfloat16)
    wgate_b = _reorder_gates(wgate_b).astype(jnp.bfloat16)
    whh_f = _reorder_gates(w_hh_f).astype(jnp.bfloat16)
    b_fwd_eff = _reorder_gates(b_fwd_eff)
    b_bwd_eff = _reorder_gates(b_bwd_eff)

    wfc_pad = jnp.zeros((OUT_PAD, OUT_PAD), f32).at[:, :NUM_CLASSES].set(w_fc)

    gamma = gamma.reshape(-1)
    beta = beta.reshape(-1)
    small = jnp.zeros((8, GATES), f32)
    small = small.at[0, :].set(b_fwd_eff[0])
    small = small.at[1, :].set(b_bwd_eff[0])
    small = small.at[2, 0:HID].set(gamma[:HID])
    small = small.at[2, HID:2 * HID].set(gamma[HID:])
    small = small.at[2, 2 * HID:3 * HID].set(beta[:HID])
    small = small.at[2, 3 * HID:4 * HID].set(beta[HID:])
    small = small.at[3, 0:NUM_CLASSES].set(b_fc.reshape(-1))

    return wgate_f, whh_f, wgate_b, wfc_pad, small


def _ceil_div(a, b):
    return -(-a // b)


def _choose_tile_b(B, tile_b):
    """Generation-aware batch tiling.

    - cap at tile_b (default 256: 2 x 10.5 MiB x-block buffers + ~1.5 MiB weights at
      S=8 fits comfortably under the 48 MiB VMEM limit, v7x-safe),
    - when the whole batch would fit in one block, split into >= 2 grid steps so the
      "parallel" axis actually shards across both v7x TensorCores,
    - keep tb a multiple of 8 (sublane constraint) unless tb == B.
    """
    tb = min(tile_b, B)
    if tb == B and B > 32:
        tb = min(B, _ceil_div(_ceil_div(B, 2), 16) * 16)
    return tb


def balanced_bilstm(x, raw_params, *, tile_b=256, vmem_limit_mb=48):
    """Forward pass of BalancedBiLSTM (eval mode, lengths=None)."""
    # TODO(synk): the lengths / pack_padded_sequence path (variable-length sequences)
    # is not implemented; only the lengths=None branch of the PyTorch forward exists.
    # TODO(synk): if S grows beyond ~16-32, add a time-chunk grid axis ("arbitrary",
    # h/c carried in VMEM scratch) instead of pulling the whole (tb, S*1280) block.
    if x.ndim == 2:                     # matches `x.unsqueeze(1)` in the PyTorch forward
        x = x[:, None, :]
    B, S, D = x.shape
    assert D == INPUT_DIM

    wgate_f, whh_f, wgate_b, wfc, small = prepare_params(raw_params)

    # Batch-major, no transpose and no wrapper-side cast (avoids an extra full
    # read+write of x). Merging (S, 1280) -> S*1280 is a contiguous-dim merge.
    x2d = x.reshape(B, S * INPUT_DIM)

    tb = _choose_tile_b(B, tile_b)
    grid = (pl.cdiv(B, tb),)
    const = lambda i: (0, 0)            # weights resident in VMEM across grid steps

    out_pad = pl.pallas_call(
        bilstm_kernel,
        out_shape=jax.ShapeDtypeStruct((B, OUT_PAD), jnp.float32),
        grid=grid,
        in_specs=[
            pl.BlockSpec((tb, S * INPUT_DIM), lambda i: (i, 0)),
            pl.BlockSpec((INPUT_DIM, GATES), const),
            pl.BlockSpec((HID, GATES), const),
            pl.BlockSpec((INPUT_DIM, GATES), const),
            pl.BlockSpec((OUT_PAD, OUT_PAD), const),
            pl.BlockSpec((8, GATES), const),
        ],
        out_specs=pl.BlockSpec((tb, OUT_PAD), lambda i: (i, 0)),
        compiler_params=pltpu.CompilerParams(
            dimension_semantics=("parallel",),
            vmem_limit_bytes=vmem_limit_mb * 1024 * 1024),
    )(x2d, wgate_f, whh_f, wgate_b, wfc, small)

    return out_pad[:, :NUM_CLASSES]


# --------------------------- parameter initialization ----------------------- #
def init_params(key):
    ks = jax.random.split(key, 12)
    f32 = jnp.float32

    def uni(k, shape, bound):
        return jax.random.uniform(k, shape, f32, -bound, bound)

    bp = 1.0 / (INPUT_DIM ** 0.5)
    bl = 1.0 / (HID ** 0.5)
    bf = 1.0 / ((2 * HID) ** 0.5)

    w_proj = uni(ks[0], (INPUT_DIM, PROJ_DIM), bp)
    b_proj = uni(ks[1], (PROJ_DIM,), bp)
    w_ih_f = uni(ks[2], (PROJ_DIM, GATES), bl)
    w_hh_f = uni(ks[3], (HID, GATES), bl)
    b_ih_f = uni(ks[4], (1, GATES), bl)
    b_hh_f = uni(ks[5], (1, GATES), bl)
    w_ih_b = uni(ks[6], (PROJ_DIM, GATES), bl)
    w_hh_b = uni(ks[7], (HID, GATES), bl)
    b_ih_b = uni(ks[8], (1, GATES), bl)
    b_hh_b = uni(ks[9], (1, GATES), bl)
    gamma = jnp.ones((1, 2 * HID), f32)
    beta = jnp.zeros((1, 2 * HID), f32)
    w_fc = uni(ks[10], (2 * HID, NUM_CLASSES), bf)
    b_fc = uni(ks[11], (NUM_CLASSES,), bf)
    return (w_proj, b_proj, w_ih_f, w_hh_f, b_ih_f, b_hh_f,
            w_ih_b, w_hh_b, b_ih_b, b_hh_b, gamma, beta, w_fc, b_fc)


# --------------------------- pure-JAX reference ----------------------------- #
def reference(x, raw_params):
    """Full bidirectional-LSTM reference (both directions over all S steps).

    Mirrors the kernel's bf16 quantization of x, the folded input->gate weight, and the
    bf16 recurrent weight (f32 accumulation everywhere), so the comparison is tight;
    it is self-consistent rather than bit-faithful to a pure-f32 PyTorch forward.
    """
    (w_proj, b_proj,
     w_ih_f, w_hh_f, b_ih_f, b_hh_f,
     w_ih_b, w_hh_b, b_ih_b, b_hh_b,
     gamma, beta, w_fc, b_fc) = raw_params
    if x.ndim == 2:
        x = x[:, None, :]
    B, S, _ = x.shape

    wg_f = (w_proj @ w_ih_f).astype(jnp.bfloat16)
    wg_b = (w_proj @ w_ih_b).astype(jnp.bfloat16)
    bf = (b_proj.reshape(1, -1) @ w_ih_f
          + b_ih_f.reshape(1, -1) + b_hh_f.reshape(1, -1))
    bb = (b_proj.reshape(1, -1) @ w_ih_b
          + b_ih_b.reshape(1, -1) + b_hh_b.reshape(1, -1))
    xb = x.astype(jnp.bfloat16)

    def cell(gx, h, c, w_hh):
        g = gx + jnp.dot(h.astype(jnp.bfloat16), w_hh.astype(jnp.bfloat16),
                         preferred_element_type=jnp.float32)
        i = jax.nn.sigmoid(g[:, 0:HID])
        f = jax.nn.sigmoid(g[:, HID:2 * HID])
        gg = jnp.tanh(g[:, 2 * HID:3 * HID])
        o = jax.nn.sigmoid(g[:, 3 * HID:4 * HID])
        c = f * c + i * gg
        h = o * jnp.tanh(c)
        return h, c

    h = jnp.zeros((B, HID), jnp.float32)
    c = jnp.zeros((B, HID), jnp.float32)
    fwd = []
    for t in range(S):
        gx = jnp.dot(xb[:, t], wg_f, preferred_element_type=jnp.float32) + bf
        h, c = cell(gx, h, c, w_hh_f)
        fwd.append(h)

    hb = jnp.zeros((B, HID), jnp.float32)
    cb = jnp.zeros((B, HID), jnp.float32)
    bwd = [None] * S
    for t in reversed(range(S)):
        gx = jnp.dot(xb[:, t], wg_b, preferred_element_type=jnp.float32) + bb
        hb, cb = cell(gx, hb, cb, w_hh_b)
        bwd[t] = hb

    last = jnp.concatenate([fwd[-1], bwd[-1]], axis=-1)        # output[:, -1, :]
    mu = jnp.mean(last, axis=-1, keepdims=True)
    var = jnp.mean((last - mu) ** 2, axis=-1, keepdims=True)
    last = (last - mu) / jnp.sqrt(var + LN_EPS) * gamma.reshape(1, -1) + beta.reshape(1, -1)
    return last @ w_fc + b_fc.reshape(1, -1)


# --------------------------------- main ------------------------------------ #
if __name__ == "__main__":
    key = jax.random.PRNGKey(0)
    kx, kp = jax.random.split(key)

    B, S = 2, 8
    x = jax.random.normal(kx, (B, S, INPUT_DIM), jnp.float32)
    params = init_params(kp)

    out = jax.jit(balanced_bilstm)(x, params)
    jax.block_until_ready(out)

    ref = reference(x, params)
    assert out.shape == (B, NUM_CLASSES)
    assert jnp.allclose(out, ref, atol=2e-3, rtol=2e-3), (out, ref)

    print("KERNEL_OK")
</pallas_src>

<mosaic_0001>
module attributes {stable_mosaic.version = 11 : i64} {
  func.func @bilstm_kernel(%arg0: i32, %arg1: memref<2x10240xf32, #tpu.memory_space<vmem>>, %arg2: memref<1280x256xbf16, #tpu.memory_space<vmem>>, %arg3: memref<64x256xbf16, #tpu.memory_space<vmem>>, %arg4: memref<1280x256xbf16, #tpu.memory_space<vmem>>, %arg5: memref<128x128xf32, #tpu.memory_space<vmem>>, %arg6: memref<8x256xf32, #tpu.memory_space<vmem>>, %arg7: memref<2x128xf32, #tpu.memory_space<vmem>>) attributes {dimension_semantics = [#tpu.dimension_semantics<parallel>], iteration_bounds = array<i64: 1>, scalar_prefetch = 0 : i64, scratch_operands = 0 : i64, tpu.core_type = #tpu.core_type<tc>, window_params = [{transform_indices = @transform_0, window_bounds = array<i64: 2, 10240>}, {pipeline_mode = #tpu.pipeline_mode<synchronous>, transform_indices = @transform_1, window_bounds = array<i64: 1280, 256>}, {pipeline_mode = #tpu.pipeline_mode<synchronous>, transform_indices = @transform_2, window_bounds = array<i64: 64, 256>}, {pipeline_mode = #tpu.pipeline_mode<synchronous>, transform_indices = @transform_3, window_bounds = array<i64: 1280, 256>}, {pipeline_mode = #tpu.pipeline_mode<synchronous>, transform_indices = @transform_4, window_bounds = array<i64: 128, 128>}, {pipeline_mode = #tpu.pipeline_mode<synchronous>, transform_indices = @transform_5, window_bounds = array<i64: 8, 256>}, {transform_indices = @transform_6, window_bounds = array<i64: 2, 128>}]} {
    %c0 = arith.constant 0 : index
    %c0_0 = arith.constant 0 : index
    %0 = vector.load %arg6[%c0, %c0_0] : memref<8x256xf32, #tpu.memory_space<vmem>>, vector<8x256xf32>
    %1 = vector.extract_strided_slice %0 {offsets = [0, 0], sizes = [1, 256], strides = [1, 1]} : vector<8x256xf32> to vector<1x256xf32>
    %2 = vector.extract_strided_slice %0 {offsets = [1, 0], sizes = [1, 256], strides = [1, 1]} : vector<8x256xf32> to vector<1x256xf32>
    %3 = vector.extract_strided_slice %0 {offsets = [2, 0], sizes = [1, 64], strides = [1, 1]} : vector<8x256xf32> to vector<1x64xf32>
    %4 = vector.extract_strided_slice %0 {offsets = [2, 64], sizes = [1, 64], strides = [1, 1]} : vector<8x256xf32> to vector<1x64xf32>
    %5 = vector.extract_strided_slice %0 {offsets = [2, 128], sizes = [1, 64], strides = [1, 1]} : vector<8x256xf32> to vector<1x64xf32>
    %6 = vector.extract_strided_slice %0 {offsets = [2, 192], sizes = [1, 64], strides = [1, 1]} : vector<8x256xf32> to vector<1x64xf32>
    %7 = vector.extract_strided_slice %0 {offsets = [3, 0], sizes = [1, 128], strides = [1, 1]} : vector<8x256xf32> to vector<1x128xf32>
    %c0_1 = arith.constant 0 : index
    %c0_2 = arith.constant 0 : index
    %8 = vector.load %arg2[%c0_1, %c0_2] : memref<1280x256xbf16, #tpu.memory_space<vmem>>, vector<1280x256xbf16>
    %9 = vector.shape_cast %1 : vector<1x256xf32> to vector<1x256xf32>
    %10 = vector.broadcast %9 : vector<1x256xf32> to vector<2x256xf32>
    %c0_3 = arith.constant 0 : index
    %c0_4 = arith.constant 0 : index
    %11 = vector.load %arg1[%c0_3, %c0_4] : memref<2x10240xf32, #tpu.memory_space<vmem>>, vector<2x1280xf32>
    %12 = arith.truncf %11 : vector<2x1280xf32> to vector<2x1280xbf16>
    %cst = arith.constant dense<0.000000e+00> : vector<2x256xf32>
    %13 = tpu.matmul %12, %8, %cst {dimension_numbers = #tpu.dot_dimension_numbers<[1], [0], [0], [1], [0, 0, 1, 1], [], []>} : vector<2x1280xbf16>, vector<1280x256xbf16>, vector<2x256xf32> -> vector<2x256xf32>
    %14 = arith.addf %13, %10 : vector<2x256xf32>
    %c0_5 = arith.constant 0 : index
    %c1280 = arith.constant 1280 : index
    %15 = vector.load %arg1[%c0_5, %c1280] : memref<2x10240xf32, #tpu.memory_space<vmem>>, vector<2x1280xf32>
    %16 = arith.truncf %15 : vector<2x1280xf32> to vector<2x1280xbf16>
    %cst_6 = arith.constant dense<0.000000e+00> : vector<2x256xf32>
    %17 = tpu.matmul %16, %8, %cst_6 {dimension_numbers = #tpu.dot_dimension_numbers<[1], [0], [0], [1], [0, 0, 1, 1], [], []>} : vector<2x1280xbf16>, vector<1280x256xbf16>, vector<2x256xf32> -> vector<2x256xf32>
    %18 = arith.addf %17, %10 : vector<2x256xf32>
    %c0_7 = arith.constant 0 : index
    %c2560 = arith.constant 2560 : index
    %19 = vector.load %arg1[%c0_7, %c2560] : memref<2x10240xf32, #tpu.memory_space<vmem>>, vector<2x1280xf32>
    %20 = arith.truncf %19 : vector<2x1280xf32> to vector<2x1280xbf16>
    %cst_8 = arith.constant dense<0.000000e+00> : vector<2x256xf32>
    %21 = tpu.matmul %20, %8, %cst_8 {dimension_numbers = #tpu.dot_dimension_numbers<[1], [0], [0], [1], [0, 0, 1, 1], [], []>} : vector<2x1280xbf16>, vector<1280x256xbf16>, vector<2x256xf32> -> vector<2x256xf32>
    %22 = arith.addf %21, %10 : vector<2x256xf32>
    %c0_9 = arith.constant 0 : index
    %c3840 = arith.constant 3840 : index
    %23 = vector.load %arg1[%c0_9, %c3840] : memref<2x10240xf32, #tpu.memory_space<vmem>>, vector<2x1280xf32>
    %24 = arith.truncf %23 : vector<2x1280xf32> to vector<2x1280xbf16>
    %cst_10 = arith.constant dense<0.000000e+00> : vector<2x256xf32>
    %25 = tpu.matmul %24, %8, %cst_10 {dimension_numbers = #tpu.dot_dimension_numbers<[1], [0], [0], [1], [0, 0, 1, 1], [], []>} : vector<2x1280xbf16>, vector<1280x256xbf16>, vector<2x256xf32> -> vector<2x256xf32>
    %26 = arith.addf %25, %10 : vector<2x256xf32>
    %c0_11 = arith.constant 0 : index
    %c5120 = arith.constant 5120 : index
    %27 = vector.load %arg1[%c0_11, %c5120] : memref<2x10240xf32, #tpu.memory_space<vmem>>, vector<2x1280xf32>
    %28 = arith.truncf %27 : vector<2x1280xf32> to vector<2x1280xbf16>
    %cst_12 = arith.constant dense<0.000000e+00> : vector<2x256xf32>
    %29 = tpu.matmul %28, %8, %cst_12 {dimension_numbers = #tpu.dot_dimension_numbers<[1], [0], [0], [1], [0, 0, 1, 1], [], []>} : vector<2x1280xbf16>, vector<1280x256xbf16>, vector<2x256xf32> -> vector<2x256xf32>
    %30 = arith.addf %29, %10 : vector<2x256xf32>
    %c0_13 = arith.constant 0 : index
    %c6400 = arith.constant 6400 : index
    %31 = vector.load %arg1[%c0_13, %c6400] : memref<2x10240xf32, #tpu.memory_space<vmem>>, vector<2x1280xf32>
    %32 = arith.truncf %31 : vector<2x1280xf32> to vector<2x1280xbf16>
    %cst_14 = arith.constant dense<0.000000e+00> : vector<2x256xf32>
    %33 = tpu.matmul %32, %8, %cst_14 {dimension_numbers = #tpu.dot_dimension_numbers<[1], [0], [0], [1], [0, 0, 1, 1], [], []>} : vector<2x1280xbf16>, vector<1280x256xbf16>, vector<2x256xf32> -> vector<2x256xf32>
    %34 = arith.addf %33, %10 : vector<2x256xf32>
    %c0_15 = arith.constant 0 : index
    %c7680 = arith.constant 7680 : index
    %35 = vector.load %arg1[%c0_15, %c7680] : memref<2x10240xf32, #tpu.memory_space<vmem>>, vector<2x1280xf32>
    %36 = arith.truncf %35 : vector<2x1280xf32> to vector<2x1280xbf16>
    %cst_16 = arith.constant dense<0.000000e+00> : vector<2x256xf32>
    %37 = tpu.matmul %36, %8, %cst_16 {dimension_numbers = #tpu.dot_dimension_numbers<[1], [0], [0], [1], [0, 0, 1, 1], [], []>} : vector<2x1280xbf16>, vector<1280x256xbf16>, vector<2x256xf32> -> vector<2x256xf32>
    %38 = arith.addf %37, %10 : vector<2x256xf32>
    %c0_17 = arith.constant 0 : index
    %c8960 = arith.constant 8960 : index
    %39 = vector.load %arg1[%c0_17, %c8960] : memref<2x10240xf32, #tpu.memory_space<vmem>>, vector<2x1280xf32>
    %40 = arith.truncf %39 : vector<2x1280xf32> to vector<2x1280xbf16>
    %cst_18 = arith.constant dense<0.000000e+00> : vector<2x256xf32>
    %41 = tpu.matmul %40, %8, %cst_18 {dimension_numbers = #tpu.dot_dimension_numbers<[1], [0], [0], [1], [0, 0, 1, 1], [], []>} : vector<2x1280xbf16>, vector<1280x256xbf16>, vector<2x256xf32> -> vector<2x256xf32>
    %42 = arith.addf %41, %10 : vector<2x256xf32>
    %c0_19 = arith.constant 0 : index
    %c0_20 = arith.constant 0 : index
    %43 = vector.load %arg3[%c0_19, %c0_20] : memref<64x256xbf16, #tpu.memory_space<vmem>>, vector<64x256xbf16>
    %cst_21 = arith.constant 0.000000e+00 : f32
    %44 = vector.broadcast %cst_21 : f32 to vector<2x64xf32>
    %cst_22 = arith.constant 0.000000e+00 : f32
    %45 = vector.broadcast %cst_22 : f32 to vector<2x64xf32>
    %46 = arith.truncf %44 : vector<2x64xf32> to vector<2x64xbf16>
    %cst_23 = arith.constant dense<0.000000e+00> : vector<2x256xf32>
    %47 = tpu.matmul %46, %43, %cst_23 {dimension_numbers = #tpu.dot_dimension_numbers<[1], [0], [0], [1], [0, 0, 1, 1], [], []>} : vector<2x64xbf16>, vector<64x256xbf16>, vector<2x256xf32> -> vector<2x256xf32>
    %48 = arith.addf %14, %47 : vector<2x256xf32>
    %49 = vector.extract_strided_slice %48 {offsets = [0, 0], sizes = [2, 192], strides = [1, 1]} : vector<2x256xf32> to vector<2x192xf32>
    %50 = arith.negf %49 : vector<2x192xf32>
    %51 = math.exp %50 : vector<2x192xf32>
    %cst_24 = arith.constant 1.000000e+00 : f32
    %52 = vector.broadcast %cst_24 : f32 to vector<2x192xf32>
    %53 = arith.addf %52, %51 : vector<2x192xf32>
    %54 = arith.divf %52, %53 : vector<2x192xf32>
    %55 = vector.extract_strided_slice %54 {offsets = [0, 0], sizes = [2, 64], strides = [1, 1]} : vector<2x192xf32> to vector<2x64xf32>
    %56 = vector.extract_strided_slice %54 {offsets = [0, 64], sizes = [2, 64], strides = [1, 1]} : vector<2x192xf32> to vector<2x64xf32>
    %57 = vector.extract_strided_slice %54 {offsets = [0, 128], sizes = [2, 64], strides = [1, 1]} : vector<2x192xf32> to vector<2x64xf32>
    %58 = vector.extract_strided_slice %48 {offsets = [0, 192], sizes = [2, 64], strides = [1, 1]} : vector<2x256xf32> to vector<2x64xf32>
    %59 = math.tanh %58 : vector<2x64xf32>
    %60 = arith.mulf %56, %45 : vector<2x64xf32>
    %61 = arith.mulf %55, %59 : vector<2x64xf32>
    %62 = arith.addf %60, %61 : vector<2x64xf32>
    %63 = math.tanh %62 : vector<2x64xf32>
    %64 = arith.mulf %57, %63 : vector<2x64xf32>
    %65 = arith.truncf %64 : vector<2x64xf32> to vector<2x64xbf16>
    %cst_25 = arith.constant dense<0.000000e+00> : vector<2x256xf32>
    %66 = tpu.matmul %65, %43, %cst_25 {dimension_numbers = #tpu.dot_dimension_numbers<[1], [0], [0], [1], [0, 0, 1, 1], [], []>} : vector<2x64xbf16>, vector<64x256xbf16>, vector<2x256xf32> -> vector<2x256xf32>
    %67 = arith.addf %18, %66 : vector<2x256xf32>
    %68 = vector.extract_strided_slice %67 {offsets = [0, 0], sizes = [2, 192], strides = [1, 1]} : vector<2x256xf32> to vector<2x192xf32>
    %69 = arith.negf %68 : vector<2x192xf32>
    %70 = math.exp %69 : vector<2x192xf32>
    %cst_26 = arith.constant 1.000000e+00 : f32
    %71 = vector.broadcast %cst_26 : f32 to vector<2x192xf32>
    %72 = arith.addf %71, %70 : vector<2x192xf32>
    %73 = arith.divf %71, %72 : vector<2x192xf32>
    %74 = vector.extract_strided_slice %73 {offsets = [0, 0], sizes = [2, 64], strides = [1, 1]} : vector<2x192xf32> to vector<2x64xf32>
    %75 = vector.extract_strided_slice %73 {offsets = [0, 64], sizes = [2, 64], strides = [1, 1]} : vector<2x192xf32> to vector<2x64xf32>
    %76 = vector.extract_strided_slice %73 {offsets = [0, 128], sizes = [2, 64], strides = [1, 1]} : vector<2x192xf32> to vector<2x64xf32>
    %77 = vector.extract_strided_slice %67 {offsets = [0, 192], sizes = [2, 64], strides = [1, 1]} : vector<2x256xf32> to vector<2x64xf32>
    %78 = math.tanh %77 : vector<2x64xf32>
    %79 = arith.mulf %75, %62 : vector<2x64xf32>
    %80 = arith.mulf %74, %78 : vector<2x64xf32>
    %81 = arith.addf %79, %80 : vector<2x64xf32>
    %82 = math.tanh %81 : vector<2x64xf32>
    %83 = arith.mulf %76, %82 : vector<2x64xf32>
    %84 = arith.truncf %83 : vector<2x64xf32> to vector<2x64xbf16>
    %cst_27 = arith.constant dense<0.000000e+00> : vector<2x256xf32>
    %85 = tpu.matmul %84, %43, %cst_27 {dimension_numbers = #tpu.dot_dimension_numbers<[1], [0], [0], [1], [0, 0, 1, 1], [], []>} : vector<2x64xbf16>, vector<64x256xbf16>, vector<2x256xf32> -> vector<2x256xf32>
    %86 = arith.addf %22, %85 : vector<2x256xf32>
    %87 = vector.extract_strided_slice %86 {offsets = [0, 0], sizes = [2, 192], strides = [1, 1]} : vector<2x256xf32> to vector<2x192xf32>
    %88 = arith.negf %87 : vector<2x192xf32>
    %89 = math.exp %88 : vector<2x192xf32>
    %cst_28 = arith.constant 1.000000e+00 : f32
    %90 = vector.broadcast %cst_28 : f32 to vector<2x192xf32>
    %91 = arith.addf %90, %89 : vector<2x192xf32>
    %92 = arith.divf %90, %91 : vector<2x192xf32>
    %93 = vector.extract_strided_slice %92 {offsets = [0, 0], sizes = [2, 64], strides = [1, 1]} : vector<2x192xf32> to vector<2x64xf32>
    %94 = vector.extract_strided_slice %92 {offsets = [0, 64], sizes = [2, 64], strides = [1, 1]} : vector<2x192xf32> to vector<2x64xf32>
    %95 = vector.extract_strided_slice %92 {offsets = [0, 128], sizes = [2, 64], strides = [1, 1]} : vector<2x192xf32> to vector<2x64xf32>
    %96 = vector.extract_strided_slice %86 {offsets = [0, 192], sizes = [2, 64], strides = [1, 1]} : vector<2x256xf32> to vector<2x64xf32>
    %97 = math.tanh %96 : vector<2x64xf32>
    %98 = arith.mulf %94, %81 : vector<2x64xf32>
    %99 = arith.mulf %93, %97 : vector<2x64xf32>
    %100 = arith.addf %98, %99 : vector<2x64xf32>
    %101 = math.tanh %100 : vector<2x64xf32>
    %102 = arith.mulf %95, %101 : vector<2x64xf32>
    %103 = arith.truncf %102 : vector<2x64xf32> to vector<2x64xbf16>
    %cst_29 = arith.constant dense<0.000000e+00> : vector<2x256xf32>
    %104 = tpu.matmul %103, %43, %cst_29 {dimension_numbers = #tpu.dot_dimension_numbers<[1], [0], [0], [1], [0, 0, 1, 1], [], []>} : vector<2x64xbf16>, vector<64x256xbf16>, vector<2x256xf32> -> vector<2x256xf32>
    %105 = arith.addf %26, %104 : vector<2x256xf32>
    %106 = vector.extract_strided_slice %105 {offsets = [0, 0], sizes = [2, 192], strides = [1, 1]} : vector<2x256xf32> to vector<2x192xf32>
    %107 = arith.negf %106 : vector<2x192xf32>
    %108 = math.exp %107 : vector<2x192xf32>
    %cst_30 = arith.constant 1.000000e+00 : f32
    %109 = vector.broadcast %cst_30 : f32 to vector<2x192xf32>
    %110 = arith.addf %109, %108 : vector<2x192xf32>
    %111 = arith.divf %109, %110 : vector<2x192xf32>
    %112 = vector.extract_strided_slice %111 {offsets = [0, 0], sizes = [2, 64], strides = [1, 1]} : vector<2x192xf32> to vector<2x64xf32>
    %113 = vector.extract_strided_slice %111 {offsets = [0, 64], sizes = [2, 64], strides = [1, 1]} : vector<2x192xf32> to vector<2x64xf32>
    %114 = vector.extract_strided_slice %111 {offsets = [0, 128], sizes = [2, 64], strides = [1, 1]} : vector<2x192xf32> to vector<2x64xf32>
    %115 = vector.extract_strided_slice %105 {offsets = [0, 192], sizes = [2, 64], strides = [1, 1]} : vector<2x256xf32> to vector<2x64xf32>
    %116 = math.tanh %115 : vector<2x64xf32>
    %117 = arith.mulf %113, %100 : vector<2x64xf32>
    %118 = arith.mulf %112, %116 : vector<2x64xf32>
    %119 = arith.addf %117, %118 : vector<2x64xf32>
    %120 = math.tanh %119 : vector<2x64xf32>
    %121 = arith.mulf %114, %120 : vector<2x64xf32>
    %122 = arith.truncf %121 : vector<2x64xf32> to vector<2x64xbf16>
    %cst_31 = arith.constant dense<0.000000e+00> : vector<2x256xf32>
    %123 = tpu.matmul %122, %43, %cst_31 {dimension_numbers = #tpu.dot_dimension_numbers<[1], [0], [0], [1], [0, 0, 1, 1], [], []>} : vector<2x64xbf16>, vector<64x256xbf16>, vector<2x256xf32> -> vector<2x256xf32>
    %124 = arith.addf %30, %123 : vector<2x256xf32>
    %125 = vector.extract_strided_slice %124 {offsets = [0, 0], sizes = [2, 192], strides = [1, 1]} : vector<2x256xf32> to vector<2x192xf32>
    %126 = arith.negf %125 : vector<2x192xf32>
    %127 = math.exp %126 : vector<2x192xf32>
    %cst_32 = arith.constant 1.000000e+00 : f32
    %128 = vector.broadcast %cst_32 : f32 to vector<2x192xf32>
    %129 = arith.addf %128, %127 : vector<2x192xf32>
    %130 = arith.divf %128, %129 : vector<2x192xf32>
    %131 = vector.extract_strided_slice %130 {offsets = [0, 0], sizes = [2, 64], strides = [1, 1]} : vector<2x192xf32> to vector<2x64xf32>
    %132 = vector.extract_strided_slice %130 {offsets = [0, 64], sizes = [2, 64], strides = [1, 1]} : vector<2x192xf32> to vector<2x64xf32>
    %133 = vector.extract_strided_slice %130 {offsets = [0, 128], sizes = [2, 64], strides = [1, 1]} : vector<2x192xf32> to vector<2x64xf32>
    %134 = vector.extract_strided_slice %124 {offsets = [0, 192], sizes = [2, 64], strides = [1, 1]} : vector<2x256xf32> to vector<2x64xf32>
    %135 = math.tanh %134 : vector<2x64xf32>
    %136 = arith.mulf %132, %119 : vector<2x64xf32>
    %137 = arith.mulf %131, %135 : vector<2x64xf32>
    %138 = arith.addf %136, %137 : vector<2x64xf32>
    %139 = math.tanh %138 : vector<2x64xf32>
    %140 = arith.mulf %133, %139 : vector<2x64xf32>
    %141 = arith.truncf %140 : vector<2x64xf32> to vector<2x64xbf16>
    %cst_33 = arith.constant dense<0.000000e+00> : vector<2x256xf32>
    %142 = tpu.matmul %141, %43, %cst_33 {dimension_numbers = #tpu.dot_dimension_numbers<[1], [0], [0], [1], [0, 0, 1, 1], [], []>} : vector<2x64xbf16>, vector<64x256xbf16>, vector<2x256xf32> -> vector<2x256xf32>
    %143 = arith.addf %34, %142 : vector<2x256xf32>
    %144 = vector.extract_strided_slice %143 {offsets = [0, 0], sizes = [2, 192], strides = [1, 1]} : vector<2x256xf32> to vector<2x192xf32>
    %145 = arith.negf %144 : vector<2x192xf32>
    %146 = math.exp %145 : vector<2x192xf32>
    %cst_34 = arith.constant 1.000000e+00 : f32
    %147 = vector.broadcast %cst_34 : f32 to vector<2x192xf32>
    %148 = arith.addf %147, %146 : vector<2x192xf32>
    %149 = arith.divf %147, %148 : vector<2x192xf32>
    %150 = vector.extract_strided_slice %149 {offsets = [0, 0], sizes = [2, 64], strides = [1, 1]} : vector<2x192xf32> to vector<2x64xf32>
    %151 = vector.extract_strided_slice %149 {offsets = [0, 64], sizes = [2, 64], strides = [1, 1]} : vector<2x192xf32> to vector<2x64xf32>
    %152 = vector.extract_strided_slice %149 {offsets = [0, 128], sizes = [2, 64], strides = [1, 1]} : vector<2x192xf32> to vector<2x64xf32>
    %153 = vector.extract_strided_slice %143 {offsets = [0, 192], sizes = [2, 64], strides = [1, 1]} : vector<2x256xf32> to vector<2x64xf32>
    %154 = math.tanh %153 : vector<2x64xf32>
    %155 = arith.mulf %151, %138 : vector<2x64xf32>
    %156 = arith.mulf %150, %154 : vector<2x64xf32>
    %157 = arith.addf %155, %156 : vector<2x64xf32>
    %158 = math.tanh %157 : vector<2x64xf32>
    %159 = arith.mulf %152, %158 : vector<2x64xf32>
    %160 = arith.truncf %159 : vector<2x64xf32> to vector<2x64xbf16>
    %cst_35 = arith.constant dense<0.000000e+00> : vector<2x256xf32>
    %161 = tpu.matmul %160, %43, %cst_35 {dimension_numbers = #tpu.dot_dimension_numbers<[1], [0], [0], [1], [0, 0, 1, 1], [], []>} : vector<2x64xbf16>, vector<64x256xbf16>, vector<2x256xf32> -> vector<2x256xf32>
    %162 = arith.addf %38, %161 : vector<2x256xf32>
    %163 = vector.extract_strided_slice %162 {offsets = [0, 0], sizes = [2, 192], strides = [1, 1]} : vector<2x256xf32> to vector<2x192xf32>
    %164 = arith.negf %163 : vector<2x192xf32>
    %165 = math.exp %164 : vector<2x192xf32>
    %cst_36 = arith.constant 1.000000e+00 : f32
    %166 = vector.broadcast %cst_36 : f32 to vector<2x192xf32>
    %167 = arith.addf %166, %165 : vector<2x192xf32>
    %168 = arith.divf %166, %167 : vector<2x192xf32>
    %169 = vector.extract_strided_slice %168 {offsets = [0, 0], sizes = [2, 64], strides = [1, 1]} : vector<2x192xf32> to vector<2x64xf32>
    %170 = vector.extract_strided_slice %168 {offsets = [0, 64], sizes = [2, 64], strides = [1, 1]} : vector<2x192xf32> to vector<2x64xf32>
    %171 = vector.extract_strided_slice %168 {offsets = [0, 128], sizes = [2, 64], strides = [1, 1]} : vector<2x192xf32> to vector<2x64xf32>
    %172 = vector.extract_strided_slice %162 {offsets = [0, 192], sizes = [2, 64], strides = [1, 1]} : vector<2x256xf32> to vector<2x64xf32>
    %173 = math.tanh %172 : vector<2x64xf32>
    %174 = arith.mulf %170, %157 : vector<2x64xf32>
    %175 = arith.mulf %169, %173 : vector<2x64xf32>
    %176 = arith.addf %174, %175 : vector<2x64xf32>
    %177 = math.tanh %176 : vector<2x64xf32>
    %178 = arith.mulf %171, %177 : vector<2x64xf32>
    %179 = arith.truncf %178 : vector<2x64xf32> to vector<2x64xbf16>
    %cst_37 = arith.constant dense<0.000000e+00> : vector<2x256xf32>
    %180 = tpu.matmul %179, %43, %cst_37 {dimension_numbers = #tpu.dot_dimension_numbers<[1], [0], [0], [1], [0, 0, 1, 1], [], []>} : vector<2x64xbf16>, vector<64x256xbf16>, vector<2x256xf32> -> vector<2x256xf32>
    %181 = arith.addf %42, %180 : vector<2x256xf32>
    %182 = vector.extract_strided_slice %181 {offsets = [0, 0], sizes = [2, 192], strides = [1, 1]} : vector<2x256xf32> to vector<2x192xf32>
    %183 = arith.negf %182 : vector<2x192xf32>
    %184 = math.exp %183 : vector<2x192xf32>
    %cst_38 = arith.constant 1.000000e+00 : f32
    %185 = vector.broadcast %cst_38 : f32 to vector<2x192xf32>
    %186 = arith.addf %185, %184 : vector<2x192xf32>
    %187 = arith.divf %185, %186 : vector<2x192xf32>
    %188 = vector.extract_strided_slice %187 {offsets = [0, 0], sizes = [2, 64], strides = [1, 1]} : vector<2x192xf32> to vector<2x64xf32>
    %189 = vector.extract_strided_slice %187 {offsets = [0, 64], sizes = [2, 64], strides = [1, 1]} : vector<2x192xf32> to vector<2x64xf32>
    %190 = vector.extract_strided_slice %187 {offsets = [0, 128], sizes = [2, 64], strides = [1, 1]} : vector<2x192xf32> to vector<2x64xf32>
    %191 = vector.extract_strided_slice %181 {offsets = [0, 192], sizes = [2, 64], strides = [1, 1]} : vector<2x256xf32> to vector<2x64xf32>
    %192 = math.tanh %191 : vector<2x64xf32>
    %193 = arith.mulf %189, %176 : vector<2x64xf32>
    %194 = arith.mulf %188, %192 : vector<2x64xf32>
    %195 = arith.addf %193, %194 : vector<2x64xf32>
    %196 = math.tanh %195 : vector<2x64xf32>
    %197 = arith.mulf %190, %196 : vector<2x64xf32>
    %c0_39 = arith.constant 0 : index
    %c8960_40 = arith.constant 8960 : index
    %198 = vector.load %arg1[%c0_39, %c8960_40] : memref<2x10240xf32, #tpu.memory_space<vmem>>, vector<2x1280xf32>
    %199 = arith.truncf %198 : vector<2x1280xf32> to vector<2x1280xbf16>
    %c0_41 = arith.constant 0 : index
    %c0_42 = arith.constant 0 : index
    %200 = vector.load %arg4[%c0_41, %c0_42] : memref<1280x256xbf16, #tpu.memory_space<vmem>>, vector<1280x256xbf16>
    %cst_43 = arith.constant dense<0.000000e+00> : vector<2x256xf32>
    %201 = tpu.matmul %199, %200, %cst_43 {dimension_numbers = #tpu.dot_dimension_numbers<[1], [0], [0], [1], [0, 0, 1, 1], [], []>} : vector<2x1280xbf16>, vector<1280x256xbf16>, vector<2x256xf32> -> vector<2x256xf32>
    %202 = vector.broadcast %2 : vector<1x256xf32> to vector<2x256xf32>
    %203 = arith.addf %201, %202 : vector<2x256xf32>
    %204 = vector.extract_strided_slice %203 {offsets = [0, 0], sizes = [2, 192], strides = [1, 1]} : vector<2x256xf32> to vector<2x192xf32>
    %205 = arith.negf %204 : vector<2x192xf32>
    %206 = math.exp %205 : vector<2x192xf32>
    %cst_44 = arith.constant 1.000000e+00 : f32
    %207 = vector.broadcast %cst_44 : f32 to vector<2x192xf32>
    %208 = arith.addf %207, %206 : vector<2x192xf32>
    %209 = arith.divf %207, %208 : vector<2x192xf32>
    %210 = vector.extract_strided_slice %209 {offsets = [0, 0], sizes = [2, 64], strides = [1, 1]} : vector<2x192xf32> to vector<2x64xf32>
    %211 = vector.extract_strided_slice %209 {offsets = [0, 128], sizes = [2, 64], strides = [1, 1]} : vector<2x192xf32> to vector<2x64xf32>
    %212 = vector.extract_strided_slice %203 {offsets = [0, 192], sizes = [2, 64], strides = [1, 1]} : vector<2x256xf32> to vector<2x64xf32>
    %213 = math.tanh %212 : vector<2x64xf32>
    %214 = arith.mulf %210, %213 : vector<2x64xf32>
    %215 = math.tanh %214 : vector<2x64xf32>
    %216 = arith.mulf %211, %215 : vector<2x64xf32>
    %cst_45 = arith.constant dense<0.000000e+00> : vector<2xf32>
    %217 = vector.multi_reduction <add>, %197, %cst_45 [1] : vector<2x64xf32> to vector<2xf32>
    %218 = vector.shape_cast %217 : vector<2xf32> to vector<2x1xf32>
    %cst_46 = arith.constant dense<0.000000e+00> : vector<2xf32>
    %219 = vector.multi_reduction <add>, %216, %cst_46 [1] : vector<2x64xf32> to vector<2xf32>
    %220 = vector.shape_cast %219 : vector<2xf32> to vector<2x1xf32>
    %221 = arith.addf %218, %220 : vector<2x1xf32>
    %cst_47 = arith.constant 7.812500e-03 : f32
    %222 = vector.broadcast %cst_47 : f32 to vector<2x1xf32>
    %223 = arith.mulf %221, %222 : vector<2x1xf32>
    %224 = arith.mulf %197, %197 : vector<2x64xf32>
    %cst_48 = arith.constant dense<0.000000e+00> : vector<2xf32>
    %225 = vector.multi_reduction <add>, %224, %cst_48 [1] : vector<2x64xf32> to vector<2xf32>
    %226 = vector.shape_cast %225 : vector<2xf32> to vector<2x1xf32>
    %227 = arith.mulf %216, %216 : vector<2x64xf32>
    %cst_49 = arith.constant dense<0.000000e+00> : vector<2xf32>
    %228 = vector.multi_reduction <add>, %227, %cst_49 [1] : vector<2x64xf32> to vector<2xf32>
    %229 = vector.shape_cast %228 : vector<2xf32> to vector<2x1xf32>
    %230 = arith.addf %226, %229 : vector<2x1xf32>
    %cst_50 = arith.constant 7.812500e-03 : f32
    %231 = vector.broadcast %cst_50 : f32 to vector<2x1xf32>
    %232 = arith.mulf %230, %231 : vector<2x1xf32>
    %233 = arith.mulf %223, %223 : vector<2x1xf32>
    %234 = arith.subf %232, %233 : vector<2x1xf32>
    %cst_51 = arith.constant 0.000000e+00 : f32
    %235 = vector.broadcast %cst_51 : f32 to vector<2x1xf32>
    %236 = arith.maximumf %234, %235 : vector<2x1xf32>
    %cst_52 = arith.constant 9.99999974E-6 : f32
    %237 = vector.broadcast %cst_52 : f32 to vector<2x1xf32>
    %238 = arith.addf %236, %237 : vector<2x1xf32>
    %239 = math.rsqrt %238 : vector<2x1xf32>
    %240 = vector.broadcast %223 : vector<2x1xf32> to vector<2x64xf32>
    %241 = arith.subf %197, %240 : vector<2x64xf32>
    %242 = vector.broadcast %239 : vector<2x1xf32> to vector<2x64xf32>
    %243 = arith.mulf %241, %242 : vector<2x64xf32>
    %244 = vector.broadcast %3 : vector<1x64xf32> to vector<2x64xf32>
    %245 = arith.mulf %243, %244 : vector<2x64xf32>
    %246 = vector.broadcast %5 : vector<1x64xf32> to vector<2x64xf32>
    %247 = arith.addf %245, %246 : vector<2x64xf32>
    %248 = vector.broadcast %223 : vector<2x1xf32> to vector<2x64xf32>
    %249 = arith.subf %216, %248 : vector<2x64xf32>
    %250 = vector.broadcast %239 : vector<2x1xf32> to vector<2x64xf32>
    %251 = arith.mulf %249, %250 : vector<2x64xf32>
    %252 = vector.broadcast %4 : vector<1x64xf32> to vector<2x64xf32>
    %253 = arith.mulf %251, %252 : vector<2x64xf32>
    %254 = vector.broadcast %6 : vector<1x64xf32> to vector<2x64xf32>
    %255 = arith.addf %253, %254 : vector<2x64xf32>
    %c0_53 = arith.constant 0 : index
    %c0_54 = arith.constant 0 : index
    %256 = vector.load %arg5[%c0_53, %c0_54] : memref<128x128xf32, #tpu.memory_space<vmem>>, vector<128x128xf32>
    %257 = vector.extract_strided_slice %256 {offsets = [0, 0], sizes = [64, 128], strides = [1, 1]} : vector<128x128xf32> to vector<64x128xf32>
    %cst_55 = arith.constant dense<0.000000e+00> : vector<2x128xf32>
    %258 = tpu.matmul %247, %257, %cst_55 {dimension_numbers = #tpu.dot_dimension_numbers<[1], [0], [0], [1], [0, 0, 1, 1], [], []>} : vector<2x64xf32>, vector<64x128xf32>, vector<2x128xf32> -> vector<2x128xf32>
    %259 = vector.extract_strided_slice %256 {offsets = [64, 0], sizes = [64, 128], strides = [1, 1]} : vector<128x128xf32> to vector<64x128xf32>
    %cst_56 = arith.constant dense<0.000000e+00> : vector<2x128xf32>
    %260 = tpu.matmul %255, %259, %cst_56 {dimension_numbers = #tpu.dot_dimension_numbers<[1], [0], [0], [1], [0, 0, 1, 1], [], []>} : vector<2x64xf32>, vector<64x128xf32>, vector<2x128xf32> -> vector<2x128xf32>
    %261 = arith.addf %258, %260 : vector<2x128xf32>
    %262 = vector.broadcast %7 : vector<1x128xf32> to vector<2x128xf32>
    %263 = arith.addf %261, %262 : vector<2x128xf32>
    %c0_57 = arith.constant 0 : index
    %c0_58 = arith.constant 0 : index
    %264 = vector.load %arg7[%c0_57, %c0_58] : memref<2x128xf32, #tpu.memory_space<vmem>>, vector<2x128xf32>
    tpu.vector_store %arg7[%c0_57, %c0_58], %263 {strides = array<i32>} : memref<2x128xf32, #tpu.memory_space<vmem>>, vector<2x128xf32>,
    return
  }
  func.func @transform_0(%arg0: i32) -> (i32, i32) {
    %c0_i32 = arith.constant 0 : i32
    %c0_i32_0 = arith.constant 0 : i32
    return %arg0, %c0_i32 : i32, i32
  }
  func.func @transform_1(%arg0: i32) -> (i32, i32) {
    %c0_i32 = arith.constant 0 : i32
    %c0_i32_0 = arith.constant 0 : i32
    %c0_i32_1 = arith.constant 0 : i32
    return %c0_i32, %c0_i32_0 : i32, i32
  }
  func.func @transform_2(%arg0: i32) -> (i32, i32) {
    %c0_i32 = arith.constant 0 : i32
    %c0_i32_0 = arith.constant 0 : i32
    %c0_i32_1 = arith.constant 0 : i32
    return %c0_i32, %c0_i32_0 : i32, i32
  }
  func.func @transform_3(%arg0: i32) -> (i32, i32) {
    %c0_i32 = arith.constant 0 : i32
    %c0_i32_0 = arith.constant 0 : i32
    %c0_i32_1 = arith.constant 0 : i32
    return %c0_i32, %c0_i32_0 : i32, i32
  }
  func.func @transform_4(%arg0: i32) -> (i32, i32) {
    %c0_i32 = arith.constant 0 : i32
    %c0_i32_0 = arith.constant 0 : i32
    %c0_i32_1 = arith.constant 0 : i32
    return %c0_i32, %c0_i32_0 : i32, i32
  }
  func.func @transform_5(%arg0: i32) -> (i32, i32) {
    %c0_i32 = arith.constant 0 : i32
    %c0_i32_0 = arith.constant 0 : i32
    %c0_i32_1 = arith.constant 0 : i32
    return %c0_i32, %c0_i32_0 : i32, i32
  }
  func.func @transform_6(%arg0: i32) -> (i32, i32) {
    %c0_i32 = arith.constant 0 : i32
    %c0_i32_0 = arith.constant 0 : i32
    return %arg0, %c0_i32 : i32, i32
  }
}

</mosaic_0001>

<llo_original>
// kernel: balanced_bilstm.1
$region0: #{balanced_bilstm.1}
  #allocation0 [shape = 'u32[]', space=smem, size = 0x4, offset = 0x4, fixed_abs, tag = 'smem constant byte address 0x4 - core index']
  #allocation1 [shape = 'u32[144,128]{1,0:T(1,128)}', space=vmem, size = 0x12000, scoped, tag = 'internal scratch']
  %s0 = inlined_call_operand.vmem [shape: f32[2,10240], index: 0, kind: input, shape index: {}]
  %s1 = inlined_call_operand.vmem [shape: bf16[1280,256], index: 1, kind: input, shape index: {}]
  %s2 = inlined_call_operand.vmem [shape: bf16[64,256], index: 2, kind: input, shape index: {}]
  %s3 = inlined_call_operand.vmem [shape: bf16[1280,256], index: 3, kind: input, shape index: {}]
  %s4 = inlined_call_operand.vmem [shape: f32[128,128], index: 4, kind: input, shape index: {}]
  %s5 = inlined_call_operand.vmem [shape: f32[8,256], index: 5, kind: input, shape index: {}]
  %s6 = inlined_call_operand.hbm [shape: f32[2,128], index: 6, kind: output, shape index: {}]
  %s7 = sld [smem:[#allocation0]]
  $region34: #{balanced_bilstm.1} parent=0
    _
  %s9 = ssub.s32 1, %s7
  %s10 = scalar_select 0, %s9, %s7
  $region1: #{balanced_bilstm.1} parent=0
    #allocation2 [shape = 'u8[1024]{0}', space=vmem, size = 0x400, scoped, tag = 'output window, operand 0, single buffered']
    #allocation3 [shape = 's32[1]{0}', space=sflag, size = 0x4, scoped, tag = 'scoped memory for balanced_bilstm.1']
    %11 = vsyncpa [#allocation3], 0
    // Predicated region
    $region2: #{balanced_bilstm.1} parent=1 // pred_check
      _
    $region3: #{balanced_bilstm.1} parent=1 // pred_check_branch
      %13 = sbr.rel (0) target = $region5
    $region4: #{balanced_bilstm.1} parent=1 // pred_region
      _
    $region5: #{balanced_bilstm.1} parent=1 // pred_fallthru
      _
    // Predicated region
    $region6: #{balanced_bilstm.1} parent=1 // pred_check
      _
    $region7: #{balanced_bilstm.1} parent=1 // pred_check_branch
      %15 = sbr.rel (0) target = $region9
    $region8: #{balanced_bilstm.1} parent=1 // pred_region
      _
    $region9: #{balanced_bilstm.1} parent=1 // pred_fallthru
      _
    // Predicated region
    $region10: #{balanced_bilstm.1} parent=1 // pred_check
      _
    $region11: #{balanced_bilstm.1} parent=1 // pred_check_branch
      %17 = sbr.rel (0) target = $region13
    $region12: #{balanced_bilstm.1} parent=1 // pred_region
      _
    $region13: #{balanced_bilstm.1} parent=1 // pred_fallthru
      _
    // Predicated region
    $region14: #{balanced_bilstm.1} parent=1 // pred_check
      _
    $region15: #{balanced_bilstm.1} parent=1 // pred_check_branch
      %19 = sbr.rel (0) target = $region17
    $region16: #{balanced_bilstm.1} parent=1 // pred_region
      _
    $region17: #{balanced_bilstm.1} parent=1 // pred_fallthru
      _
    // Predicated region
    $region18: #{balanced_bilstm.1} parent=1 // pred_check
      _
    $region19: #{balanced_bilstm.1} parent=1 // pred_check_branch
      %21 = sbr.rel (0) target = $region21
    $region20: #{balanced_bilstm.1} parent=1 // pred_region
      _
    $region21: #{balanced_bilstm.1} parent=1 // pred_fallthru
      _
    // Predicated region
    $region22: #{balanced_bilstm.1} parent=1 // pred_check
      _
    $region23: #{balanced_bilstm.1} parent=1 // pred_check_branch
      %23 = sbr.rel (0) target = $region25
    $region24: #{balanced_bilstm.1} parent=1 // pred_region
      _
    $region25: #{balanced_bilstm.1} parent=1 // pred_fallthru
      _
    %v25 = vld [vmem:[%s5] sm:$0xff]
    %v26 = vld [vmem:[%s5 + $0x8] sm:$0xff]
    %v27 = vld [vmem:[%s1] sm:$0xff]
    %v28 = vld [vmem:[%s1 + $0x8] sm:$0xff]
    %v29 = vld [vmem:[%s1 + $0x10] sm:$0xff]
    %v30 = vld [vmem:[%s1 + $0x18] sm:$0xff]
    %v31 = vld [vmem:[%s1 + $0x20] sm:$0xff]
    %v32 = vld [vmem:[%s1 + $0x28] sm:$0xff]
    %v33 = vld [vmem:[%s1 + $0x30] sm:$0xff]
    %v34 = vld [vmem:[%s1 + $0x38] sm:$0xff]
    %v35 = vld [vmem:[%s1 + $0x40] sm:$0xff]
    %v36 = vld [vmem:[%s1 + $0x48] sm:$0xff]
    %v37 = vld [vmem:[%s1 + $0x50] sm:$0xff]
    %v38 = vld [vmem:[%s1 + $0x58] sm:$0xff]
    %v39 = vld [vmem:[%s1 + $0x60] sm:$0xff]
    %v40 = vld [vmem:[%s1 + $0x68] sm:$0xff]
    %v41 = vld [vmem:[%s1 + $0x70] sm:$0xff]
    %v42 = vld [vmem:[%s1 + $0x78] sm:$0xff]
    %v43 = vld [vmem:[%s1 + $0x80] sm:$0xff]
    %v44 = vld [vmem:[%s1 + $0x88] sm:$0xff]
    %v45 = vld [vmem:[%s1 + $0x90] sm:$0xff]
    %v46 = vld [vmem:[%s1 + $0x98] sm:$0xff]
    %v47 = vld [vmem:[%s1 + $0xa0] sm:$0xff]
    %v48 = vld [vmem:[%s1 + $0xa8] sm:$0xff]
    %v49 = vld [vmem:[%s1 + $0xb0] sm:$0xff]
    %v50 = vld [vmem:[%s1 + $0xb8] sm:$0xff]
    %v51 = vld [vmem:[%s1 + $0xc0] sm:$0xff]
    %v52 = vld [vmem:[%s1 + $0xc8] sm:$0xff]
    %v53 = vld [vmem:[%s1 + $0xd0] sm:$0xff]
    %v54 = vld [vmem:[%s1 + $0xd8] sm:$0xff]
    %v55 = vld [vmem:[%s1 + $0xe0] sm:$0xff]
    %v56 = vld [vmem:[%s1 + $0xe8] sm:$0xff]
    %v57 = vld [vmem:[%s1 + $0xf0] sm:$0xff]
    %v58 = vld [vmem:[%s1 + $0xf8] sm:$0xff]
    %v59 = vld [vmem:[%s1 + $0x100] sm:$0xff]
    %v60 = vld [vmem:[%s1 + $0x108] sm:$0xff]
    %v61 = vld [vmem:[%s1 + $0x110] sm:$0xff]
    %v62 = vld [vmem:[%s1 + $0x118] sm:$0xff]
    %v63 = vld [vmem:[%s1 + $0x120] sm:$0xff]
    %v64 = vld [vmem:[%s1 + $0x128] sm:$0xff]
    %v65 = vld [vmem:[%s1 + $0x130] sm:$0xff]
    %v66 = vld [vmem:[%s1 + $0x138] sm:$0xff]
    %v67 = vld [vmem:[%s1 + $0x140] sm:$0xff]
    %v68 = vld [vmem:[%s1 + $0x148] sm:$0xff]
    %v69 = vld [vmem:[%s1 + $0x150] sm:$0xff]
    %v70 = vld [vmem:[%s1 + $0x158] sm:$0xff]
    %v71 = vld [vmem:[%s1 + $0x160] sm:$0xff]
    %v72 = vld [vmem:[%s1 + $0x168] sm:$0xff]
    %v73 = vld [vmem:[%s1 + $0x170] sm:$0xff]
    %v74 = vld [vmem:[%s1 + $0x178] sm:$0xff]
    %v75 = vld [vmem:[%s1 + $0x180] sm:$0xff]
    %v76 = vld [vmem:[%s1 + $0x188] sm:$0xff]
    %v77 = vld [vmem:[%s1 + $0x190] sm:$0xff]
    %v78 = vld [vmem:[%s1 + $0x198] sm:$0xff]
    %v79 = vld [vmem:[%s1 + $0x1a0] sm:$0xff]
    %v80 = vld [vmem:[%s1 + $0x1a8] sm:$0xff]
    %v81 = vld [vmem:[%s1 + $0x1b0] sm:$0xff]
    %v82 = vld [vmem:[%s1 + $0x1b8] sm:$0xff]
    %v83 = vld [vmem:[%s1 + $0x1c0] sm:$0xff]
    %v84 = vld [vmem:[%s1 + $0x1c8] sm:$0xff]
    %v85 = vld [vmem:[%s1 + $0x1d0] sm:$0xff]
    %v86 = vld [vmem:[%s1 + $0x1d8] sm:$0xff]
    %v87 = vld [vmem:[%s1 + $0x1e0] sm:$0xff]
    %v88 = vld [vmem:[%s1 + $0x1e8] sm:$0xff]
    %v89 = vld [vmem:[%s1 + $0x1f0] sm:$0xff]
    %v90 = vld [vmem:[%s1 + $0x1f8] sm:$0xff]
    %v91 = vld [vmem:[%s1 + $0x200] sm:$0xff]
    %v92 = vld [vmem:[%s1 + $0x208] sm:$0xff]
    %v93 = vld [vmem:[%s1 + $0x210] sm:$0xff]
    %v94 = vld [vmem:[%s1 + $0x218] sm:$0xff]
    %v95 = vld [vmem:[%s1 + $0x220] sm:$0xff]
    %v96 = vld [vmem:[%s1 + $0x228] sm:$0xff]
    %v97 = vld [vmem:[%s1 + $0x230] sm:$0xff]
    %v98 = vld [vmem:[%s1 + $0x238] sm:$0xff]
    %v99 = vld [vmem:[%s1 + $0x240] sm:$0xff]
    %v100 = vld [vmem:[%s1 + $0x248] sm:$0xff]
    %v101 = vld [vmem:[%s1 + $0x250] sm:$0xff]
    %v102 = vld [vmem:[%s1 + $0x258] sm:$0xff]
    %v103 = vld [vmem:[%s1 + $0x260] sm:$0xff]
    %v104 = vld [vmem:[%s1 + $0x268] sm:$0xff]
    %v105 = vld [vmem:[%s1 + $0x270] sm:$0xff]
    %v106 = vld [vmem:[%s1 + $0x278] sm:$0xff]
    %v107 = vld [vmem:[%s1 + $0x280] sm:$0xff]
    %v108 = vld [vmem:[%s1 + $0x288] sm:$0xff]
    %v109 = vld [vmem:[%s1 + $0x290] sm:$0xff]
    %v110 = vld [vmem:[%s1 + $0x298] sm:$0xff]
    %v111 = vld [vmem:[%s1 + $0x2a0] sm:$0xff]
    %v112 = vld [vmem:[%s1 + $0x2a8] sm:$0xff]
    %v113 = vld [vmem:[%s1 + $0x2b0] sm:$0xff]
    %v114 = vld [vmem:[%s1 + $0x2b8] sm:$0xff]
    %v115 = vld [vmem:[%s1 + $0x2c0] sm:$0xff]
    %v116 = vld [vmem:[%s1 + $0x2c8] sm:$0xff]
    %v117 = vld [vmem:[%s1 + $0x2d0] sm:$0xff]
    %v118 = vld [vmem:[%s1 + $0x2d8] sm:$0xff]
    %v119 = vld [vmem:[%s1 + $0x2e0] sm:$0xff]
    %v120 = vld [vmem:[%s1 + $0x2e8] sm:$0xff]
    %v121 = vld [vmem:[%s1 + $0x2f0] sm:$0xff]
    %v122 = vld [vmem:[%s1 + $0x2f8] sm:$0xff]
    %v123 = vld [vmem:[%s1 + $0x300] sm:$0xff]
    %v124 = vld [vmem:[%s1 + $0x308] sm:$0xff]
    %v125 = vld [vmem:[%s1 + $0x310] sm:$0xff]
    %v126 = vld [vmem:[%s1 + $0x318] sm:$0xff]
    %v127 = vld [vmem:[%s1 + $0x320] sm:$0xff]
    %v128 = vld [vmem:[%s1 + $0x328] sm:$0xff]
    %v129 = vld [vmem:[%s1 + $0x330] sm:$0xff]
    %v130 = vld [vmem:[%s1 + $0x338] sm:$0xff]
    %v131 = vld [vmem:[%s1 + $0x340] sm:$0xff]
    %v132 = vld [vmem:[%s1 + $0x348] sm:$0xff]
    %v133 = vld [vmem:[%s1 + $0x350] sm:$0xff]
    %v134 = vld [vmem:[%s1 + $0x358] sm:$0xff]
    %v135 = vld [vmem:[%s1 + $0x360] sm:$0xff]
    %v136 = vld [vmem:[%s1 + $0x368] sm:$0xff]
    %v137 = vld [vmem:[%s1 + $0x370] sm:$0xff]
    %v138 = vld [vmem:[%s1 + $0x378] sm:$0xff]
    %v139 = vld [vmem:[%s1 + $0x380] sm:$0xff]
    %v140 = vld [vmem:[%s1 + $0x388] sm:$0xff]
    %v141 = vld [vmem:[%s1 + $0x390] sm:$0xff]
    %v142 = vld [vmem:[%s1 + $0x398] sm:$0xff]
    %v143 = vld [vmem:[%s1 + $0x3a0] sm:$0xff]
    %v144 = vld [vmem:[%s1 + $0x3a8] sm:$0xff]
    %v145 = vld [vmem:[%s1 + $0x3b0] sm:$0xff]
    %v146 = vld [vmem:[%s1 + $0x3b8] sm:$0xff]
    %v147 = vld [vmem:[%s1 + $0x3c0] sm:$0xff]
    %v148 = vld [vmem:[%s1 + $0x3c8] sm:$0xff]
    %v149 = vld [vmem:[%s1 + $0x3d0] sm:$0xff]
    %v150 = vld [vmem:[%s1 + $0x3d8] sm:$0xff]
    %v151 = vld [vmem:[%s1 + $0x3e0] sm:$0xff]
    %v152 = vld [vmem:[%s1 + $0x3e8] sm:$0xff]
    %v153 = vld [vmem:[%s1 + $0x3f0] sm:$0xff]
    %v154 = vld [vmem:[%s1 + $0x3f8] sm:$0xff]
    %v155 = vld [vmem:[%s1 + $0x400] sm:$0xff]
    %v156 = vld [vmem:[%s1 + $0x408] sm:$0xff]
    %v157 = vld [vmem:[%s1 + $0x410] sm:$0xff]
    %v158 = vld [vmem:[%s1 + $0x418] sm:$0xff]
    %v159 = vld [vmem:[%s1 + $0x420] sm:$0xff]
    %v160 = vld [vmem:[%s1 + $0x428] sm:$0xff]
    %v161 = vld [vmem:[%s1 + $0x430] sm:$0xff]
    %v162 = vld [vmem:[%s1 + $0x438] sm:$0xff]
    %v163 = vld [vmem:[%s1 + $0x440] sm:$0xff]
    %v164 = vld [vmem:[%s1 + $0x448] sm:$0xff]
    %v165 = vld [vmem:[%s1 + $0x450] sm:$0xff]
    %v166 = vld [vmem:[%s1 + $0x458] sm:$0xff]
    %v167 = vld [vmem:[%s1 + $0x460] sm:$0xff]
    %v168 = vld [vmem:[%s1 + $0x468] sm:$0xff]
    %v169 = vld [vmem:[%s1 + $0x470] sm:$0xff]
    %v170 = vld [vmem:[%s1 + $0x478] sm:$0xff]
    %v171 = vld [vmem:[%s1 + $0x480] sm:$0xff]
    %v172 = vld [vmem:[%s1 + $0x488] sm:$0xff]
    %v173 = vld [vmem:[%s1 + $0x490] sm:$0xff]
    %v174 = vld [vmem:[%s1 + $0x498] sm:$0xff]
    %v175 = vld [vmem:[%s1 + $0x4a0] sm:$0xff]
    %v176 = vld [vmem:[%s1 + $0x4a8] sm:$0xff]
    %v177 = vld [vmem:[%s1 + $0x4b0] sm:$0xff]
    %v178 = vld [vmem:[%s1 + $0x4b8] sm:$0xff]
    %v179 = vld [vmem:[%s1 + $0x4c0] sm:$0xff]
    %v180 = vld [vmem:[%s1 + $0x4c8] sm:$0xff]
    %v181 = vld [vmem:[%s1 + $0x4d0] sm:$0xff]
    %v182 = vld [vmem:[%s1 + $0x4d8] sm:$0xff]
    %v183 = vld [vmem:[%s1 + $0x4e0] sm:$0xff]
    %v184 = vld [vmem:[%s1 + $0x4e8] sm:$0xff]
    %v185 = vld [vmem:[%s1 + $0x4f0] sm:$0xff]
    %v186 = vld [vmem:[%s1 + $0x4f8] sm:$0xff]
    %v187 = vlaneseq
    %v188 = vshrl.u32 %v187, 7
    %v189 = vsub.s32 0, %v188
    %v190 = vrot.slane %v25, %v189
    %v191 = vlaneseq
    %v192 = vshrl.u32 %v191, 7
    %v193 = vsub.s32 0, %v192
    %v194 = vrot.slane %v26, %v193
    %v195 = vld [vmem:[%s0] sm:$0xff]
    %v196 = vld [vmem:[%s0 + $0x8] sm:$0xff]
    %v197 = vld [vmem:[%s0 + $0x10] sm:$0xf]
    %v201 = vcombine.high %v195, %v195
    %v203 = vunpack.c.l.s4 1983009808
    %v204 = vunpack.c.0.s8 %v203
    %v205 = vlaneseq
    %v206 = vshrl.u32 %v205, 7
    %v207 = vsub.s32 %v204, %v206
    %v208 = vrot.slane %v195, %v207
    %v210 = vunpack.c.l.s4 1983009808
    %v211 = vunpack.c.0.s8 %v210
    %v212 = vlaneseq
    %v213 = vshrl.u32 %v212, 7
    %v214 = vsub.s32 %v211, %v213
    %v215 = vrot.slane %v201, %v214
    %v216 = vcombine.high %v208, %v208
    %v217 = vcombine.high %v215, %v215
    %v218 = vcombine.high %v196, %v196
    %v220 = vunpack.c.l.s4 1983009808
    %v221 = vunpack.c.0.s8 %v220
    %v222 = vlaneseq
    %v223 = vshrl.u32 %v222, 7
    %v224 = vsub.s32 %v221, %v223
    %v225 = vrot.slane %v196, %v224
    %v227 = vunpack.c.l.s4 1983009808
    %v228 = vunpack.c.0.s8 %v227
    %v229 = vlaneseq
    %v230 = vshrl.u32 %v229, 7
    %v231 = vsub.s32 %v228, %v230
    %v232 = vrot.slane %v218, %v231
    %v233 = vcombine.high %v225, %v225
    %v234 = vcombine.high %v232, %v232
    %v236 = vunpack.c.l.s4 1983009808
    %v237 = vunpack.c.0.s8 %v236
    %v238 = vlaneseq
    %v239 = vshrl.u32 %v238, 7
    %v240 = vsub.s32 %v237, %v239
    %v241 = vrot.slane %v197, %v240
    %v242 = vcombine.high %v241, %v241
    %v253 = vpack.c.bf16 %v208, %v208
    %v254 = vpack.c.bf16 %v216, %v216
    %v255 = vpack.c.bf16 %v215, %v215
    %v256 = vpack.c.bf16 %v217, %v217
    %v257 = vpack.c.bf16 %v225, %v225
    %v258 = vpack.c.bf16 %v233, %v233
    %v259 = vpack.c.bf16 %v232, %v232
    %v260 = vpack.c.bf16 %v234, %v234
    %v261 = vpack.c.bf16 %v241, %v241
    %v262 = vpack.c.bf16 %v242, %v242
    %v423 = vunpack.c.l.b16 %v27
    %v424 = vunpack.c.h.b16 %v27
    %v425 = vunpack.c.l.b16 %v28
    %v426 = vunpack.c.h.b16 %v28
    %v427 = vunpack.c.l.b16 %v29
    %v428 = vunpack.c.h.b16 %v29
    %v429 = vunpack.c.l.b16 %v30
    %v430 = vunpack.c.h.b16 %v30
    %v431 = vunpack.c.l.b16 %v31
    %v432 = vunpack.c.h.b16 %v31
    %v433 = vunpack.c.l.b16 %v32
    %v434 = vunpack.c.h.b16 %v32
    %v435 = vunpack.c.l.b16 %v33
    %v436 = vunpack.c.h.b16 %v33
    %v437 = vunpack.c.l.b16 %v34
    %v438 = vunpack.c.h.b16 %v34
    %v439 = vunpack.c.l.b16 %v35
    %v440 = vunpack.c.h.b16 %v35
    %v441 = vunpack.c.l.b16 %v36
    %v442 = vunpack.c.h.b16 %v36
    %v443 = vunpack.c.l.b16 %v37
    %v444 = vunpack.c.h.b16 %v37
    %v445 = vunpack.c.l.b16 %v38
    %v446 = vunpack.c.h.b16 %v38
    %v447 = vunpack.c.l.b16 %v39
    %v448 = vunpack.c.h.b16 %v39
    %v449 = vunpack.c.l.b16 %v40
    %v450 = vunpack.c.h.b16 %v40
    %v451 = vunpack.c.l.b16 %v41
    %v452 = vunpack.c.h.b16 %v41
    %v453 = vunpack.c.l.b16 %v42
    %v454 = vunpack.c.h.b16 %v42
    %v455 = vunpack.c.l.b16 %v43
    %v456 = vunpack.c.h.b16 %v43
    %v457 = vunpack.c.l.b16 %v44
    %v458 = vunpack.c.h.b16 %v44
    %v459 = vunpack.c.l.b16 %v45
    %v460 = vunpack.c.h.b16 %v45
    %v461 = vunpack.c.l.b16 %v46
    %v462 = vunpack.c.h.b16 %v46
    %v463 = vunpack.c.l.b16 %v47
    %v464 = vunpack.c.h.b16 %v47
    %v465 = vunpack.c.l.b16 %v48
    %v466 = vunpack.c.h.b16 %v48
    %v467 = vunpack.c.l.b16 %v49
    %v468 = vunpack.c.h.b16 %v49
    %v469 = vunpack.c.l.b16 %v50
    %v470 = vunpack.c.h.b16 %v50
    %v471 = vunpack.c.l.b16 %v51
    %v472 = vunpack.c.h.b16 %v51
    %v473 = vunpack.c.l.b16 %v52
    %v474 = vunpack.c.h.b16 %v52
    %v475 = vunpack.c.l.b16 %v53
    %v476 = vunpack.c.h.b16 %v53
    %v477 = vunpack.c.l.b16 %v54
    %v478 = vunpack.c.h.b16 %v54
    %v479 = vunpack.c.l.b16 %v55
    %v480 = vunpack.c.h.b16 %v55
    %v481 = vunpack.c.l.b16 %v56
    %v482 = vunpack.c.h.b16 %v56
    %v483 = vunpack.c.l.b16 %v57
    %v484 = vunpack.c.h.b16 %v57
    %v485 = vunpack.c.l.b16 %v58
    %v486 = vunpack.c.h.b16 %v58
    %v487 = vunpack.c.l.b16 %v59
    %v488 = vunpack.c.h.b16 %v59
    %v489 = vunpack.c.l.b16 %v60
    %v490 = vunpack.c.h.b16 %v60
    %v491 = vunpack.c.l.b16 %v61
    %v492 = vunpack.c.h.b16 %v61
    %v493 = vunpack.c.l.b16 %v62
    %v494 = vunpack.c.h.b16 %v62
    %v495 = vunpack.c.l.b16 %v63
    %v496 = vunpack.c.h.b16 %v63
    %v497 = vunpack.c.l.b16 %v64
    %v498 = vunpack.c.h.b16 %v64
    %v499 = vunpack.c.l.b16 %v65
    %v500 = vunpack.c.h.b16 %v65
    %v501 = vunpack.c.l.b16 %v66
    %v502 = vunpack.c.h.b16 %v66
    %v503 = vunpack.c.l.b16 %v67
    %v504 = vunpack.c.h.b16 %v67
    %v505 = vunpack.c.l.b16 %v68
    %v506 = vunpack.c.h.b16 %v68
    %v507 = vunpack.c.l.b16 %v69
    %v508 = vunpack.c.h.b16 %v69
    %v509 = vunpack.c.l.b16 %v70
    %v510 = vunpack.c.h.b16 %v70
    %v511 = vunpack.c.l.b16 %v71
    %v512 = vunpack.c.h.b16 %v71
    %v513 = vunpack.c.l.b16 %v72
    %v514 = vunpack.c.h.b16 %v72
    %v515 = vunpack.c.l.b16 %v73
    %v516 = vunpack.c.h.b16 %v73
    %v517 = vunpack.c.l.b16 %v74
    %v518 = vunpack.c.h.b16 %v74
    %v519 = vunpack.c.l.b16 %v75
    %v520 = vunpack.c.h.b16 %v75
    %v521 = vunpack.c.l.b16 %v76
    %v522 = vunpack.c.h.b16 %v76
    %v523 = vunpack.c.l.b16 %v77
    %v524 = vunpack.c.h.b16 %v77
    %v525 = vunpack.c.l.b16 %v78
    %v526 = vunpack.c.h.b16 %v78
    %v527 = vunpack.c.l.b16 %v79
    %v528 = vunpack.c.h.b16 %v79
    %v529 = vunpack.c.l.b16 %v80
    %v530 = vunpack.c.h.b16 %v80
    %v531 = vunpack.c.l.b16 %v81
    %v532 = vunpack.c.h.b16 %v81
    %v533 = vunpack.c.l.b16 %v82
    %v534 = vunpack.c.h.b16 %v82
    %v535 = vunpack.c.l.b16 %v83
    %v536 = vunpack.c.h.b16 %v83
    %v537 = vunpack.c.l.b16 %v84
    %v538 = vunpack.c.h.b16 %v84
    %v539 = vunpack.c.l.b16 %v85
    %v540 = vunpack.c.h.b16 %v85
    %v541 = vunpack.c.l.b16 %v86
    %v542 = vunpack.c.h.b16 %v86
    %v543 = vunpack.c.l.b16 %v87
    %v544 = vunpack.c.h.b16 %v87
    %v545 = vunpack.c.l.b16 %v88
    %v546 = vunpack.c.h.b16 %v88
    %v547 = vunpack.c.l.b16 %v89
    %v548 = vunpack.c.h.b16 %v89
    %v549 = vunpack.c.l.b16 %v90
    %v550 = vunpack.c.h.b16 %v90
    %v551 = vunpack.c.l.b16 %v91
    %v552 = vunpack.c.h.b16 %v91
    %v553 = vunpack.c.l.b16 %v92
    %v554 = vunpack.c.h.b16 %v92
    %v555 = vunpack.c.l.b16 %v93
    %v556 = vunpack.c.h.b16 %v93
    %v557 = vunpack.c.l.b16 %v94
    %v558 = vunpack.c.h.b16 %v94
    %v559 = vunpack.c.l.b16 %v95
    %v560 = vunpack.c.h.b16 %v95
    %v561 = vunpack.c.l.b16 %v96
    %v562 = vunpack.c.h.b16 %v96
    %v563 = vunpack.c.l.b16 %v97
    %v564 = vunpack.c.h.b16 %v97
    %v565 = vunpack.c.l.b16 %v98
    %v566 = vunpack.c.h.b16 %v98
    %v567 = vunpack.c.l.b16 %v99
    %v568 = vunpack.c.h.b16 %v99
    %v569 = vunpack.c.l.b16 %v100
    %v570 = vunpack.c.h.b16 %v100
    %v571 = vunpack.c.l.b16 %v101
    %v572 = vunpack.c.h.b16 %v101
    %v573 = vunpack.c.l.b16 %v102
    %v574 = vunpack.c.h.b16 %v102
    %v575 = vunpack.c.l.b16 %v103
    %v576 = vunpack.c.h.b16 %v103
    %v577 = vunpack.c.l.b16 %v104
    %v578 = vunpack.c.h.b16 %v104
    %v579 = vunpack.c.l.b16 %v105
    %v580 = vunpack.c.h.b16 %v105
    %v581 = vunpack.c.l.b16 %v106
    %v582 = vunpack.c.h.b16 %v106
    %v583 = vunpack.c.l.b16 %v107
    %v584 = vunpack.c.h.b16 %v107
    %v585 = vunpack.c.l.b16 %v108
    %v586 = vunpack.c.h.b16 %v108
    %v587 = vunpack.c.l.b16 %v109
    %v588 = vunpack.c.h.b16 %v109
    %v589 = vunpack.c.l.b16 %v110
    %v590 = vunpack.c.h.b16 %v110
    %v591 = vunpack.c.l.b16 %v111
    %v592 = vunpack.c.h.b16 %v111
    %v593 = vunpack.c.l.b16 %v112
    %v594 = vunpack.c.h.b16 %v112
    %v595 = vunpack.c.l.b16 %v113
    %v596 = vunpack.c.h.b16 %v113
    %v597 = vunpack.c.l.b16 %v114
    %v598 = vunpack.c.h.b16 %v114
    %v599 = vunpack.c.l.b16 %v115
    %v600 = vunpack.c.h.b16 %v115
    %v601 = vunpack.c.l.b16 %v116
    %v602 = vunpack.c.h.b16 %v116
    %v603 = vunpack.c.l.b16 %v117
    %v604 = vunpack.c.h.b16 %v117
    %v605 = vunpack.c.l.b16 %v118
    %v606 = vunpack.c.h.b16 %v118
    %v607 = vunpack.c.l.b16 %v119
    %v608 = vunpack.c.h.b16 %v119
    %v609 = vunpack.c.l.b16 %v120
    %v610 = vunpack.c.h.b16 %v120
    %v611 = vunpack.c.l.b16 %v121
    %v612 = vunpack.c.h.b16 %v121
    %v613 = vunpack.c.l.b16 %v122
    %v614 = vunpack.c.h.b16 %v122
    %v615 = vunpack.c.l.b16 %v123
    %v616 = vunpack.c.h.b16 %v123
    %v617 = vunpack.c.l.b16 %v124
    %v618 = vunpack.c.h.b16 %v124
    %v619 = vunpack.c.l.b16 %v125
    %v620 = vunpack.c.h.b16 %v125
    %v621 = vunpack.c.l.b16 %v126
    %v622 = vunpack.c.h.b16 %v126
    %v623 = vunpack.c.l.b16 %v127
    %v624 = vunpack.c.h.b16 %v127
    %v625 = vunpack.c.l.b16 %v128
    %v626 = vunpack.c.h.b16 %v128
    %v627 = vunpack.c.l.b16 %v129
    %v628 = vunpack.c.h.b16 %v129
    %v629 = vunpack.c.l.b16 %v130
    %v630 = vunpack.c.h.b16 %v130
    %v631 = vunpack.c.l.b16 %v131
    %v632 = vunpack.c.h.b16 %v131
    %v633 = vunpack.c.l.b16 %v132
    %v634 = vunpack.c.h.b16 %v132
    %v635 = vunpack.c.l.b16 %v133
    %v636 = vunpack.c.h.b16 %v133
    %v637 = vunpack.c.l.b16 %v134
    %v638 = vunpack.c.h.b16 %v134
    %v639 = vunpack.c.l.b16 %v135
    %v640 = vunpack.c.h.b16 %v135
    %v641 = vunpack.c.l.b16 %v136
    %v642 = vunpack.c.h.b16 %v136
    %v643 = vunpack.c.l.b16 %v137
    %v644 = vunpack.c.h.b16 %v137
    %v645 = vunpack.c.l.b16 %v138
    %v646 = vunpack.c.h.b16 %v138
    %v647 = vunpack.c.l.b16 %v139
    %v648 = vunpack.c.h.b16 %v139
    %v649 = vunpack.c.l.b16 %v140
    %v650 = vunpack.c.h.b16 %v140
    %v651 = vunpack.c.l.b16 %v141
    %v652 = vunpack.c.h.b16 %v141
    %v653 = vunpack.c.l.b16 %v142
    %v654 = vunpack.c.h.b16 %v142
    %v655 = vunpack.c.l.b16 %v143
    %v656 = vunpack.c.h.b16 %v143
    %v657 = vunpack.c.l.b16 %v144
    %v658 = vunpack.c.h.b16 %v144
    %v659 = vunpack.c.l.b16 %v145
    %v660 = vunpack.c.h.b16 %v145
    %v661 = vunpack.c.l.b16 %v146
    %v662 = vunpack.c.h.b16 %v146
    %v663 = vunpack.c.l.b16 %v147
    %v664 = vunpack.c.h.b16 %v147
    %v665 = vunpack.c.l.b16 %v148
    %v666 = vunpack.c.h.b16 %v148
    %v667 = vunpack.c.l.b16 %v149
    %v668 = vunpack.c.h.b16 %v149
    %v669 = vunpack.c.l.b16 %v150
    %v670 = vunpack.c.h.b16 %v150
    %v671 = vunpack.c.l.b16 %v151
    %v672 = vunpack.c.h.b16 %v151
    %v673 = vunpack.c.l.b16 %v152
    %v674 = vunpack.c.h.b16 %v152
    %v675 = vunpack.c.l.b16 %v153
    %v676 = vunpack.c.h.b16 %v153
    %v677 = vunpack.c.l.b16 %v154
    %v678 = vunpack.c.h.b16 %v154
    %v679 = vunpack.c.l.b16 %v155
    %v680 = vunpack.c.h.b16 %v155
    %v681 = vunpack.c.l.b16 %v156
    %v682 = vunpack.c.h.b16 %v156
    %v683 = vunpack.c.l.b16 %v157
    %v684 = vunpack.c.h.b16 %v157
    %v685 = vunpack.c.l.b16 %v158
    %v686 = vunpack.c.h.b16 %v158
    %v687 = vunpack.c.l.b16 %v159
    %v688 = vunpack.c.h.b16 %v159
    %v689 = vunpack.c.l.b16 %v160
    %v690 = vunpack.c.h.b16 %v160
    %v691 = vunpack.c.l.b16 %v161
    %v692 = vunpack.c.h.b16 %v161
    %v693 = vunpack.c.l.b16 %v162
    %v694 = vunpack.c.h.b16 %v162
    %v695 = vunpack.c.l.b16 %v163
    %v696 = vunpack.c.h.b16 %v163
    %v697 = vunpack.c.l.b16 %v164
    %v698 = vunpack.c.h.b16 %v164
    %v699 = vunpack.c.l.b16 %v165
    %v700 = vunpack.c.h.b16 %v165
    %v701 = vunpack.c.l.b16 %v166
    %v702 = vunpack.c.h.b16 %v166
    %v703 = vunpack.c.l.b16 %v167
    %v704 = vunpack.c.h.b16 %v167
    %v705 = vunpack.c.l.b16 %v168
    %v706 = vunpack.c.h.b16 %v168
    %v707 = vunpack.c.l.b16 %v169
    %v708 = vunpack.c.h.b16 %v169
    %v709 = vunpack.c.l.b16 %v170
    %v710 = vunpack.c.h.b16 %v170
    %v711 = vunpack.c.l.b16 %v171
    %v712 = vunpack.c.h.b16 %v171
    %v713 = vunpack.c.l.b16 %v172
    %v714 = vunpack.c.h.b16 %v172
    %v715 = vunpack.c.l.b16 %v173
    %v716 = vunpack.c.h.b16 %v173
    %v717 = vunpack.c.l.b16 %v174
    %v718 = vunpack.c.h.b16 %v174
    %v719 = vunpack.c.l.b16 %v175
    %v720 = vunpack.c.h.b16 %v175
    %v721 = vunpack.c.l.b16 %v176
    %v722 = vunpack.c.h.b16 %v176
    %v723 = vunpack.c.l.b16 %v177
    %v724 = vunpack.c.h.b16 %v177
    %v725 = vunpack.c.l.b16 %v178
    %v726 = vunpack.c.h.b16 %v178
    %v727 = vunpack.c.l.b16 %v179
    %v728 = vunpack.c.h.b16 %v179
    %v729 = vunpack.c.l.b16 %v180
    %v730 = vunpack.c.h.b16 %v180
    %v731 = vunpack.c.l.b16 %v181
    %v732 = vunpack.c.h.b16 %v181
    %v733 = vunpack.c.l.b16 %v182
    %v734 = vunpack.c.h.b16 %v182
    %v735 = vunpack.c.l.b16 %v183
    %v736 = vunpack.c.h.b16 %v183
    %v737 = vunpack.c.l.b16 %v184
    %v738 = vunpack.c.h.b16 %v184
    %v739 = vunpack.c.l.b16 %v185
    %v740 = vunpack.c.h.b16 %v185
    %v741 = vunpack.c.l.b16 %v186
    %v742 = vunpack.c.h.b16 %v186
    %v743 = vpack.c.b16 %v425, %v423
    %v744 = vpack.c.b16 %v426, %v424
    %v745 = vpack.c.b16 %v429, %v427
    %v746 = vpack.c.b16 %v430, %v428
    %v747 = vpack.c.b16 %v433, %v431
    %v748 = vpack.c.b16 %v434, %v432
    %v749 = vpack.c.b16 %v437, %v435
    %v750 = vpack.c.b16 %v438, %v436
    %v751 = vpack.c.b16 %v441, %v439
    %v752 = vpack.c.b16 %v442, %v440
    %v753 = vpack.c.b16 %v445, %v443
    %v754 = vpack.c.b16 %v446, %v444
    %v755 = vpack.c.b16 %v449, %v447
    %v756 = vpack.c.b16 %v450, %v448
    %v757 = vpack.c.b16 %v453, %v451
    %v758 = vpack.c.b16 %v454, %v452
    %v759 = vpack.c.b16 %v457, %v455
    %v760 = vpack.c.b16 %v458, %v456
    %v761 = vpack.c.b16 %v461, %v459
    %v762 = vpack.c.b16 %v462, %v460
    %v763 = vpack.c.b16 %v465, %v463
    %v764 = vpack.c.b16 %v466, %v464
    %v765 = vpack.c.b16 %v469, %v467
    %v766 = vpack.c.b16 %v470, %v468
    %v767 = vpack.c.b16 %v473, %v471
    %v768 = vpack.c.b16 %v474, %v472
    %v769 = vpack.c.b16 %v477, %v475
    %v770 = vpack.c.b16 %v478, %v476
    %v771 = vpack.c.b16 %v481, %v479
    %v772 = vpack.c.b16 %v482, %v480
    %v773 = vpack.c.b16 %v485, %v483
    %v774 = vpack.c.b16 %v486, %v484
    %v775 = vpack.c.b16 %v489, %v487
    %v776 = vpack.c.b16 %v490, %v488
    %v777 = vpack.c.b16 %v493, %v491
    %v778 = vpack.c.b16 %v494, %v492
    %v779 = vpack.c.b16 %v497, %v495
    %v780 = vpack.c.b16 %v498, %v496
    %v781 = vpack.c.b16 %v501, %v499
    %v782 = vpack.c.b16 %v502, %v500
    %v783 = vpack.c.b16 %v505, %v503
    %v784 = vpack.c.b16 %v506, %v504
    %v785 = vpack.c.b16 %v509, %v507
    %v786 = vpack.c.b16 %v510, %v508
    %v787 = vpack.c.b16 %v513, %v511
    %v788 = vpack.c.b16 %v514, %v512
    %v789 = vpack.c.b16 %v517, %v515
    %v790 = vpack.c.b16 %v518, %v516
    %v791 = vpack.c.b16 %v521, %v519
    %v792 = vpack.c.b16 %v522, %v520
    %v793 = vpack.c.b16 %v525, %v523
    %v794 = vpack.c.b16 %v526, %v524
    %v795 = vpack.c.b16 %v529, %v527
    %v796 = vpack.c.b16 %v530, %v528
    %v797 = vpack.c.b16 %v533, %v531
    %v798 = vpack.c.b16 %v534, %v532
    %v799 = vpack.c.b16 %v537, %v535
    %v800 = vpack.c.b16 %v538, %v536
    %v801 = vpack.c.b16 %v541, %v539
    %v802 = vpack.c.b16 %v542, %v540
    %v803 = vpack.c.b16 %v545, %v543
    %v804 = vpack.c.b16 %v546, %v544
    %v805 = vpack.c.b16 %v549, %v547
    %v806 = vpack.c.b16 %v550, %v548
    %v807 = vpack.c.b16 %v553, %v551
    %v808 = vpack.c.b16 %v554, %v552
    %v809 = vpack.c.b16 %v557, %v555
    %v810 = vpack.c.b16 %v558, %v556
    %v811 = vpack.c.b16 %v561, %v559
    %v812 = vpack.c.b16 %v562, %v560
    %v813 = vpack.c.b16 %v565, %v563
    %v814 = vpack.c.b16 %v566, %v564
    %v815 = vpack.c.b16 %v569, %v567
    %v816 = vpack.c.b16 %v570, %v568
    %v817 = vpack.c.b16 %v573, %v571
    %v818 = vpack.c.b16 %v574, %v572
    %v819 = vpack.c.b16 %v577, %v575
    %v820 = vpack.c.b16 %v578, %v576
    %v821 = vpack.c.b16 %v581, %v579
    %v822 = vpack.c.b16 %v582, %v580
    %v823 = vpack.c.b16 %v585, %v583
    %v824 = vpack.c.b16 %v586, %v584
    %v825 = vpack.c.b16 %v589, %v587
    %v826 = vpack.c.b16 %v590, %v588
    %v827 = vpack.c.b16 %v593, %v591
    %v828 = vpack.c.b16 %v594, %v592
    %v829 = vpack.c.b16 %v597, %v595
    %v830 = vpack.c.b16 %v598, %v596
    %v831 = vpack.c.b16 %v601, %v599
    %v832 = vpack.c.b16 %v602, %v600
    %v833 = vpack.c.b16 %v605, %v603
    %v834 = vpack.c.b16 %v606, %v604
    %v835 = vpack.c.b16 %v609, %v607
    %v836 = vpack.c.b16 %v610, %v608
    %v837 = vpack.c.b16 %v613, %v611
    %v838 = vpack.c.b16 %v614, %v612
    %v839 = vpack.c.b16 %v617, %v615
    %v840 = vpack.c.b16 %v618, %v616
    %v841 = vpack.c.b16 %v621, %v619
    %v842 = vpack.c.b16 %v622, %v620
    %v843 = vpack.c.b16 %v625, %v623
    %v844 = vpack.c.b16 %v626, %v624
    %v845 = vpack.c.b16 %v629, %v627
    %v846 = vpack.c.b16 %v630, %v628
    %v847 = vpack.c.b16 %v633, %v631
    %v848 = vpack.c.b16 %v634, %v632
    %v849 = vpack.c.b16 %v637, %v635
    %v850 = vpack.c.b16 %v638, %v636
    %v851 = vpack.c.b16 %v641, %v639
    %v852 = vpack.c.b16 %v642, %v640
    %v853 = vpack.c.b16 %v645, %v643
    %v854 = vpack.c.b16 %v646, %v644
    %v855 = vpack.c.b16 %v649, %v647
    %v856 = vpack.c.b16 %v650, %v648
    %v857 = vpack.c.b16 %v653, %v651
    %v858 = vpack.c.b16 %v654, %v652
    %v859 = vpack.c.b16 %v657, %v655
    %v860 = vpack.c.b16 %v658, %v656
    %v861 = vpack.c.b16 %v661, %v659
    %v862 = vpack.c.b16 %v662, %v660
    %v863 = vpack.c.b16 %v665, %v663
    %v864 = vpack.c.b16 %v666, %v664
    %v865 = vpack.c.b16 %v669, %v667
    %v866 = vpack.c.b16 %v670, %v668
    %v867 = vpack.c.b16 %v673, %v671
    %v868 = vpack.c.b16 %v674, %v672
    %v869 = vpack.c.b16 %v677, %v675
    %v870 = vpack.c.b16 %v678, %v676
    %v871 = vpack.c.b16 %v681, %v679
    %v872 = vpack.c.b16 %v682, %v680
    %v873 = vpack.c.b16 %v685, %v683
    %v874 = vpack.c.b16 %v686, %v684
    %v875 = vpack.c.b16 %v689, %v687
    %v876 = vpack.c.b16 %v690, %v688
    %v877 = vpack.c.b16 %v693, %v691
    %v878 = vpack.c.b16 %v694, %v692
    %v879 = vpack.c.b16 %v697, %v695
    %v880 = vpack.c.b16 %v698, %v696
    %v881 = vpack.c.b16 %v701, %v699
    %v882 = vpack.c.b16 %v702, %v700
    %v883 = vpack.c.b16 %v705, %v703
    %v884 = vpack.c.b16 %v706, %v704
    %v885 = vpack.c.b16 %v709, %v707
    %v886 = vpack.c.b16 %v710, %v708
    %v887 = vpack.c.b16 %v713, %v711
    %v888 = vpack.c.b16 %v714, %v712
    %v889 = vpack.c.b16 %v717, %v715
    %v890 = vpack.c.b16 %v718, %v716
    %v891 = vpack.c.b16 %v721, %v719
    %v892 = vpack.c.b16 %v722, %v720
    %v893 = vpack.c.b16 %v725, %v723
    %v894 = vpack.c.b16 %v726, %v724
    %v895 = vpack.c.b16 %v729, %v727
    %v896 = vpack.c.b16 %v730, %v728
    %v897 = vpack.c.b16 %v733, %v731
    %v898 = vpack.c.b16 %v734, %v732
    %v899 = vpack.c.b16 %v737, %v735
    %v900 = vpack.c.b16 %v738, %v736
    %v901 = vpack.c.b16 %v741, %v739
    %v902 = vpack.c.b16 %v742, %v740
    %1063 = vmatprep.subr.bf16.mxu0 %v744
    %1064 = vmatpush1.bf16.msra.mxu0 %v743
    %1065 = vmatprep.subr.bf16.mxu0 %v746
    %1066 = vmatpush1.bf16.msra.mxu0 %v745
    %1067 = vmatprep.subr.bf16.mxu0 %v748
    %1068 = vmatpush1.bf16.msra.mxu0 %v747
    %1069 = vmatprep.subr.bf16.mxu0 %v750
    %1070 = vmatpush1.bf16.msra.mxu0 %v749
    %1071 = vmatprep.subr.bf16.mxu0 %v752
    %1072 = vmatpush1.bf16.msra.mxu0 %v751
    %1073 = vmatprep.subr.bf16.mxu0 %v754
    %1074 = vmatpush1.bf16.msra.mxu0 %v753
    %1075 = vmatprep.subr.bf16.mxu0 %v756
    %1076 = vmatpush1.bf16.msra.mxu0 %v755
    %1077 = vmatprep.subr.bf16.mxu0 %v758
    %1078 = vmatpush1.bf16.msra.mxu0 %v757
    %1079 = vmatprep.subr.bf16.mxu0 %v760
    %1080 = vmatpush1.bf16.msra.mxu0 %v759
    %1081 = vmatprep.subr.bf16.mxu0 %v762
    %1082 = vmatpush1.bf16.msra.mxu0 %v761
    %1083 = vmatprep.subr.bf16.mxu0 %v764
    %1084 = vmatpush1.bf16.msra.mxu0 %v763
    %1085 = vmatprep.subr.bf16.mxu0 %v766
    %1086 = vmatpush1.bf16.msra.mxu0 %v765
    %1087 = vmatprep.subr.bf16.mxu0 %v768
    %1088 = vmatpush1.bf16.msra.mxu0 %v767
    %1089 = vmatprep.subr.bf16.mxu0 %v770
    %1090 = vmatpush1.bf16.msra.mxu0 %v769
    %1091 = vmatprep.subr.bf16.mxu0 %v772
    %1092 = vmatpush1.bf16.msra.mxu0 %v771
    %1093 = vmatprep.subr.bf16.mxu0 %v774
    %1094 = vmatpush1.bf16.msra.mxu0 %v773
    %1095 = vmatprep.mubr.bf16.mxu0 %v254
    %1096 = vmatmul.mubr.bf16.gmra.mrb[0].mxu0 %v253
    %v1097 = vpop.f32.mrb[0].mxu0
    %v1098 = vadd.f32 %v190, %v1097
    %v1099 = vpop.f32.mrb[0].mxu0
    %v1100 = vadd.f32 %v194, %v1099
    %v1101 = vpop.f32.mrb[0].mxu0
    %v1102 = vpop.f32.mrb[0].mxu0
    %1103 = vdwg.mxu0
    %1104 = vmatprep.subr.bf16.mxu0 %v776
    %1105 = vmatpush1.bf16.msra.mxu0 %v775
    %1106 = vmatprep.subr.bf16.mxu0 %v778
    %1107 = vmatpush1.bf16.msra.mxu0 %v777
    %1108 = vmatprep.subr.bf16.mxu0 %v780
    %1109 = vmatpush1.bf16.msra.mxu0 %v779
    %1110 = vmatprep.subr.bf16.mxu0 %v782
    %1111 = vmatpush1.bf16.msra.mxu0 %v781
    %1112 = vmatprep.subr.bf16.mxu0 %v784
    %1113 = vmatpush1.bf16.msra.mxu0 %v783
    %1114 = vmatprep.subr.bf16.mxu0 %v786
    %1115 = vmatpush1.bf16.msra.mxu0 %v785
    %1116 = vmatprep.subr.bf16.mxu0 %v788
    %1117 = vmatpush1.bf16.msra.mxu0 %v787
    %1118 = vmatprep.subr.bf16.mxu0 %v790
    %1119 = vmatpush1.bf16.msra.mxu0 %v789
    %1120 = vmatprep.subr.bf16.mxu0 %v792
    %1121 = vmatpush1.bf16.msra.mxu0 %v791
    %1122 = vmatprep.subr.bf16.mxu0 %v794
    %1123 = vmatpush1.bf16.msra.mxu0 %v793
    %1124 = vmatprep.subr.bf16.mxu0 %v796
    %1125 = vmatpush1.bf16.msra.mxu0 %v795
    %1126 = vmatprep.subr.bf16.mxu0 %v798
    %1127 = vmatpush1.bf16.msra.mxu0 %v797
    %1128 = vmatprep.subr.bf16.mxu0 %v800
    %1129 = vmatpush1.bf16.msra.mxu0 %v799
    %1130 = vmatprep.subr.bf16.mxu0 %v802
    %1131 = vmatpush1.bf16.msra.mxu0 %v801
    %1132 = vmatprep.subr.bf16.mxu0 %v804
    %1133 = vmatpush1.bf16.msra.mxu0 %v803
    %1134 = vmatprep.subr.bf16.mxu0 %v806
    %1135 = vmatpush1.bf16.msra.mxu0 %v805
    %1136 = vmatprep.mubr.bf16.mxu0 %v256
    %1137 = vmatmul.mubr.bf16.gmra.mrb[0].mxu0 %v255
    %v1138 = vpop.f32.mrb[0].mxu0
    %v1139 = vadd.f32 %v1098, %v1138
    %v1140 = vpop.f32.mrb[0].mxu0
    %v1141 = vadd.f32 %v1100, %v1140
    %v1142 = vpop.f32.mrb[0].mxu0
    %v1143 = vpop.f32.mrb[0].mxu0
    %1144 = vdwg.mxu0
    %1145 = vmatprep.subr.bf16.mxu0 %v808
    %1146 = vmatpush1.bf16.msra.mxu0 %v807
    %1147 = vmatprep.subr.bf16.mxu0 %v810
    %1148 = vmatpush1.bf16.msra.mxu0 %v809
    %1149 = vmatprep.subr.bf16.mxu0 %v812
    %1150 = vmatpush1.bf16.msra.mxu0 %v811
    %1151 = vmatprep.subr.bf16.mxu0 %v814
    %1152 = vmatpush1.bf16.msra.mxu0 %v813
    %1153 = vmatprep.subr.bf16.mxu0 %v816
    %1154 = vmatpush1.bf16.msra.mxu0 %v815
    %1155 = vmatprep.subr.bf16.mxu0 %v818
    %1156 = vmatpush1.bf16.msra.mxu0 %v817
    %1157 = vmatprep.subr.bf16.mxu0 %v820
    %1158 = vmatpush1.bf16.msra.mxu0 %v819
    %1159 = vmatprep.subr.bf16.mxu0 %v822
    %1160 = vmatpush1.bf16.msra.mxu0 %v821
    %1161 = vmatprep.subr.bf16.mxu0 %v824
    %1162 = vmatpush1.bf16.msra.mxu0 %v823
    %1163 = vmatprep.subr.bf16.mxu0 %v826
    %1164 = vmatpush1.bf16.msra.mxu0 %v825
    %1165 = vmatprep.subr.bf16.mxu0 %v828
    %1166 = vmatpush1.bf16.msra.mxu0 %v827
    %1167 = vmatprep.subr.bf16.mxu0 %v830
    %1168 = vmatpush1.bf16.msra.mxu0 %v829
    %1169 = vmatprep.subr.bf16.mxu0 %v832
    %1170 = vmatpush1.bf16.msra.mxu0 %v831
    %1171 = vmatprep.subr.bf16.mxu0 %v834
    %1172 = vmatpush1.bf16.msra.mxu0 %v833
    %1173 = vmatprep.subr.bf16.mxu0 %v836
    %1174 = vmatpush1.bf16.msra.mxu0 %v835
    %1175 = vmatprep.subr.bf16.mxu0 %v838
    %1176 = vmatpush1.bf16.msra.mxu0 %v837
    %1177 = vmatprep.mubr.bf16.mxu0 %v258
    %1178 = vmatmul.mubr.bf16.gmra.mrb[0].mxu0 %v257
    %v1179 = vpop.f32.mrb[0].mxu0
    %v1180 = vadd.f32 %v1139, %v1179
    %v1181 = vpop.f32.mrb[0].mxu0
    %v1182 = vadd.f32 %v1141, %v1181
    %v1183 = vpop.f32.mrb[0].mxu0
    %v1184 = vpop.f32.mrb[0].mxu0
    %1185 = vdwg.mxu0
    %1186 = vmatprep.subr.bf16.mxu0 %v840
    %1187 = vmatpush1.bf16.msra.mxu0 %v839
    %1188 = vmatprep.subr.bf16.mxu0 %v842
    %1189 = vmatpush1.bf16.msra.mxu0 %v841
    %1190 = vmatprep.subr.bf16.mxu0 %v844
    %1191 = vmatpush1.bf16.msra.mxu0 %v843
    %1192 = vmatprep.subr.bf16.mxu0 %v846
    %1193 = vmatpush1.bf16.msra.mxu0 %v845
    %1194 = vmatprep.subr.bf16.mxu0 %v848
    %1195 = vmatpush1.bf16.msra.mxu0 %v847
    %1196 = vmatprep.subr.bf16.mxu0 %v850
    %1197 = vmatpush1.bf16.msra.mxu0 %v849
    %1198 = vmatprep.subr.bf16.mxu0 %v852
    %1199 = vmatpush1.bf16.msra.mxu0 %v851
    %1200 = vmatprep.subr.bf16.mxu0 %v854
    %1201 = vmatpush1.bf16.msra.mxu0 %v853
    %1202 = vmatprep.subr.bf16.mxu0 %v856
    %1203 = vmatpush1.bf16.msra.mxu0 %v855
    %1204 = vmatprep.subr.bf16.mxu0 %v858
    %1205 = vmatpush1.bf16.msra.mxu0 %v857
    %1206 = vmatprep.subr.bf16.mxu0 %v860
    %1207 = vmatpush1.bf16.msra.mxu0 %v859
    %1208 = vmatprep.subr.bf16.mxu0 %v862
    %1209 = vmatpush1.bf16.msra.mxu0 %v861
    %1210 = vmatprep.subr.bf16.mxu0 %v864
    %1211 = vmatpush1.bf16.msra.mxu0 %v863
    %1212 = vmatprep.subr.bf16.mxu0 %v866
    %1213 = vmatpush1.bf16.msra.mxu0 %v865
    %1214 = vmatprep.subr.bf16.mxu0 %v868
    %1215 = vmatpush1.bf16.msra.mxu0 %v867
    %1216 = vmatprep.subr.bf16.mxu0 %v870
    %1217 = vmatpush1.bf16.msra.mxu0 %v869
    %1218 = vmatprep.mubr.bf16.mxu0 %v260
    %1219 = vmatmul.mubr.bf16.gmra.mrb[0].mxu0 %v259
    %v1220 = vpop.f32.mrb[0].mxu0
    %v1221 = vadd.f32 %v1180, %v1220
    %v1222 = vpop.f32.mrb[0].mxu0
    %v1223 = vadd.f32 %v1182, %v1222
    %v1224 = vpop.f32.mrb[0].mxu0
    %v1225 = vpop.f32.mrb[0].mxu0
    %1226 = vdwg.mxu0
    %1227 = vmatprep.subr.bf16.mxu0 %v872
    %1228 = vmatpush1.bf16.msra.mxu0 %v871
    %1229 = vmatprep.subr.bf16.mxu0 %v874
    %1230 = vmatpush1.bf16.msra.mxu0 %v873
    %1231 = vmatprep.subr.bf16.mxu0 %v876
    %1232 = vmatpush1.bf16.msra.mxu0 %v875
    %1233 = vmatprep.subr.bf16.mxu0 %v878
    %1234 = vmatpush1.bf16.msra.mxu0 %v877
    %1235 = vmatprep.subr.bf16.mxu0 %v880
    %1236 = vmatpush1.bf16.msra.mxu0 %v879
    %1237 = vmatprep.subr.bf16.mxu0 %v882
    %1238 = vmatpush1.bf16.msra.mxu0 %v881
    %1239 = vmatprep.subr.bf16.mxu0 %v884
    %1240 = vmatpush1.bf16.msra.mxu0 %v883
    %1241 = vmatprep.subr.bf16.mxu0 %v886
    %1242 = vmatpush1.bf16.msra.mxu0 %v885
    %1243 = vmatprep.subr.bf16.mxu0 %v888
    %1244 = vmatpush1.bf16.msra.mxu0 %v887
    %1245 = vmatprep.subr.bf16.mxu0 %v890
    %1246 = vmatpush1.bf16.msra.mxu0 %v889
    %1247 = vmatprep.subr.bf16.mxu0 %v892
    %1248 = vmatpush1.bf16.msra.mxu0 %v891
    %1249 = vmatprep.subr.bf16.mxu0 %v894
    %1250 = vmatpush1.bf16.msra.mxu0 %v893
    %1251 = vmatprep.subr.bf16.mxu0 %v896
    %1252 = vmatpush1.bf16.msra.mxu0 %v895
    %1253 = vmatprep.subr.bf16.mxu0 %v898
    %1254 = vmatpush1.bf16.msra.mxu0 %v897
    %1255 = vmatprep.subr.bf16.mxu0 %v900
    %1256 = vmatpush1.bf16.msra.mxu0 %v899
    %1257 = vmatprep.subr.bf16.mxu0 %v902
    %1258 = vmatpush1.bf16.msra.mxu0 %v901
    %1259 = vmatprep.mubr.bf16.mxu0 %v262
    %1260 = vmatmul.mubr.bf16.gmra.mrb[0].mxu0 %v261
    %v1261 = vpop.f32.mrb[0].mxu0
    %v1262 = vadd.f32 %v1221, %v1261
    %v1263 = vpop.f32.mrb[0].mxu0
    %v1264 = vadd.f32 %v1223, %v1263
    %v1265 = vpop.f32.mrb[0].mxu0
    %v1266 = vpop.f32.mrb[0].mxu0
    %1267 = vdwg.mxu0
    %v1268 = vld [vmem:[%s0 + $0x14] sm:$0xff]
    %v1269 = vld [vmem:[%s0 + $0x1c] sm:$0xff]
    %v1270 = vld [vmem:[%s0 + $0x24] sm:$0xf]
    %v1274 = vcombine.high %v1268, %v1268
    %v1276 = vunpack.c.l.s4 1983009808
    %v1277 = vunpack.c.0.s8 %v1276
    %v1278 = vlaneseq
    %v1279 = vshrl.u32 %v1278, 7
    %v1280 = vsub.s32 %v1277, %v1279
    %v1281 = vrot.slane %v1268, %v1280
    %v1283 = vunpack.c.l.s4 1983009808
    %v1284 = vunpack.c.0.s8 %v1283
    %v1285 = vlaneseq
    %v1286 = vshrl.u32 %v1285, 7
    %v1287 = vsub.s32 %v1284, %v1286
    %v1288 = vrot.slane %v1274, %v1287
    %v1289 = vcombine.high %v1281, %v1281
    %v1290 = vcombine.high %v1288, %v1288
    %v1291 = vcombine.high %v1269, %v1269
    %v1293 = vunpack.c.l.s4 1983009808
    %v1294 = vunpack.c.0.s8 %v1293
    %v1295 = vlaneseq
    %v1296 = vshrl.u32 %v1295, 7
    %v1297 = vsub.s32 %v1294, %v1296
    %v1298 = vrot.slane %v1269, %v1297
    %v1300 = vunpack.c.l.s4 1983009808
    %v1301 = vunpack.c.0.s8 %v1300
    %v1302 = vlaneseq
    %v1303 = vshrl.u32 %v1302, 7
    %v1304 = vsub.s32 %v1301, %v1303
    %v1305 = vrot.slane %v1291, %v1304
    %v1306 = vcombine.high %v1298, %v1298
    %v1307 = vcombine.high %v1305, %v1305
    %v1309 = vunpack.c.l.s4 1983009808
    %v1310 = vunpack.c.0.s8 %v1309
    %v1311 = vlaneseq
    %v1312 = vshrl.u32 %v1311, 7
    %v1313 = vsub.s32 %v1310, %v1312
    %v1314 = vrot.slane %v1270, %v1313
    %v1315 = vcombine.high %v1314, %v1314
    %v1326 = vpack.c.bf16 %v1281, %v1281
    %v1327 = vpack.c.bf16 %v1289, %v1289
    %v1328 = vpack.c.bf16 %v1288, %v1288
    %v1329 = vpack.c.bf16 %v1290, %v1290
    %v1330 = vpack.c.bf16 %v1298, %v1298
    %v1331 = vpack.c.bf16 %v1306, %v1306
    %v1332 = vpack.c.bf16 %v1305, %v1305
    %v1333 = vpack.c.bf16 %v1307, %v1307
    %v1334 = vpack.c.bf16 %v1314, %v1314
    %v1335 = vpack.c.bf16 %v1315, %v1315
    %1336 = vmatprep.subr.bf16.mxu0 %v744
    %1337 = vmatpush1.bf16.msra.mxu0 %v743
    %1338 = vmatprep.subr.bf16.mxu0 %v746
    %1339 = vmatpush1.bf16.msra.mxu0 %v745
    %1340 = vmatprep.subr.bf16.mxu0 %v748
    %1341 = vmatpush1.bf16.msra.mxu0 %v747
    %1342 = vmatprep.subr.bf16.mxu0 %v750
    %1343 = vmatpush1.bf16.msra.mxu0 %v749
    %1344 = vmatprep.subr.bf16.mxu0 %v752
    %1345 = vmatpush1.bf16.msra.mxu0 %v751
    %1346 = vmatprep.subr.bf16.mxu0 %v754
    %1347 = vmatpush1.bf16.msra.mxu0 %v753
    %1348 = vmatprep.subr.bf16.mxu0 %v756
    %1349 = vmatpush1.bf16.msra.mxu0 %v755
    %1350 = vmatprep.subr.bf16.mxu0 %v758
    %1351 = vmatpush1.bf16.msra.mxu0 %v757
    %1352 = vmatprep.subr.bf16.mxu0 %v760
    %1353 = vmatpush1.bf16.msra.mxu0 %v759
    %1354 = vmatprep.subr.bf16.mxu0 %v762
    %1355 = vmatpush1.bf16.msra.mxu0 %v761
    %1356 = vmatprep.subr.bf16.mxu0 %v764
    %1357 = vmatpush1.bf16.msra.mxu0 %v763
    %1358 = vmatprep.subr.bf16.mxu0 %v766
    %1359 = vmatpush1.bf16.msra.mxu0 %v765
    %1360 = vmatprep.subr.bf16.mxu0 %v768
    %1361 = vmatpush1.bf16.msra.mxu0 %v767
    %1362 = vmatprep.subr.bf16.mxu0 %v770
    %1363 = vmatpush1.bf16.msra.mxu0 %v769
    %1364 = vmatprep.subr.bf16.mxu0 %v772
    %1365 = vmatpush1.bf16.msra.mxu0 %v771
    %1366 = vmatprep.subr.bf16.mxu0 %v774
    %1367 = vmatpush1.bf16.msra.mxu0 %v773
    %1368 = vmatprep.mubr.bf16.mxu0 %v1327
    %1369 = vmatmul.mubr.bf16.gmra.mrb[0].mxu0 %v1326
    %v1370 = vpop.f32.mrb[0].mxu0
    %v1371 = vadd.f32 %v190, %v1370
    %v1372 = vpop.f32.mrb[0].mxu0
    %v1373 = vadd.f32 %v194, %v1372
    %v1374 = vpop.f32.mrb[0].mxu0
    %v1375 = vpop.f32.mrb[0].mxu0
    %1376 = vdwg.mxu0
    %1377 = vmatprep.subr.bf16.mxu0 %v776
    %1378 = vmatpush1.bf16.msra.mxu0 %v775
    %1379 = vmatprep.subr.bf16.mxu0 %v778
    %1380 = vmatpush1.bf16.msra.mxu0 %v777
    %1381 = vmatprep.subr.bf16.mxu0 %v780
    %1382 = vmatpush1.bf16.msra.mxu0 %v779
    %1383 = vmatprep.subr.bf16.mxu0 %v782
    %1384 = vmatpush1.bf16.msra.mxu0 %v781
    %1385 = vmatprep.subr.bf16.mxu0 %v784
    %1386 = vmatpush1.bf16.msra.mxu0 %v783
    %1387 = vmatprep.subr.bf16.mxu0 %v786
    %1388 = vmatpush1.bf16.msra.mxu0 %v785
    %1389 = vmatprep.subr.bf16.mxu0 %v788
    %1390 = vmatpush1.bf16.msra.mxu0 %v787
    %1391 = vmatprep.subr.bf16.mxu0 %v790
    %1392 = vmatpush1.bf16.msra.mxu0 %v789
    %1393 = vmatprep.subr.bf16.mxu0 %v792
    %1394 = vmatpush1.bf16.msra.mxu0 %v791
    %1395 = vmatprep.subr.bf16.mxu0 %v794
    %1396 = vmatpush1.bf16.msra.mxu0 %v793
    %1397 = vmatprep.subr.bf16.mxu0 %v796
    %1398 = vmatpush1.bf16.msra.mxu0 %v795
    %1399 = vmatprep.subr.bf16.mxu0 %v798
    %1400 = vmatpush1.bf16.msra.mxu0 %v797
    %1401 = vmatprep.subr.bf16.mxu0 %v800
    %1402 = vmatpush1.bf16.msra.mxu0 %v799
    %1403 = vmatprep.subr.bf16.mxu0 %v802
    %1404 = vmatpush1.bf16.msra.mxu0 %v801
    %1405 = vmatprep.subr.bf16.mxu0 %v804
    %1406 = vmatpush1.bf16.msra.mxu0 %v803
    %1407 = vmatprep.subr.bf16.mxu0 %v806
    %1408 = vmatpush1.bf16.msra.mxu0 %v805
    %1409 = vmatprep.mubr.bf16.mxu0 %v1329
    %1410 = vmatmul.mubr.bf16.gmra.mrb[0].mxu0 %v1328
    %v1411 = vpop.f32.mrb[0].mxu0
    %v1412 = vadd.f32 %v1371, %v1411
    %v1413 = vpop.f32.mrb[0].mxu0
    %v1414 = vadd.f32 %v1373, %v1413
    %v1415 = vpop.f32.mrb[0].mxu0
    %v1416 = vpop.f32.mrb[0].mxu0
    %1417 = vdwg.mxu0
    %1418 = vmatprep.subr.bf16.mxu0 %v808
    %1419 = vmatpush1.bf16.msra.mxu0 %v807
    %1420 = vmatprep.subr.bf16.mxu0 %v810
    %1421 = vmatpush1.bf16.msra.mxu0 %v809
    %1422 = vmatprep.subr.bf16.mxu0 %v812
    %1423 = vmatpush1.bf16.msra.mxu0 %v811
    %1424 = vmatprep.subr.bf16.mxu0 %v814
    %1425 = vmatpush1.bf16.msra.mxu0 %v813
    %1426 = vmatprep.subr.bf16.mxu0 %v816
    %1427 = vmatpush1.bf16.msra.mxu0 %v815
    %1428 = vmatprep.subr.bf16.mxu0 %v818
    %1429 = vmatpush1.bf16.msra.mxu0 %v817
    %1430 = vmatprep.subr.bf16.mxu0 %v820
    %1431 = vmatpush1.bf16.msra.mxu0 %v819
    %1432 = vmatprep.subr.bf16.mxu0 %v822
    %1433 = vmatpush1.bf16.msra.mxu0 %v821
    %1434 = vmatprep.subr.bf16.mxu0 %v824
    %1435 = vmatpush1.bf16.msra.mxu0 %v823
    %1436 = vmatprep.subr.bf16.mxu0 %v826
    %1437 = vmatpush1.bf16.msra.mxu0 %v825
    %1438 = vmatprep.subr.bf16.mxu0 %v828
    %1439 = vmatpush1.bf16.msra.mxu0 %v827
    %1440 = vmatprep.subr.bf16.mxu0 %v830
    %1441 = vmatpush1.bf16.msra.mxu0 %v829
    %1442 = vmatprep.subr.bf16.mxu0 %v832
    %1443 = vmatpush1.bf16.msra.mxu0 %v831
    %1444 = vmatprep.subr.bf16.mxu0 %v834
    %1445 = vmatpush1.bf16.msra.mxu0 %v833
    %1446 = vmatprep.subr.bf16.mxu0 %v836
    %1447 = vmatpush1.bf16.msra.mxu0 %v835
    %1448 = vmatprep.subr.bf16.mxu0 %v838
    %1449 = vmatpush1.bf16.msra.mxu0 %v837
    %1450 = vmatprep.mubr.bf16.mxu0 %v1331
    %1451 = vmatmul.mubr.bf16.gmra.mrb[0].mxu0 %v1330
    %v1452 = vpop.f32.mrb[0].mxu0
    %v1453 = vadd.f32 %v1412, %v1452
    %v1454 = vpop.f32.mrb[0].mxu0
    %v1455 = vadd.f32 %v1414, %v1454
    %v1456 = vpop.f32.mrb[0].mxu0
    %v1457 = vpop.f32.mrb[0].mxu0
    %1458 = vdwg.mxu0
    %1459 = vmatprep.subr.bf16.mxu0 %v840
    %1460 = vmatpush1.bf16.msra.mxu0 %v839
    %1461 = vmatprep.subr.bf16.mxu0 %v842
    %1462 = vmatpush1.bf16.msra.mxu0 %v841
    %1463 = vmatprep.subr.bf16.mxu0 %v844
    %1464 = vmatpush1.bf16.msra.mxu0 %v843
    %1465 = vmatprep.subr.bf16.mxu0 %v846
    %1466 = vmatpush1.bf16.msra.mxu0 %v845
    %1467 = vmatprep.subr.bf16.mxu0 %v848
    %1468 = vmatpush1.bf16.msra.mxu0 %v847
    %1469 = vmatprep.subr.bf16.mxu0 %v850
    %1470 = vmatpush1.bf16.msra.mxu0 %v849
    %1471 = vmatprep.subr.bf16.mxu0 %v852
    %1472 = vmatpush1.bf16.msra.mxu0 %v851
    %1473 = vmatprep.subr.bf16.mxu0 %v854
    %1474 = vmatpush1.bf16.msra.mxu0 %v853
    %1475 = vmatprep.subr.bf16.mxu0 %v856
    %1476 = vmatpush1.bf16.msra.mxu0 %v855
    %1477 = vmatprep.subr.bf16.mxu0 %v858
    %1478 = vmatpush1.bf16.msra.mxu0 %v857
    %1479 = vmatprep.subr.bf16.mxu0 %v860
    %1480 = vmatpush1.bf16.msra.mxu0 %v859
    %1481 = vmatprep.subr.bf16.mxu0 %v862
    %1482 = vmatpush1.bf16.msra.mxu0 %v861
    %1483 = vmatprep.subr.bf16.mxu0 %v864
    %1484 = vmatpush1.bf16.msra.mxu0 %v863
    %1485 = vmatprep.subr.bf16.mxu0 %v866
    %1486 = vmatpush1.bf16.msra.mxu0 %v865
    %1487 = vmatprep.subr.bf16.mxu0 %v868
    %1488 = vmatpush1.bf16.msra.mxu0 %v867
    %1489 = vmatprep.subr.bf16.mxu0 %v870
    %1490 = vmatpush1.bf16.msra.mxu0 %v869
    %1491 = vmatprep.mubr.bf16.mxu0 %v1333
    %1492 = vmatmul.mubr.bf16.gmra.mrb[0].mxu0 %v1332
    %v1493 = vpop.f32.mrb[0].mxu0
    %v1494 = vadd.f32 %v1453, %v1493
    %v1495 = vpop.f32.mrb[0].mxu0
    %v1496 = vadd.f32 %v1455, %v1495
    %v1497 = vpop.f32.mrb[0].mxu0
    %v1498 = vpop.f32.mrb[0].mxu0
    %1499 = vdwg.mxu0
    %1500 = vmatprep.subr.bf16.mxu0 %v872
    %1501 = vmatpush1.bf16.msra.mxu0 %v871
    %1502 = vmatprep.subr.bf16.mxu0 %v874
    %1503 = vmatpush1.bf16.msra.mxu0 %v873
    %1504 = vmatprep.subr.bf16.mxu0 %v876
    %1505 = vmatpush1.bf16.msra.mxu0 %v875
    %1506 = vmatprep.subr.bf16.mxu0 %v878
    %1507 = vmatpush1.bf16.msra.mxu0 %v877
    %1508 = vmatprep.subr.bf16.mxu0 %v880
    %1509 = vmatpush1.bf16.msra.mxu0 %v879
    %1510 = vmatprep.subr.bf16.mxu0 %v882
    %1511 = vmatpush1.bf16.msra.mxu0 %v881
    %1512 = vmatprep.subr.bf16.mxu0 %v884
    %1513 = vmatpush1.bf16.msra.mxu0 %v883
    %1514 = vmatprep.subr.bf16.mxu0 %v886
    %1515 = vmatpush1.bf16.msra.mxu0 %v885
    %1516 = vmatprep.subr.bf16.mxu0 %v888
    %1517 = vmatpush1.bf16.msra.mxu0 %v887
    %1518 = vmatprep.subr.bf16.mxu0 %v890
    %1519 = vmatpush1.bf16.msra.mxu0 %v889
    %1520 = vmatprep.subr.bf16.mxu0 %v892
    %1521 = vmatpush1.bf16.msra.mxu0 %v891
    %1522 = vmatprep.subr.bf16.mxu0 %v894
    %1523 = vmatpush1.bf16.msra.mxu0 %v893
    %1524 = vmatprep.subr.bf16.mxu0 %v896
    %1525 = vmatpush1.bf16.msra.mxu0 %v895
    %1526 = vmatprep.subr.bf16.mxu0 %v898
    %1527 = vmatpush1.bf16.msra.mxu0 %v897
    %1528 = vmatprep.subr.bf16.mxu0 %v900
    %1529 = vmatpush1.bf16.msra.mxu0 %v899
    %1530 = vmatprep.subr.bf16.mxu0 %v902
    %1531 = vmatpush1.bf16.msra.mxu0 %v901
    %1532 = vmatprep.mubr.bf16.mxu0 %v1335
    %1533 = vmatmul.mubr.bf16.gmra.mrb[0].mxu0 %v1334
    %v1534 = vpop.f32.mrb[0].mxu0
    %v1535 = vadd.f32 %v1494, %v1534
    %v1536 = vpop.f32.mrb[0].mxu0
    %v1537 = vadd.f32 %v1496, %v1536
    %v1538 = vpop.f32.mrb[0].mxu0
    %v1539 = vpop.f32.mrb[0].mxu0
    %1540 = vdwg.mxu0
    %v1541 = vld [vmem:[%s0 + $0x28] sm:$0xff]
    %v1542 = vld [vmem:[%s0 + $0x30] sm:$0xff]
    %v1543 = vld [vmem:[%s0 + $0x38] sm:$0xf]
    %v1547 = vcombine.high %v1541, %v1541
    %v1549 = vunpack.c.l.s4 1983009808
    %v1550 = vunpack.c.0.s8 %v1549
    %v1551 = vlaneseq
    %v1552 = vshrl.u32 %v1551, 7
    %v1553 = vsub.s32 %v1550, %v1552
    %v1554 = vrot.slane %v1541, %v1553
    %v1556 = vunpack.c.l.s4 1983009808
    %v1557 = vunpack.c.0.s8 %v1556
    %v1558 = vlaneseq
    %v1559 = vshrl.u32 %v1558, 7
    %v1560 = vsub.s32 %v1557, %v1559
    %v1561 = vrot.slane %v1547, %v1560
    %v1562 = vcombine.high %v1554, %v1554
    %v1563 = vcombine.high %v1561, %v1561
    %v1564 = vcombine.high %v1542, %v1542
    %v1566 = vunpack.c.l.s4 1983009808
    %v1567 = vunpack.c.0.s8 %v1566
    %v1568 = vlaneseq
    %v1569 = vshrl.u32 %v1568, 7
    %v1570 = vsub.s32 %v1567, %v1569
    %v1571 = vrot.slane %v1542, %v1570
    %v1573 = vunpack.c.l.s4 1983009808
    %v1574 = vunpack.c.0.s8 %v1573
    %v1575 = vlaneseq
    %v1576 = vshrl.u32 %v1575, 7
    %v1577 = vsub.s32 %v1574, %v1576
    %v1578 = vrot.slane %v1564, %v1577
    %v1579 = vcombine.high %v1571, %v1571
    %v1580 = vcombine.high %v1578, %v1578
    %v1582 = vunpack.c.l.s4 1983009808
    %v1583 = vunpack.c.0.s8 %v1582
    %v1584 = vlaneseq
    %v1585 = vshrl.u32 %v1584, 7
    %v1586 = vsub.s32 %v1583, %v1585
    %v1587 = vrot.slane %v1543, %v1586
    %v1588 = vcombine.high %v1587, %v1587
    %v1599 = vpack.c.bf16 %v1554, %v1554
    %v1600 = vpack.c.bf16 %v1562, %v1562
    %v1601 = vpack.c.bf16 %v1561, %v1561
    %v1602 = vpack.c.bf16 %v1563, %v1563
    %v1603 = vpack.c.bf16 %v1571, %v1571
    %v1604 = vpack.c.bf16 %v1579, %v1579
    %v1605 = vpack.c.bf16 %v1578, %v1578
    %v1606 = vpack.c.bf16 %v1580, %v1580
    %v1607 = vpack.c.bf16 %v1587, %v1587
    %v1608 = vpack.c.bf16 %v1588, %v1588
    %1609 = vmatprep.subr.bf16.mxu0 %v744
    %1610 = vmatpush1.bf16.msra.mxu0 %v743
    %1611 = vmatprep.subr.bf16.mxu0 %v746
    %1612 = vmatpush1.bf16.msra.mxu0 %v745
    %1613 = vmatprep.subr.bf16.mxu0 %v748
    %1614 = vmatpush1.bf16.msra.mxu0 %v747
    %1615 = vmatprep.subr.bf16.mxu0 %v750
    %1616 = vmatpush1.bf16.msra.mxu0 %v749
    %1617 = vmatprep.subr.bf16.mxu0 %v752
    %1618 = vmatpush1.bf16.msra.mxu0 %v751
    %1619 = vmatprep.subr.bf16.mxu0 %v754
    %1620 = vmatpush1.bf16.msra.mxu0 %v753
    %1621 = vmatprep.subr.bf16.mxu0 %v756
    %1622 = vmatpush1.bf16.msra.mxu0 %v755
    %1623 = vmatprep.subr.bf16.mxu0 %v758
    %1624 = vmatpush1.bf16.msra.mxu0 %v757
    %1625 = vmatprep.subr.bf16.mxu0 %v760
    %1626 = vmatpush1.bf16.msra.mxu0 %v759
    %1627 = vmatprep.subr.bf16.mxu0 %v762
    %1628 = vmatpush1.bf16.msra.mxu0 %v761
    %1629 = vmatprep.subr.bf16.mxu0 %v764
    %1630 = vmatpush1.bf16.msra.mxu0 %v763
    %1631 = vmatprep.subr.bf16.mxu0 %v766
    %1632 = vmatpush1.bf16.msra.mxu0 %v765
    %1633 = vmatprep.subr.bf16.mxu0 %v768
    %1634 = vmatpush1.bf16.msra.mxu0 %v767
    %1635 = vmatprep.subr.bf16.mxu0 %v770
    %1636 = vmatpush1.bf16.msra.mxu0 %v769
    %1637 = vmatprep.subr.bf16.mxu0 %v772
    %1638 = vmatpush1.bf16.msra.mxu0 %v771
    %1639 = vmatprep.subr.bf16.mxu0 %v774
    %1640 = vmatpush1.bf16.msra.mxu0 %v773
    %1641 = vmatprep.mubr.bf16.mxu0 %v1600
    %1642 = vmatmul.mubr.bf16.gmra.mrb[0].mxu0 %v1599
    %v1643 = vpop.f32.mrb[0].mxu0
    %v1644 = vadd.f32 %v190, %v1643
    %v1645 = vpop.f32.mrb[0].mxu0
    %v1646 = vadd.f32 %v194, %v1645
    %v1647 = vpop.f32.mrb[0].mxu0
    %v1648 = vpop.f32.mrb[0].mxu0
    %1649 = vdwg.mxu0
    %1650 = vmatprep.subr.bf16.mxu0 %v776
    %1651 = vmatpush1.bf16.msra.mxu0 %v775
    %1652 = vmatprep.subr.bf16.mxu0 %v778
    %1653 = vmatpush1.bf16.msra.mxu0 %v777
    %1654 = vmatprep.subr.bf16.mxu0 %v780
    %1655 = vmatpush1.bf16.msra.mxu0 %v779
    %1656 = vmatprep.subr.bf16.mxu0 %v782
    %1657 = vmatpush1.bf16.msra.mxu0 %v781
    %1658 = vmatprep.subr.bf16.mxu0 %v784
    %1659 = vmatpush1.bf16.msra.mxu0 %v783
    %1660 = vmatprep.subr.bf16.mxu0 %v786
    %1661 = vmatpush1.bf16.msra.mxu0 %v785
    %1662 = vmatprep.subr.bf16.mxu0 %v788
    %1663 = vmatpush1.bf16.msra.mxu0 %v787
    %1664 = vmatprep.subr.bf16.mxu0 %v790
    %1665 = vmatpush1.bf16.msra.mxu0 %v789
    %1666 = vmatprep.subr.bf16.mxu0 %v792
    %1667 = vmatpush1.bf16.msra.mxu0 %v791
    %1668 = vmatprep.subr.bf16.mxu0 %v794
    %1669 = vmatpush1.bf16.msra.mxu0 %v793
    %1670 = vmatprep.subr.bf16.mxu0 %v796
    %1671 = vmatpush1.bf16.msra.mxu0 %v795
    %1672 = vmatprep.subr.bf16.mxu0 %v798
    %1673 = vmatpush1.bf16.msra.mxu0 %v797
    %1674 = vmatprep.subr.bf16.mxu0 %v800
    %1675 = vmatpush1.bf16.msra.mxu0 %v799
    %1676 = vmatprep.subr.bf16.mxu0 %v802
    %1677 = vmatpush1.bf16.msra.mxu0 %v801
    %1678 = vmatprep.subr.bf16.mxu0 %v804
    %1679 = vmatpush1.bf16.msra.mxu0 %v803
    %1680 = vmatprep.subr.bf16.mxu0 %v806
    %1681 = vmatpush1.bf16.msra.mxu0 %v805
    %1682 = vmatprep.mubr.bf16.mxu0 %v1602
    %1683 = vmatmul.mubr.bf16.gmra.mrb[0].mxu0 %v1601
    %v1684 = vpop.f32.mrb[0].mxu0
    %v1685 = vadd.f32 %v1644, %v1684
    %v1686 = vpop.f32.mrb[0].mxu0
    %v1687 = vadd.f32 %v1646, %v1686
    %v1688 = vpop.f32.mrb[0].mxu0
    %v1689 = vpop.f32.mrb[0].mxu0
    %1690 = vdwg.mxu0
    %1691 = vmatprep.subr.bf16.mxu0 %v808
    %1692 = vmatpush1.bf16.msra.mxu0 %v807
    %1693 = vmatprep.subr.bf16.mxu0 %v810
    %1694 = vmatpush1.bf16.msra.mxu0 %v809
    %1695 = vmatprep.subr.bf16.mxu0 %v812
    %1696 = vmatpush1.bf16.msra.mxu0 %v811
    %1697 = vmatprep.subr.bf16.mxu0 %v814
    %1698 = vmatpush1.bf16.msra.mxu0 %v813
    %1699 = vmatprep.subr.bf16.mxu0 %v816
    %1700 = vmatpush1.bf16.msra.mxu0 %v815
    %1701 = vmatprep.subr.bf16.mxu0 %v818
    %1702 = vmatpush1.bf16.msra.mxu0 %v817
    %1703 = vmatprep.subr.bf16.mxu0 %v820
    %1704 = vmatpush1.bf16.msra.mxu0 %v819
    %1705 = vmatprep.subr.bf16.mxu0 %v822
    %1706 = vmatpush1.bf16.msra.mxu0 %v821
    %1707 = vmatprep.subr.bf16.mxu0 %v824
    %1708 = vmatpush1.bf16.msra.mxu0 %v823
    %1709 = vmatprep.subr.bf16.mxu0 %v826
    %1710 = vmatpush1.bf16.msra.mxu0 %v825
    %1711 = vmatprep.subr.bf16.mxu0 %v828
    %1712 = vmatpush1.bf16.msra.mxu0 %v827
    %1713 = vmatprep.subr.bf16.mxu0 %v830
    %1714 = vmatpush1.bf16.msra.mxu0 %v829
    %1715 = vmatprep.subr.bf16.mxu0 %v832
    %1716 = vmatpush1.bf16.msra.mxu0 %v831
    %1717 = vmatprep.subr.bf16.mxu0 %v834
    %1718 = vmatpush1.bf16.msra.mxu0 %v833
    %1719 = vmatprep.subr.bf16.mxu0 %v836
    %1720 = vmatpush1.bf16.msra.mxu0 %v835
    %1721 = vmatprep.subr.bf16.mxu0 %v838
    %1722 = vmatpush1.bf16.msra.mxu0 %v837
    %1723 = vmatprep.mubr.bf16.mxu0 %v1604
    %1724 = vmatmul.mubr.bf16.gmra.mrb[0].mxu0 %v1603
    %v1725 = vpop.f32.mrb[0].mxu0
    %v1726 = vadd.f32 %v1685, %v1725
    %v1727 = vpop.f32.mrb[0].mxu0
    %v1728 = vadd.f32 %v1687, %v1727
    %v1729 = vpop.f32.mrb[0].mxu0
    %v1730 = vpop.f32.mrb[0].mxu0
    %1731 = vdwg.mxu0
    %1732 = vmatprep.subr.bf16.mxu0 %v840
    %1733 = vmatpush1.bf16.msra.mxu0 %v839
    %1734 = vmatprep.subr.bf16.mxu0 %v842
    %1735 = vmatpush1.bf16.msra.mxu0 %v841
    %1736 = vmatprep.subr.bf16.mxu0 %v844
    %1737 = vmatpush1.bf16.msra.mxu0 %v843
    %1738 = vmatprep.subr.bf16.mxu0 %v846
    %1739 = vmatpush1.bf16.msra.mxu0 %v845
    %1740 = vmatprep.subr.bf16.mxu0 %v848
    %1741 = vmatpush1.bf16.msra.mxu0 %v847
    %1742 = vmatprep.subr.bf16.mxu0 %v850
    %1743 = vmatpush1.bf16.msra.mxu0 %v849
    %1744 = vmatprep.subr.bf16.mxu0 %v852
    %1745 = vmatpush1.bf16.msra.mxu0 %v851
    %1746 = vmatprep.subr.bf16.mxu0 %v854
    %1747 = vmatpush1.bf16.msra.mxu0 %v853
    %1748 = vmatprep.subr.bf16.mxu0 %v856
    %1749 = vmatpush1.bf16.msra.mxu0 %v855
    %1750 = vmatprep.subr.bf16.mxu0 %v858
    %1751 = vmatpush1.bf16.msra.mxu0 %v857
    %1752 = vmatprep.subr.bf16.mxu0 %v860
    %1753 = vmatpush1.bf16.msra.mxu0 %v859
    %1754 = vmatprep.subr.bf16.mxu0 %v862
    %1755 = vmatpush1.bf16.msra.mxu0 %v861
    %1756 = vmatprep.subr.bf16.mxu0 %v864
    %1757 = vmatpush1.bf16.msra.mxu0 %v863
    %1758 = vmatprep.subr.bf16.mxu0 %v866
    %1759 = vmatpush1.bf16.msra.mxu0 %v865
    %1760 = vmatprep.subr.bf16.mxu0 %v868
    %1761 = vmatpush1.bf16.msra.mxu0 %v867
    %1762 = vmatprep.subr.bf16.mxu0 %v870
    %1763 = vmatpush1.bf16.msra.mxu0 %v869
    %1764 = vmatprep.mubr.bf16.mxu0 %v1606
    %1765 = vmatmul.mubr.bf16.gmra.mrb[0].mxu0 %v1605
    %v1766 = vpop.f32.mrb[0].mxu0
    %v1767 = vadd.f32 %v1726, %v1766
    %v1768 = vpop.f32.mrb[0].mxu0
    %v1769 = vadd.f32 %v1728, %v1768
    %v1770 = vpop.f32.mrb[0].mxu0
    %v1771 = vpop.f32.mrb[0].mxu0
    %1772 = vdwg.mxu0
    %1773 = vmatprep.subr.bf16.mxu0 %v872
    %1774 = vmatpush1.bf16.msra.mxu0 %v871
    %1775 = vmatprep.subr.bf16.mxu0 %v874
    %1776 = vmatpush1.bf16.msra.mxu0 %v873
    %1777 = vmatprep.subr.bf16.mxu0 %v876
    %1778 = vmatpush1.bf16.msra.mxu0 %v875
    %1779 = vmatprep.subr.bf16.mxu0 %v878
    %1780 = vmatpush1.bf16.msra.mxu0 %v877
    %1781 = vmatprep.subr.bf16.mxu0 %v880
    %1782 = vmatpush1.bf16.msra.mxu0 %v879
    %1783 = vmatprep.subr.bf16.mxu0 %v882
    %1784 = vmatpush1.bf16.msra.mxu0 %v881
    %1785 = vmatprep.subr.bf16.mxu0 %v884
    %1786 = vmatpush1.bf16.msra.mxu0 %v883
    %1787 = vmatprep.subr.bf16.mxu0 %v886
    %1788 = vmatpush1.bf16.msra.mxu0 %v885
    %1789 = vmatprep.subr.bf16.mxu0 %v888
    %1790 = vmatpush1.bf16.msra.mxu0 %v887
    %1791 = vmatprep.subr.bf16.mxu0 %v890
    %1792 = vmatpush1.bf16.msra.mxu0 %v889
    %1793 = vmatprep.subr.bf16.mxu0 %v892
    %1794 = vmatpush1.bf16.msra.mxu0 %v891
    %1795 = vmatprep.subr.bf16.mxu0 %v894
    %1796 = vmatpush1.bf16.msra.mxu0 %v893
    %1797 = vmatprep.subr.bf16.mxu0 %v896
    %1798 = vmatpush1.bf16.msra.mxu0 %v895
    %1799 = vmatprep.subr.bf16.mxu0 %v898
    %1800 = vmatpush1.bf16.msra.mxu0 %v897
    %1801 = vmatprep.subr.bf16.mxu0 %v900
    %1802 = vmatpush1.bf16.msra.mxu0 %v899
    %1803 = vmatprep.subr.bf16.mxu0 %v902
    %1804 = vmatpush1.bf16.msra.mxu0 %v901
    %1805 = vmatprep.mubr.bf16.mxu0 %v1608
    %1806 = vmatmul.mubr.bf16.gmra.mrb[0].mxu0 %v1607
    %v1807 = vpop.f32.mrb[0].mxu0
    %v1808 = vadd.f32 %v1767, %v1807
    %v1809 = vpop.f32.mrb[0].mxu0
    %v1810 = vadd.f32 %v1769, %v1809
    %v1811 = vpop.f32.mrb[0].mxu0
    %v1812 = vpop.f32.mrb[0].mxu0
    %1813 = vdwg.mxu0
    %v1814 = vld [vmem:[%s0 + $0x3c] sm:$0xff]
    %v1815 = vld [vmem:[%s0 + $0x44] sm:$0xff]
    %v1816 = vld [vmem:[%s0 + $0x4c] sm:$0xf]
    %v1820 = vcombine.high %v1814, %v1814
    %v1822 = vunpack.c.l.s4 1983009808
    %v1823 = vunpack.c.0.s8 %v1822
    %v1824 = vlaneseq
    %v1825 = vshrl.u32 %v1824, 7
    %v1826 = vsub.s32 %v1823, %v1825
    %v1827 = vrot.slane %v1814, %v1826
    %v1829 = vunpack.c.l.s4 1983009808
    %v1830 = vunpack.c.0.s8 %v1829
    %v1831 = vlaneseq
    %v1832 = vshrl.u32 %v1831, 7
    %v1833 = vsub.s32 %v1830, %v1832
    %v1834 = vrot.slane %v1820, %v1833
    %v1835 = vcombine.high %v1827, %v1827
    %v1836 = vcombine.high %v1834, %v1834
    %v1837 = vcombine.high %v1815, %v1815
    %v1839 = vunpack.c.l.s4 1983009808
    %v1840 = vunpack.c.0.s8 %v1839
    %v1841 = vlaneseq
    %v1842 = vshrl.u32 %v1841, 7
    %v1843 = vsub.s32 %v1840, %v1842
    %v1844 = vrot.slane %v1815, %v1843
    %v1846 = vunpack.c.l.s4 1983009808
    %v1847 = vunpack.c.0.s8 %v1846
    %v1848 = vlaneseq
    %v1849 = vshrl.u32 %v1848, 7
    %v1850 = vsub.s32 %v1847, %v1849
    %v1851 = vrot.slane %v1837, %v1850
    %v1852 = vcombine.high %v1844, %v1844
    %v1853 = vcombine.high %v1851, %v1851
    %v1855 = vunpack.c.l.s4 1983009808
    %v1856 = vunpack.c.0.s8 %v1855
    %v1857 = vlaneseq
    %v1858 = vshrl.u32 %v1857, 7
    %v1859 = vsub.s32 %v1856, %v1858
    %v1860 = vrot.slane %v1816, %v1859
    %v1861 = vcombine.high %v1860, %v1860
    %v1872 = vpack.c.bf16 %v1827, %v1827
    %v1873 = vpack.c.bf16 %v1835, %v1835
    %v1874 = vpack.c.bf16 %v1834, %v1834
    %v1875 = vpack.c.bf16 %v1836, %v1836
    %v1876 = vpack.c.bf16 %v1844, %v1844
    %v1877 = vpack.c.bf16 %v1852, %v1852
    %v1878 = vpack.c.bf16 %v1851, %v1851
    %v1879 = vpack.c.bf16 %v1853, %v1853
    %v1880 = vpack.c.bf16 %v1860, %v1860
    %v1881 = vpack.c.bf16 %v1861, %v1861
    %1882 = vmatprep.subr.bf16.mxu0 %v744
    %1883 = vmatpush1.bf16.msra.mxu0 %v743
    %1884 = vmatprep.subr.bf16.mxu0 %v746
    %1885 = vmatpush1.bf16.msra.mxu0 %v745
    %1886 = vmatprep.subr.bf16.mxu0 %v748
    %1887 = vmatpush1.bf16.msra.mxu0 %v747
    %1888 = vmatprep.subr.bf16.mxu0 %v750
    %1889 = vmatpush1.bf16.msra.mxu0 %v749
    %1890 = vmatprep.subr.bf16.mxu0 %v752
    %1891 = vmatpush1.bf16.msra.mxu0 %v751
    %1892 = vmatprep.subr.bf16.mxu0 %v754
    %1893 = vmatpush1.bf16.msra.mxu0 %v753
    %1894 = vmatprep.subr.bf16.mxu0 %v756
    %1895 = vmatpush1.bf16.msra.mxu0 %v755
    %1896 = vmatprep.subr.bf16.mxu0 %v758
    %1897 = vmatpush1.bf16.msra.mxu0 %v757
    %1898 = vmatprep.subr.bf16.mxu0 %v760
    %1899 = vmatpush1.bf16.msra.mxu0 %v759
    %1900 = vmatprep.subr.bf16.mxu0 %v762
    %1901 = vmatpush1.bf16.msra.mxu0 %v761
    %1902 = vmatprep.subr.bf16.mxu0 %v764
    %1903 = vmatpush1.bf16.msra.mxu0 %v763
    %1904 = vmatprep.subr.bf16.mxu0 %v766
    %1905 = vmatpush1.bf16.msra.mxu0 %v765
    %1906 = vmatprep.subr.bf16.mxu0 %v768
    %1907 = vmatpush1.bf16.msra.mxu0 %v767
    %1908 = vmatprep.subr.bf16.mxu0 %v770
    %1909 = vmatpush1.bf16.msra.mxu0 %v769
    %1910 = vmatprep.subr.bf16.mxu0 %v772
    %1911 = vmatpush1.bf16.msra.mxu0 %v771
    %1912 = vmatprep.subr.bf16.mxu0 %v774
    %1913 = vmatpush1.bf16.msra.mxu0 %v773
    %1914 = vmatprep.mubr.bf16.mxu0 %v1873
    %1915 = vmatmul.mubr.bf16.gmra.mrb[0].mxu0 %v1872
    %v1916 = vpop.f32.mrb[0].mxu0
    %v1917 = vadd.f32 %v190, %v1916
    %v1918 = vpop.f32.mrb[0].mxu0
    %v1919 = vadd.f32 %v194, %v1918
    %v1920 = vpop.f32.mrb[0].mxu0
    %v1921 = vpop.f32.mrb[0].mxu0
    %1922 = vdwg.mxu0
    %1923 = vmatprep.subr.bf16.mxu0 %v776
    %1924 = vmatpush1.bf16.msra.mxu0 %v775
    %1925 = vmatprep.subr.bf16.mxu0 %v778
    %1926 = vmatpush1.bf16.msra.mxu0 %v777
    %1927 = vmatprep.subr.bf16.mxu0 %v780
    %1928 = vmatpush1.bf16.msra.mxu0 %v779
    %1929 = vmatprep.subr.bf16.mxu0 %v782
    %1930 = vmatpush1.bf16.msra.mxu0 %v781
    %1931 = vmatprep.subr.bf16.mxu0 %v784
    %1932 = vmatpush1.bf16.msra.mxu0 %v783
    %1933 = vmatprep.subr.bf16.mxu0 %v786
    %1934 = vmatpush1.bf16.msra.mxu0 %v785
    %1935 = vmatprep.subr.bf16.mxu0 %v788
    %1936 = vmatpush1.bf16.msra.mxu0 %v787
    %1937 = vmatprep.subr.bf16.mxu0 %v790
    %1938 = vmatpush1.bf16.msra.mxu0 %v789
    %1939 = vmatprep.subr.bf16.mxu0 %v792
    %1940 = vmatpush1.bf16.msra.mxu0 %v791
    %1941 = vmatprep.subr.bf16.mxu0 %v794
    %1942 = vmatpush1.bf16.msra.mxu0 %v793
    %1943 = vmatprep.subr.bf16.mxu0 %v796
    %1944 = vmatpush1.bf16.msra.mxu0 %v795
    %1945 = vmatprep.subr.bf16.mxu0 %v798
    %1946 = vmatpush1.bf16.msra.mxu0 %v797
    %1947 = vmatprep.subr.bf16.mxu0 %v800
    %1948 = vmatpush1.bf16.msra.mxu0 %v799
    %1949 = vmatprep.subr.bf16.mxu0 %v802
    %1950 = vmatpush1.bf16.msra.mxu0 %v801
    %1951 = vmatprep.subr.bf16.mxu0 %v804
    %1952 = vmatpush1.bf16.msra.mxu0 %v803
    %1953 = vmatprep.subr.bf16.mxu0 %v806
    %1954 = vmatpush1.bf16.msra.mxu0 %v805
    %1955 = vmatprep.mubr.bf16.mxu0 %v1875
    %1956 = vmatmul.mubr.bf16.gmra.mrb[0].mxu0 %v1874
    %v1957 = vpop.f32.mrb[0].mxu0
    %v1958 = vadd.f32 %v1917, %v1957
    %v1959 = vpop.f32.mrb[0].mxu0
    %v1960 = vadd.f32 %v1919, %v1959
    %v1961 = vpop.f32.mrb[0].mxu0
    %v1962 = vpop.f32.mrb[0].mxu0
    %1963 = vdwg.mxu0
    %1964 = vmatprep.subr.bf16.mxu0 %v808
    %1965 = vmatpush1.bf16.msra.mxu0 %v807
    %1966 = vmatprep.subr.bf16.mxu0 %v810
    %1967 = vmatpush1.bf16.msra.mxu0 %v809
    %1968 = vmatprep.subr.bf16.mxu0 %v812
    %1969 = vmatpush1.bf16.msra.mxu0 %v811
    %1970 = vmatprep.subr.bf16.mxu0 %v814
    %1971 = vmatpush1.bf16.msra.mxu0 %v813
    %1972 = vmatprep.subr.bf16.mxu0 %v816
    %1973 = vmatpush1.bf16.msra.mxu0 %v815
    %1974 = vmatprep.subr.bf16.mxu0 %v818
    %1975 = vmatpush1.bf16.msra.mxu0 %v817
    %1976 = vmatprep.subr.bf16.mxu0 %v820
    %1977 = vmatpush1.bf16.msra.mxu0 %v819
    %1978 = vmatprep.subr.bf16.mxu0 %v822
    %1979 = vmatpush1.bf16.msra.mxu0 %v821
    %1980 = vmatprep.subr.bf16.mxu0 %v824
    %1981 = vmatpush1.bf16.msra.mxu0 %v823
    %1982 = vmatprep.subr.bf16.mxu0 %v826
    %1983 = vmatpush1.bf16.msra.mxu0 %v825
    %1984 = vmatprep.subr.bf16.mxu0 %v828
    %1985 = vmatpush1.bf16.msra.mxu0 %v827
    %1986 = vmatprep.subr.bf16.mxu0 %v830
    %1987 = vmatpush1.bf16.msra.mxu0 %v829
    %1988 = vmatprep.subr.bf16.mxu0 %v832
    %1989 = vmatpush1.bf16.msra.mxu0 %v831
    %1990 = vmatprep.subr.bf16.mxu0 %v834
    %1991 = vmatpush1.bf16.msra.mxu0 %v833
    %1992 = vmatprep.subr.bf16.mxu0 %v836
    %1993 = vmatpush1.bf16.msra.mxu0 %v835
    %1994 = vmatprep.subr.bf16.mxu0 %v838
    %1995 = vmatpush1.bf16.msra.mxu0 %v837
    %1996 = vmatprep.mubr.bf16.mxu0 %v1877
    %1997 = vmatmul.mubr.bf16.gmra.mrb[0].mxu0 %v1876
    %v1998 = vpop.f32.mrb[0].mxu0
    %v1999 = vadd.f32 %v1958, %v1998
    %v2000 = vpop.f32.mrb[0].mxu0
    %v2001 = vadd.f32 %v1960, %v2000
    %v2002 = vpop.f32.mrb[0].mxu0
    %v2003 = vpop.f32.mrb[0].mxu0
    %2004 = vdwg.mxu0
    %2005 = vmatprep.subr.bf16.mxu0 %v840
    %2006 = vmatpush1.bf16.msra.mxu0 %v839
    %2007 = vmatprep.subr.bf16.mxu0 %v842
    %2008 = vmatpush1.bf16.msra.mxu0 %v841
    %2009 = vmatprep.subr.bf16.mxu0 %v844
    %2010 = vmatpush1.bf16.msra.mxu0 %v843
    %2011 = vmatprep.subr.bf16.mxu0 %v846
    %2012 = vmatpush1.bf16.msra.mxu0 %v845
    %2013 = vmatprep.subr.bf16.mxu0 %v848
    %2014 = vmatpush1.bf16.msra.mxu0 %v847
    %2015 = vmatprep.subr.bf16.mxu0 %v850
    %2016 = vmatpush1.bf16.msra.mxu0 %v849
    %2017 = vmatprep.subr.bf16.mxu0 %v852
    %2018 = vmatpush1.bf16.msra.mxu0 %v851
    %2019 = vmatprep.subr.bf16.mxu0 %v854
    %2020 = vmatpush1.bf16.msra.mxu0 %v853
    %2021 = vmatprep.subr.bf16.mxu0 %v856
    %2022 = vmatpush1.bf16.msra.mxu0 %v855
    %2023 = vmatprep.subr.bf16.mxu0 %v858
    %2024 = vmatpush1.bf16.msra.mxu0 %v857
    %2025 = vmatprep.subr.bf16.mxu0 %v860
    %2026 = vmatpush1.bf16.msra.mxu0 %v859
    %2027 = vmatprep.subr.bf16.mxu0 %v862
    %2028 = vmatpush1.bf16.msra.mxu0 %v861
    %2029 = vmatprep.subr.bf16.mxu0 %v864
    %2030 = vmatpush1.bf16.msra.mxu0 %v863
    %2031 = vmatprep.subr.bf16.mxu0 %v866
    %2032 = vmatpush1.bf16.msra.mxu0 %v865
    %2033 = vmatprep.subr.bf16.mxu0 %v868
    %2034 = vmatpush1.bf16.msra.mxu0 %v867
    %2035 = vmatprep.subr.bf16.mxu0 %v870
    %2036 = vmatpush1.bf16.msra.mxu0 %v869
    %2037 = vmatprep.mubr.bf16.mxu0 %v1879
    %2038 = vmatmul.mubr.bf16.gmra.mrb[0].mxu0 %v1878
    %v2039 = vpop.f32.mrb[0].mxu0
    %v2040 = vadd.f32 %v1999, %v2039
    %v2041 = vpop.f32.mrb[0].mxu0
    %v2042 = vadd.f32 %v2001, %v2041
    %v2043 = vpop.f32.mrb[0].mxu0
    %v2044 = vpop.f32.mrb[0].mxu0
    %2045 = vdwg.mxu0
    %2046 = vmatprep.subr.bf16.mxu0 %v872
    %2047 = vmatpush1.bf16.msra.mxu0 %v871
    %2048 = vmatprep.subr.bf16.mxu0 %v874
    %2049 = vmatpush1.bf16.msra.mxu0 %v873
    %2050 = vmatprep.subr.bf16.mxu0 %v876
    %2051 = vmatpush1.bf16.msra.mxu0 %v875
    %2052 = vmatprep.subr.bf16.mxu0 %v878
    %2053 = vmatpush1.bf16.msra.mxu0 %v877
    %2054 = vmatprep.subr.bf16.mxu0 %v880
    %2055 = vmatpush1.bf16.msra.mxu0 %v879
    %2056 = vmatprep.subr.bf16.mxu0 %v882
    %2057 = vmatpush1.bf16.msra.mxu0 %v881
    %2058 = vmatprep.subr.bf16.mxu0 %v884
    %2059 = vmatpush1.bf16.msra.mxu0 %v883
    %2060 = vmatprep.subr.bf16.mxu0 %v886
    %2061 = vmatpush1.bf16.msra.mxu0 %v885
    %2062 = vmatprep.subr.bf16.mxu0 %v888
    %2063 = vmatpush1.bf16.msra.mxu0 %v887
    %2064 = vmatprep.subr.bf16.mxu0 %v890
    %2065 = vmatpush1.bf16.msra.mxu0 %v889
    %2066 = vmatprep.subr.bf16.mxu0 %v892
    %2067 = vmatpush1.bf16.msra.mxu0 %v891
    %2068 = vmatprep.subr.bf16.mxu0 %v894
    %2069 = vmatpush1.bf16.msra.mxu0 %v893
    %2070 = vmatprep.subr.bf16.mxu0 %v896
    %2071 = vmatpush1.bf16.msra.mxu0 %v895
    %2072 = vmatprep.subr.bf16.mxu0 %v898
    %2073 = vmatpush1.bf16.msra.mxu0 %v897
    %2074 = vmatprep.subr.bf16.mxu0 %v900
    %2075 = vmatpush1.bf16.msra.mxu0 %v899
    %2076 = vmatprep.subr.bf16.mxu0 %v902
    %2077 = vmatpush1.bf16.msra.mxu0 %v901
    %2078 = vmatprep.mubr.bf16.mxu0 %v1881
    %2079 = vmatmul.mubr.bf16.gmra.mrb[0].mxu0 %v1880
    %v2080 = vpop.f32.mrb[0].mxu0
    %v2081 = vadd.f32 %v2040, %v2080
    %v2082 = vpop.f32.mrb[0].mxu0
    %v2083 = vadd.f32 %v2042, %v2082
    %v2084 = vpop.f32.mrb[0].mxu0
    %v2085 = vpop.f32.mrb[0].mxu0
    %2086 = vdwg.mxu0
    %v2087 = vld [vmem:[%s0 + $0x50] sm:$0xff]
    %v2088 = vld [vmem:[%s0 + $0x58] sm:$0xff]
    %v2089 = vld [vmem:[%s0 + $0x60] sm:$0xf]
    %v2093 = vcombine.high %v2087, %v2087
    %v2095 = vunpack.c.l.s4 1983009808
    %v2096 = vunpack.c.0.s8 %v2095
    %v2097 = vlaneseq
    %v2098 = vshrl.u32 %v2097, 7
    %v2099 = vsub.s32 %v2096, %v2098
    %v2100 = vrot.slane %v2087, %v2099
    %v2102 = vunpack.c.l.s4 1983009808
    %v2103 = vunpack.c.0.s8 %v2102
    %v2104 = vlaneseq
    %v2105 = vshrl.u32 %v2104, 7
    %v2106 = vsub.s32 %v2103, %v2105
    %v2107 = vrot.slane %v2093, %v2106
    %v2108 = vcombine.high %v2100, %v2100
    %v2109 = vcombine.high %v2107, %v2107
    %v2110 = vcombine.high %v2088, %v2088
    %v2112 = vunpack.c.l.s4 1983009808
    %v2113 = vunpack.c.0.s8 %v2112
    %v2114 = vlaneseq
    %v2115 = vshrl.u32 %v2114, 7
    %v2116 = vsub.s32 %v2113, %v2115
    %v2117 = vrot.slane %v2088, %v2116
    %v2119 = vunpack.c.l.s4 1983009808
    %v2120 = vunpack.c.0.s8 %v2119
    %v2121 = vlaneseq
    %v2122 = vshrl.u32 %v2121, 7
    %v2123 = vsub.s32 %v2120, %v2122
    %v2124 = vrot.slane %v2110, %v2123
    %v2125 = vcombine.high %v2117, %v2117
    %v2126 = vcombine.high %v2124, %v2124
    %v2128 = vunpack.c.l.s4 1983009808
    %v2129 = vunpack.c.0.s8 %v2128
    %v2130 = vlaneseq
    %v2131 = vshrl.u32 %v2130, 7
    %v2132 = vsub.s32 %v2129, %v2131
    %v2133 = vrot.slane %v2089, %v2132
    %v2134 = vcombine.high %v2133, %v2133
    %v2145 = vpack.c.bf16 %v2100, %v2100
    %v2146 = vpack.c.bf16 %v2108, %v2108
    %v2147 = vpack.c.bf16 %v2107, %v2107
    %v2148 = vpack.c.bf16 %v2109, %v2109
    %v2149 = vpack.c.bf16 %v2117, %v2117
    %v2150 = vpack.c.bf16 %v2125, %v2125
    %v2151 = vpack.c.bf16 %v2124, %v2124
    %v2152 = vpack.c.bf16 %v2126, %v2126
    %v2153 = vpack.c.bf16 %v2133, %v2133
    %v2154 = vpack.c.bf16 %v2134, %v2134
    %2155 = vmatprep.subr.bf16.mxu0 %v744
    %2156 = vmatpush1.bf16.msra.mxu0 %v743
    %2157 = vmatprep.subr.bf16.mxu0 %v746
    %2158 = vmatpush1.bf16.msra.mxu0 %v745
    %2159 = vmatprep.subr.bf16.mxu0 %v748
    %2160 = vmatpush1.bf16.msra.mxu0 %v747
    %2161 = vmatprep.subr.bf16.mxu0 %v750
    %2162 = vmatpush1.bf16.msra.mxu0 %v749
    %2163 = vmatprep.subr.bf16.mxu0 %v752
    %2164 = vmatpush1.bf16.msra.mxu0 %v751
    %2165 = vmatprep.subr.bf16.mxu0 %v754
    %2166 = vmatpush1.bf16.msra.mxu0 %v753
    %2167 = vmatprep.subr.bf16.mxu0 %v756
    %2168 = vmatpush1.bf16.msra.mxu0 %v755
    %2169 = vmatprep.subr.bf16.mxu0 %v758
    %2170 = vmatpush1.bf16.msra.mxu0 %v757
    %2171 = vmatprep.subr.bf16.mxu0 %v760
    %2172 = vmatpush1.bf16.msra.mxu0 %v759
    %2173 = vmatprep.subr.bf16.mxu0 %v762
    %2174 = vmatpush1.bf16.msra.mxu0 %v761
    %2175 = vmatprep.subr.bf16.mxu0 %v764
    %2176 = vmatpush1.bf16.msra.mxu0 %v763
    %2177 = vmatprep.subr.bf16.mxu0 %v766
    %2178 = vmatpush1.bf16.msra.mxu0 %v765
    %2179 = vmatprep.subr.bf16.mxu0 %v768
    %2180 = vmatpush1.bf16.msra.mxu0 %v767
    %2181 = vmatprep.subr.bf16.mxu0 %v770
    %2182 = vmatpush1.bf16.msra.mxu0 %v769
    %2183 = vmatprep.subr.bf16.mxu0 %v772
    %2184 = vmatpush1.bf16.msra.mxu0 %v771
    %2185 = vmatprep.subr.bf16.mxu0 %v774
    %2186 = vmatpush1.bf16.msra.mxu0 %v773
    %2187 = vmatprep.mubr.bf16.mxu0 %v2146
    %2188 = vmatmul.mubr.bf16.gmra.mrb[0].mxu0 %v2145
    %v2189 = vpop.f32.mrb[0].mxu0
    %v2190 = vadd.f32 %v190, %v2189
    %v2191 = vpop.f32.mrb[0].mxu0
    %v2192 = vadd.f32 %v194, %v2191
    %v2193 = vpop.f32.mrb[0].mxu0
    %v2194 = vpop.f32.mrb[0].mxu0
    %2195 = vdwg.mxu0
    %2196 = vmatprep.subr.bf16.mxu0 %v776
    %2197 = vmatpush1.bf16.msra.mxu0 %v775
    %2198 = vmatprep.subr.bf16.mxu0 %v778
    %2199 = vmatpush1.bf16.msra.mxu0 %v777
    %2200 = vmatprep.subr.bf16.mxu0 %v780
    %2201 = vmatpush1.bf16.msra.mxu0 %v779
    %2202 = vmatprep.subr.bf16.mxu0 %v782
    %2203 = vmatpush1.bf16.msra.mxu0 %v781
    %2204 = vmatprep.subr.bf16.mxu0 %v784
    %2205 = vmatpush1.bf16.msra.mxu0 %v783
    %2206 = vmatprep.subr.bf16.mxu0 %v786
    %2207 = vmatpush1.bf16.msra.mxu0 %v785
    %2208 = vmatprep.subr.bf16.mxu0 %v788
    %2209 = vmatpush1.bf16.msra.mxu0 %v787
    %2210 = vmatprep.subr.bf16.mxu0 %v790
    %2211 = vmatpush1.bf16.msra.mxu0 %v789
    %2212 = vmatprep.subr.bf16.mxu0 %v792
    %2213 = vmatpush1.bf16.msra.mxu0 %v791
    %2214 = vmatprep.subr.bf16.mxu0 %v794
    %2215 = vmatpush1.bf16.msra.mxu0 %v793
    %2216 = vmatprep.subr.bf16.mxu0 %v796
    %2217 = vmatpush1.bf16.msra.mxu0 %v795
    %2218 = vmatprep.subr.bf16.mxu0 %v798
    %2219 = vmatpush1.bf16.msra.mxu0 %v797
    %2220 = vmatprep.subr.bf16.mxu0 %v800
    %2221 = vmatpush1.bf16.msra.mxu0 %v799
    %2222 = vmatprep.subr.bf16.mxu0 %v802
    %2223 = vmatpush1.bf16.msra.mxu0 %v801
    %2224 = vmatprep.subr.bf16.mxu0 %v804
    %2225 = vmatpush1.bf16.msra.mxu0 %v803
    %2226 = vmatprep.subr.bf16.mxu0 %v806
    %2227 = vmatpush1.bf16.msra.mxu0 %v805
    %2228 = vmatprep.mubr.bf16.mxu0 %v2148
    %2229 = vmatmul.mubr.bf16.gmra.mrb[0].mxu0 %v2147
    %v2230 = vpop.f32.mrb[0].mxu0
    %v2231 = vadd.f32 %v2190, %v2230
    %v2232 = vpop.f32.mrb[0].mxu0
    %v2233 = vadd.f32 %v2192, %v2232
    %v2234 = vpop.f32.mrb[0].mxu0
    %v2235 = vpop.f32.mrb[0].mxu0
    %2236 = vdwg.mxu0
    %2237 = vmatprep.subr.bf16.mxu0 %v808
    %2238 = vmatpush1.bf16.msra.mxu0 %v807
    %2239 = vmatprep.subr.bf16.mxu0 %v810
    %2240 = vmatpush1.bf16.msra.mxu0 %v809
    %2241 = vmatprep.subr.bf16.mxu0 %v812
    %2242 = vmatpush1.bf16.msra.mxu0 %v811
    %2243 = vmatprep.subr.bf16.mxu0 %v814
    %2244 = vmatpush1.bf16.msra.mxu0 %v813
    %2245 = vmatprep.subr.bf16.mxu0 %v816
    %2246 = vmatpush1.bf16.msra.mxu0 %v815
    %2247 = vmatprep.subr.bf16.mxu0 %v818
    %2248 = vmatpush1.bf16.msra.mxu0 %v817
    %2249 = vmatprep.subr.bf16.mxu0 %v820
    %2250 = vmatpush1.bf16.msra.mxu0 %v819
    %2251 = vmatprep.subr.bf16.mxu0 %v822
    %2252 = vmatpush1.bf16.msra.mxu0 %v821
    %2253 = vmatprep.subr.bf16.mxu0 %v824
    %2254 = vmatpush1.bf16.msra.mxu0 %v823
    %2255 = vmatprep.subr.bf16.mxu0 %v826
    %2256 = vmatpush1.bf16.msra.mxu0 %v825
    %2257 = vmatprep.subr.bf16.mxu0 %v828
    %2258 = vmatpush1.bf16.msra.mxu0 %v827
    %2259 = vmatprep.subr.bf16.mxu0 %v830
    %2260 = vmatpush1.bf16.msra.mxu0 %v829
    %2261 = vmatprep.subr.bf16.mxu0 %v832
    %2262 = vmatpush1.bf16.msra.mxu0 %v831
    %2263 = vmatprep.subr.bf16.mxu0 %v834
    %2264 = vmatpush1.bf16.msra.mxu0 %v833
    %2265 = vmatprep.subr.bf16.mxu0 %v836
    %2266 = vmatpush1.bf16.msra.mxu0 %v835
    %2267 = vmatprep.subr.bf16.mxu0 %v838
    %2268 = vmatpush1.bf16.msra.mxu0 %v837
    %2269 = vmatprep.mubr.bf16.mxu0 %v2150
    %2270 = vmatmul.mubr.bf16.gmra.mrb[0].mxu0 %v2149
    %v2271 = vpop.f32.mrb[0].mxu0
    %v2272 = vadd.f32 %v2231, %v2271
    %v2273 = vpop.f32.mrb[0].mxu0
    %v2274 = vadd.f32 %v2233, %v2273
    %v2275 = vpop.f32.mrb[0].mxu0
    %v2276 = vpop.f32.mrb[0].mxu0
    %2277 = vdwg.mxu0
    %2278 = vmatprep.subr.bf16.mxu0 %v840
    %2279 = vmatpush1.bf16.msra.mxu0 %v839
    %2280 = vmatprep.subr.bf16.mxu0 %v842
    %2281 = vmatpush1.bf16.msra.mxu0 %v841
    %2282 = vmatprep.subr.bf16.mxu0 %v844
    %2283 = vmatpush1.bf16.msra.mxu0 %v843
    %2284 = vmatprep.subr.bf16.mxu0 %v846
    %2285 = vmatpush1.bf16.msra.mxu0 %v845
    %2286 = vmatprep.subr.bf16.mxu0 %v848
    %2287 = vmatpush1.bf16.msra.mxu0 %v847
    %2288 = vmatprep.subr.bf16.mxu0 %v850
    %2289 = vmatpush1.bf16.msra.mxu0 %v849
    %2290 = vmatprep.subr.bf16.mxu0 %v852
    %2291 = vmatpush1.bf16.msra.mxu0 %v851
    %2292 = vmatprep.subr.bf16.mxu0 %v854
    %2293 = vmatpush1.bf16.msra.mxu0 %v853
    %2294 = vmatprep.subr.bf16.mxu0 %v856
    %2295 = vmatpush1.bf16.msra.mxu0 %v855
    %2296 = vmatprep.subr.bf16.mxu0 %v858
    %2297 = vmatpush1.bf16.msra.mxu0 %v857
    %2298 = vmatprep.subr.bf16.mxu0 %v860
    %2299 = vmatpush1.bf16.msra.mxu0 %v859
    %2300 = vmatprep.subr.bf16.mxu0 %v862
    %2301 = vmatpush1.bf16.msra.mxu0 %v861
    %2302 = vmatprep.subr.bf16.mxu0 %v864
    %2303 = vmatpush1.bf16.msra.mxu0 %v863
    %2304 = vmatprep.subr.bf16.mxu0 %v866
    %2305 = vmatpush1.bf16.msra.mxu0 %v865
    %2306 = vmatprep.subr.bf16.mxu0 %v868
    %2307 = vmatpush1.bf16.msra.mxu0 %v867
    %2308 = vmatprep.subr.bf16.mxu0 %v870
    %2309 = vmatpush1.bf16.msra.mxu0 %v869
    %2310 = vmatprep.mubr.bf16.mxu0 %v2152
    %2311 = vmatmul.mubr.bf16.gmra.mrb[0].mxu0 %v2151
    %v2312 = vpop.f32.mrb[0].mxu0
    %v2313 = vadd.f32 %v2272, %v2312
    %v2314 = vpop.f32.mrb[0].mxu0
    %v2315 = vadd.f32 %v2274, %v2314
    %v2316 = vpop.f32.mrb[0].mxu0
    %v2317 = vpop.f32.mrb[0].mxu0
    %2318 = vdwg.mxu0
    %2319 = vmatprep.subr.bf16.mxu0 %v872
    %2320 = vmatpush1.bf16.msra.mxu0 %v871
    %2321 = vmatprep.subr.bf16.mxu0 %v874
    %2322 = vmatpush1.bf16.msra.mxu0 %v873
    %2323 = vmatprep.subr.bf16.mxu0 %v876
    %2324 = vmatpush1.bf16.msra.mxu0 %v875
    %2325 = vmatprep.subr.bf16.mxu0 %v878
    %2326 = vmatpush1.bf16.msra.mxu0 %v877
    %2327 = vmatprep.subr.bf16.mxu0 %v880
    %2328 = vmatpush1.bf16.msra.mxu0 %v879
    %2329 = vmatprep.subr.bf16.mxu0 %v882
    %2330 = vmatpush1.bf16.msra.mxu0 %v881
    %2331 = vmatprep.subr.bf16.mxu0 %v884
    %2332 = vmatpush1.bf16.msra.mxu0 %v883
    %2333 = vmatprep.subr.bf16.mxu0 %v886
    %2334 = vmatpush1.bf16.msra.mxu0 %v885
    %2335 = vmatprep.subr.bf16.mxu0 %v888
    %2336 = vmatpush1.bf16.msra.mxu0 %v887
    %2337 = vmatprep.subr.bf16.mxu0 %v890
    %2338 = vmatpush1.bf16.msra.mxu0 %v889
    %2339 = vmatprep.subr.bf16.mxu0 %v892
    %2340 = vmatpush1.bf16.msra.mxu0 %v891
    %2341 = vmatprep.subr.bf16.mxu0 %v894
    %2342 = vmatpush1.bf16.msra.mxu0 %v893
    %2343 = vmatprep.subr.bf16.mxu0 %v896
    %2344 = vmatpush1.bf16.msra.mxu0 %v895
    %2345 = vmatprep.subr.bf16.mxu0 %v898
    %2346 = vmatpush1.bf16.msra.mxu0 %v897
    %2347 = vmatprep.subr.bf16.mxu0 %v900
    %2348 = vmatpush1.bf16.msra.mxu0 %v899
    %2349 = vmatprep.subr.bf16.mxu0 %v902
    %2350 = vmatpush1.bf16.msra.mxu0 %v901
    %2351 = vmatprep.mubr.bf16.mxu0 %v2154
    %2352 = vmatmul.mubr.bf16.gmra.mrb[0].mxu0 %v2153
    %v2353 = vpop.f32.mrb[0].mxu0
    %v2354 = vadd.f32 %v2313, %v2353
    %v2355 = vpop.f32.mrb[0].mxu0
    %v2356 = vadd.f32 %v2315, %v2355
    %v2357 = vpop.f32.mrb[0].mxu0
    %v2358 = vpop.f32.mrb[0].mxu0
    %2359 = vdwg.mxu0
    %v2360 = vld [vmem:[%s0 + $0x64] sm:$0xff]
    %v2361 = vld [vmem:[%s0 + $0x6c] sm:$0xff]
    %v2362 = vld [vmem:[%s0 + $0x74] sm:$0xf]
    %v2366 = vcombine.high %v2360, %v2360
    %v2368 = vunpack.c.l.s4 1983009808
    %v2369 = vunpack.c.0.s8 %v2368
    %v2370 = vlaneseq
    %v2371 = vshrl.u32 %v2370, 7
    %v2372 = vsub.s32 %v2369, %v2371
    %v2373 = vrot.slane %v2360, %v2372
    %v2375 = vunpack.c.l.s4 1983009808
    %v2376 = vunpack.c.0.s8 %v2375
    %v2377 = vlaneseq
    %v2378 = vshrl.u32 %v2377, 7
    %v2379 = vsub.s32 %v2376, %v2378
    %v2380 = vrot.slane %v2366, %v2379
    %v2381 = vcombine.high %v2373, %v2373
    %v2382 = vcombine.high %v2380, %v2380
    %v2383 = vcombine.high %v2361, %v2361
    %v2385 = vunpack.c.l.s4 1983009808
    %v2386 = vunpack.c.0.s8 %v2385
    %v2387 = vlaneseq
    %v2388 = vshrl.u32 %v2387, 7
    %v2389 = vsub.s32 %v2386, %v2388
    %v2390 = vrot.slane %v2361, %v2389
    %v2392 = vunpack.c.l.s4 1983009808
    %v2393 = vunpack.c.0.s8 %v2392
    %v2394 = vlaneseq
    %v2395 = vshrl.u32 %v2394, 7
    %v2396 = vsub.s32 %v2393, %v2395
    %v2397 = vrot.slane %v2383, %v2396
    %v2398 = vcombine.high %v2390, %v2390
    %v2399 = vcombine.high %v2397, %v2397
    %v2401 = vunpack.c.l.s4 1983009808
    %v2402 = vunpack.c.0.s8 %v2401
    %v2403 = vlaneseq
    %v2404 = vshrl.u32 %v2403, 7
    %v2405 = vsub.s32 %v2402, %v2404
    %v2406 = vrot.slane %v2362, %v2405
    %v2407 = vcombine.high %v2406, %v2406
    %v2418 = vpack.c.bf16 %v2373, %v2373
    %v2419 = vpack.c.bf16 %v2381, %v2381
    %v2420 = vpack.c.bf16 %v2380, %v2380
    %v2421 = vpack.c.bf16 %v2382, %v2382
    %v2422 = vpack.c.bf16 %v2390, %v2390
    %v2423 = vpack.c.bf16 %v2398, %v2398
    %v2424 = vpack.c.bf16 %v2397, %v2397
    %v2425 = vpack.c.bf16 %v2399, %v2399
    %v2426 = vpack.c.bf16 %v2406, %v2406
    %v2427 = vpack.c.bf16 %v2407, %v2407
    %2428 = vmatprep.subr.bf16.mxu0 %v744
    %2429 = vmatpush1.bf16.msra.mxu0 %v743
    %2430 = vmatprep.subr.bf16.mxu0 %v746
    %2431 = vmatpush1.bf16.msra.mxu0 %v745
    %2432 = vmatprep.subr.bf16.mxu0 %v748
    %2433 = vmatpush1.bf16.msra.mxu0 %v747
    %2434 = vmatprep.subr.bf16.mxu0 %v750
    %2435 = vmatpush1.bf16.msra.mxu0 %v749
    %2436 = vmatprep.subr.bf16.mxu0 %v752
    %2437 = vmatpush1.bf16.msra.mxu0 %v751
    %2438 = vmatprep.subr.bf16.mxu0 %v754
    %2439 = vmatpush1.bf16.msra.mxu0 %v753
    %2440 = vmatprep.subr.bf16.mxu0 %v756
    %2441 = vmatpush1.bf16.msra.mxu0 %v755
    %2442 = vmatprep.subr.bf16.mxu0 %v758
    %2443 = vmatpush1.bf16.msra.mxu0 %v757
    %2444 = vmatprep.subr.bf16.mxu0 %v760
    %2445 = vmatpush1.bf16.msra.mxu0 %v759
    %2446 = vmatprep.subr.bf16.mxu0 %v762
    %2447 = vmatpush1.bf16.msra.mxu0 %v761
    %2448 = vmatprep.subr.bf16.mxu0 %v764
    %2449 = vmatpush1.bf16.msra.mxu0 %v763
    %2450 = vmatprep.subr.bf16.mxu0 %v766
    %2451 = vmatpush1.bf16.msra.mxu0 %v765
    %2452 = vmatprep.subr.bf16.mxu0 %v768
    %2453 = vmatpush1.bf16.msra.mxu0 %v767
    %2454 = vmatprep.subr.bf16.mxu0 %v770
    %2455 = vmatpush1.bf16.msra.mxu0 %v769
    %2456 = vmatprep.subr.bf16.mxu0 %v772
    %2457 = vmatpush1.bf16.msra.mxu0 %v771
    %2458 = vmatprep.subr.bf16.mxu0 %v774
    %2459 = vmatpush1.bf16.msra.mxu0 %v773
    %2460 = vmatprep.mubr.bf16.mxu0 %v2419
    %2461 = vmatmul.mubr.bf16.gmra.mrb[0].mxu0 %v2418
    %v2462 = vpop.f32.mrb[0].mxu0
    %v2463 = vadd.f32 %v190, %v2462
    %v2464 = vpop.f32.mrb[0].mxu0
    %v2465 = vadd.f32 %v194, %v2464
    %v2466 = vpop.f32.mrb[0].mxu0
    %v2467 = vpop.f32.mrb[0].mxu0
    %2468 = vdwg.mxu0
    %2469 = vmatprep.subr.bf16.mxu0 %v776
    %2470 = vmatpush1.bf16.msra.mxu0 %v775
    %2471 = vmatprep.subr.bf16.mxu0 %v778
    %2472 = vmatpush1.bf16.msra.mxu0 %v777
    %2473 = vmatprep.subr.bf16.mxu0 %v780
    %2474 = vmatpush1.bf16.msra.mxu0 %v779
    %2475 = vmatprep.subr.bf16.mxu0 %v782
    %2476 = vmatpush1.bf16.msra.mxu0 %v781
    %2477 = vmatprep.subr.bf16.mxu0 %v784
    %2478 = vmatpush1.bf16.msra.mxu0 %v783
    %2479 = vmatprep.subr.bf16.mxu0 %v786
    %2480 = vmatpush1.bf16.msra.mxu0 %v785
    %2481 = vmatprep.subr.bf16.mxu0 %v788
    %2482 = vmatpush1.bf16.msra.mxu0 %v787
    %2483 = vmatprep.subr.bf16.mxu0 %v790
    %2484 = vmatpush1.bf16.msra.mxu0 %v789
    %2485 = vmatprep.subr.bf16.mxu0 %v792
    %2486 = vmatpush1.bf16.msra.mxu0 %v791
    %2487 = vmatprep.subr.bf16.mxu0 %v794
    %2488 = vmatpush1.bf16.msra.mxu0 %v793
    %2489 = vmatprep.subr.bf16.mxu0 %v796
    %2490 = vmatpush1.bf16.msra.mxu0 %v795
    %2491 = vmatprep.subr.bf16.mxu0 %v798
    %2492 = vmatpush1.bf16.msra.mxu0 %v797
    %2493 = vmatprep.subr.bf16.mxu0 %v800
    %2494 = vmatpush1.bf16.msra.mxu0 %v799
    %2495 = vmatprep.subr.bf16.mxu0 %v802
    %2496 = vmatpush1.bf16.msra.mxu0 %v801
    %2497 = vmatprep.subr.bf16.mxu0 %v804
    %2498 = vmatpush1.bf16.msra.mxu0 %v803
    %2499 = vmatprep.subr.bf16.mxu0 %v806
    %2500 = vmatpush1.bf16.msra.mxu0 %v805
    %2501 = vmatprep.mubr.bf16.mxu0 %v2421
    %2502 = vmatmul.mubr.bf16.gmra.mrb[0].mxu0 %v2420
    %v2503 = vpop.f32.mrb[0].mxu0
    %v2504 = vadd.f32 %v2463, %v2503
    %v2505 = vpop.f32.mrb[0].mxu0
    %v2506 = vadd.f32 %v2465, %v2505
    %v2507 = vpop.f32.mrb[0].mxu0
    %v2508 = vpop.f32.mrb[0].mxu0
    %2509 = vdwg.mxu0
    %2510 = vmatprep.subr.bf16.mxu0 %v808
    %2511 = vmatpush1.bf16.msra.mxu0 %v807
    %2512 = vmatprep.subr.bf16.mxu0 %v810
    %2513 = vmatpush1.bf16.msra.mxu0 %v809
    %2514 = vmatprep.subr.bf16.mxu0 %v812
    %2515 = vmatpush1.bf16.msra.mxu0 %v811
    %2516 = vmatprep.subr.bf16.mxu0 %v814
    %2517 = vmatpush1.bf16.msra.mxu0 %v813
    %2518 = vmatprep.subr.bf16.mxu0 %v816
    %2519 = vmatpush1.bf16.msra.mxu0 %v815
    %2520 = vmatprep.subr.bf16.mxu0 %v818
    %2521 = vmatpush1.bf16.msra.mxu0 %v817
    %2522 = vmatprep.subr.bf16.mxu0 %v820
    %2523 = vmatpush1.bf16.msra.mxu0 %v819
    %2524 = vmatprep.subr.bf16.mxu0 %v822
    %2525 = vmatpush1.bf16.msra.mxu0 %v821
    %2526 = vmatprep.subr.bf16.mxu0 %v824
    %2527 = vmatpush1.bf16.msra.mxu0 %v823
    %2528 = vmatprep.subr.bf16.mxu0 %v826
    %2529 = vmatpush1.bf16.msra.mxu0 %v825
    %2530 = vmatprep.subr.bf16.mxu0 %v828
    %2531 = vmatpush1.bf16.msra.mxu0 %v827
    %2532 = vmatprep.subr.bf16.mxu0 %v830
    %2533 = vmatpush1.bf16.msra.mxu0 %v829
    %2534 = vmatprep.subr.bf16.mxu0 %v832
    %2535 = vmatpush1.bf16.msra.mxu0 %v831
    %2536 = vmatprep.subr.bf16.mxu0 %v834
    %2537 = vmatpush1.bf16.msra.mxu0 %v833
    %2538 = vmatprep.subr.bf16.mxu0 %v836
    %2539 = vmatpush1.bf16.msra.mxu0 %v835
    %2540 = vmatprep.subr.bf16.mxu0 %v838
    %2541 = vmatpush1.bf16.msra.mxu0 %v837
    %2542 = vmatprep.mubr.bf16.mxu0 %v2423
    %2543 = vmatmul.mubr.bf16.gmra.mrb[0].mxu0 %v2422
    %v2544 = vpop.f32.mrb[0].mxu0
    %v2545 = vadd.f32 %v2504, %v2544
    %v2546 = vpop.f32.mrb[0].mxu0
    %v2547 = vadd.f32 %v2506, %v2546
    %v2548 = vpop.f32.mrb[0].mxu0
    %v2549 = vpop.f32.mrb[0].mxu0
    %2550 = vdwg.mxu0
    %2551 = vmatprep.subr.bf16.mxu0 %v840
    %2552 = vmatpush1.bf16.msra.mxu0 %v839
    %2553 = vmatprep.subr.bf16.mxu0 %v842
    %2554 = vmatpush1.bf16.msra.mxu0 %v841
    %2555 = vmatprep.subr.bf16.mxu0 %v844
    %2556 = vmatpush1.bf16.msra.mxu0 %v843
    %2557 = vmatprep.subr.bf16.mxu0 %v846
    %2558 = vmatpush1.bf16.msra.mxu0 %v845
    %2559 = vmatprep.subr.bf16.mxu0 %v848
    %2560 = vmatpush1.bf16.msra.mxu0 %v847
    %2561 = vmatprep.subr.bf16.mxu0 %v850
    %2562 = vmatpush1.bf16.msra.mxu0 %v849
    %2563 = vmatprep.subr.bf16.mxu0 %v852
    %2564 = vmatpush1.bf16.msra.mxu0 %v851
    %2565 = vmatprep.subr.bf16.mxu0 %v854
    %2566 = vmatpush1.bf16.msra.mxu0 %v853
    %2567 = vmatprep.subr.bf16.mxu0 %v856
    %2568 = vmatpush1.bf16.msra.mxu0 %v855
    %2569 = vmatprep.subr.bf16.mxu0 %v858
    %2570 = vmatpush1.bf16.msra.mxu0 %v857
    %2571 = vmatprep.subr.bf16.mxu0 %v860
    %2572 = vmatpush1.bf16.msra.mxu0 %v859
    %2573 = vmatprep.subr.bf16.mxu0 %v862
    %2574 = vmatpush1.bf16.msra.mxu0 %v861
    %2575 = vmatprep.subr.bf16.mxu0 %v864
    %2576 = vmatpush1.bf16.msra.mxu0 %v863
    %2577 = vmatprep.subr.bf16.mxu0 %v866
    %2578 = vmatpush1.bf16.msra.mxu0 %v865
    %2579 = vmatprep.subr.bf16.mxu0 %v868
    %2580 = vmatpush1.bf16.msra.mxu0 %v867
    %2581 = vmatprep.subr.bf16.mxu0 %v870
    %2582 = vmatpush1.bf16.msra.mxu0 %v869
    %2583 = vmatprep.mubr.bf16.mxu0 %v2425
    %2584 = vmatmul.mubr.bf16.gmra.mrb[0].mxu0 %v2424
    %v2585 = vpop.f32.mrb[0].mxu0
    %v2586 = vadd.f32 %v2545, %v2585
    %v2587 = vpop.f32.mrb[0].mxu0
    %v2588 = vadd.f32 %v2547, %v2587
    %v2589 = vpop.f32.mrb[0].mxu0
    %v2590 = vpop.f32.mrb[0].mxu0
    %2591 = vdwg.mxu0
    %2592 = vmatprep.subr.bf16.mxu0 %v872
    %2593 = vmatpush1.bf16.msra.mxu0 %v871
    %2594 = vmatprep.subr.bf16.mxu0 %v874
    %2595 = vmatpush1.bf16.msra.mxu0 %v873
    %2596 = vmatprep.subr.bf16.mxu0 %v876
    %2597 = vmatpush1.bf16.msra.mxu0 %v875
    %2598 = vmatprep.subr.bf16.mxu0 %v878
    %2599 = vmatpush1.bf16.msra.mxu0 %v877
    %2600 = vmatprep.subr.bf16.mxu0 %v880
    %2601 = vmatpush1.bf16.msra.mxu0 %v879
    %2602 = vmatprep.subr.bf16.mxu0 %v882
    %2603 = vmatpush1.bf16.msra.mxu0 %v881
    %2604 = vmatprep.subr.bf16.mxu0 %v884
    %2605 = vmatpush1.bf16.msra.mxu0 %v883
    %2606 = vmatprep.subr.bf16.mxu0 %v886
    %2607 = vmatpush1.bf16.msra.mxu0 %v885
    %2608 = vmatprep.subr.bf16.mxu0 %v888
    %2609 = vmatpush1.bf16.msra.mxu0 %v887
    %2610 = vmatprep.subr.bf16.mxu0 %v890
    %2611 = vmatpush1.bf16.msra.mxu0 %v889
    %2612 = vmatprep.subr.bf16.mxu0 %v892
    %2613 = vmatpush1.bf16.msra.mxu0 %v891
    %2614 = vmatprep.subr.bf16.mxu0 %v894
    %2615 = vmatpush1.bf16.msra.mxu0 %v893
    %2616 = vmatprep.subr.bf16.mxu0 %v896
    %2617 = vmatpush1.bf16.msra.mxu0 %v895
    %2618 = vmatprep.subr.bf16.mxu0 %v898
    %2619 = vmatpush1.bf16.msra.mxu0 %v897
    %2620 = vmatprep.subr.bf16.mxu0 %v900
    %2621 = vmatpush1.bf16.msra.mxu0 %v899
    %2622 = vmatprep.subr.bf16.mxu0 %v902
    %2623 = vmatpush1.bf16.msra.mxu0 %v901
    %2624 = vmatprep.mubr.bf16.mxu0 %v2427
    %2625 = vmatmul.mubr.bf16.gmra.mrb[0].mxu0 %v2426
    %v2626 = vpop.f32.mrb[0].mxu0
    %v2627 = vadd.f32 %v2586, %v2626
    %v2628 = vpop.f32.mrb[0].mxu0
    %v2629 = vadd.f32 %v2588, %v2628
    %v2630 = vpop.f32.mrb[0].mxu0
    %v2631 = vpop.f32.mrb[0].mxu0
    %2632 = vdwg.mxu0
    %v2633 = vld [vmem:[%s0 + $0x78] sm:$0xff]
    %v2634 = vld [vmem:[%s0 + $0x80] sm:$0xff]
    %v2635 = vld [vmem:[%s0 + $0x88] sm:$0xf]
    %v2639 = vcombine.high %v2633, %v2633
    %v2641 = vunpack.c.l.s4 1983009808
    %v2642 = vunpack.c.0.s8 %v2641
    %v2643 = vlaneseq
    %v2644 = vshrl.u32 %v2643, 7
    %v2645 = vsub.s32 %v2642, %v2644
    %v2646 = vrot.slane %v2633, %v2645
    %v2648 = vunpack.c.l.s4 1983009808
    %v2649 = vunpack.c.0.s8 %v2648
    %v2650 = vlaneseq
    %v2651 = vshrl.u32 %v2650, 7
    %v2652 = vsub.s32 %v2649, %v2651
    %v2653 = vrot.slane %v2639, %v2652
    %v2654 = vcombine.high %v2646, %v2646
    %v2655 = vcombine.high %v2653, %v2653
    %v2656 = vcombine.high %v2634, %v2634
    %v2658 = vunpack.c.l.s4 1983009808
    %v2659 = vunpack.c.0.s8 %v2658
    %v2660 = vlaneseq
    %v2661 = vshrl.u32 %v2660, 7
    %v2662 = vsub.s32 %v2659, %v2661
    %v2663 = vrot.slane %v2634, %v2662
    %v2665 = vunpack.c.l.s4 1983009808
    %v2666 = vunpack.c.0.s8 %v2665
    %v2667 = vlaneseq
    %v2668 = vshrl.u32 %v2667, 7
    %v2669 = vsub.s32 %v2666, %v2668
    %v2670 = vrot.slane %v2656, %v2669
    %v2671 = vcombine.high %v2663, %v2663
    %v2672 = vcombine.high %v2670, %v2670
    %v2674 = vunpack.c.l.s4 1983009808
    %v2675 = vunpack.c.0.s8 %v2674
    %v2676 = vlaneseq
    %v2677 = vshrl.u32 %v2676, 7
    %v2678 = vsub.s32 %v2675, %v2677
    %v2679 = vrot.slane %v2635, %v2678
    %v2680 = vcombine.high %v2679, %v2679
    %v2691 = vpack.c.bf16 %v2646, %v2646
    %v2692 = vpack.c.bf16 %v2654, %v2654
    %v2693 = vpack.c.bf16 %v2653, %v2653
    %v2694 = vpack.c.bf16 %v2655, %v2655
    %v2695 = vpack.c.bf16 %v2663, %v2663
    %v2696 = vpack.c.bf16 %v2671, %v2671
    %v2697 = vpack.c.bf16 %v2670, %v2670
    %v2698 = vpack.c.bf16 %v2672, %v2672
    %v2699 = vpack.c.bf16 %v2679, %v2679
    %v2700 = vpack.c.bf16 %v2680, %v2680
    %2701 = vmatprep.subr.bf16.mxu0 %v744
    %2702 = vmatpush1.bf16.msra.mxu0 %v743
    %2703 = vmatprep.subr.bf16.mxu0 %v746
    %2704 = vmatpush1.bf16.msra.mxu0 %v745
    %2705 = vmatprep.subr.bf16.mxu0 %v748
    %2706 = vmatpush1.bf16.msra.mxu0 %v747
    %2707 = vmatprep.subr.bf16.mxu0 %v750
    %2708 = vmatpush1.bf16.msra.mxu0 %v749
    %2709 = vmatprep.subr.bf16.mxu0 %v752
    %2710 = vmatpush1.bf16.msra.mxu0 %v751
    %2711 = vmatprep.subr.bf16.mxu0 %v754
    %2712 = vmatpush1.bf16.msra.mxu0 %v753
    %2713 = vmatprep.subr.bf16.mxu0 %v756
    %2714 = vmatpush1.bf16.msra.mxu0 %v755
    %2715 = vmatprep.subr.bf16.mxu0 %v758
    %2716 = vmatpush1.bf16.msra.mxu0 %v757
    %2717 = vmatprep.subr.bf16.mxu0 %v760
    %2718 = vmatpush1.bf16.msra.mxu0 %v759
    %2719 = vmatprep.subr.bf16.mxu0 %v762
    %2720 = vmatpush1.bf16.msra.mxu0 %v761
    %2721 = vmatprep.subr.bf16.mxu0 %v764
    %2722 = vmatpush1.bf16.msra.mxu0 %v763
    %2723 = vmatprep.subr.bf16.mxu0 %v766
    %2724 = vmatpush1.bf16.msra.mxu0 %v765
    %2725 = vmatprep.subr.bf16.mxu0 %v768
    %2726 = vmatpush1.bf16.msra.mxu0 %v767
    %2727 = vmatprep.subr.bf16.mxu0 %v770
    %2728 = vmatpush1.bf16.msra.mxu0 %v769
    %2729 = vmatprep.subr.bf16.mxu0 %v772
    %2730 = vmatpush1.bf16.msra.mxu0 %v771
    %2731 = vmatprep.subr.bf16.mxu0 %v774
    %2732 = vmatpush1.bf16.msra.mxu0 %v773
    %2733 = vmatprep.mubr.bf16.mxu0 %v2692
    %2734 = vmatmul.mubr.bf16.gmra.mrb[0].mxu0 %v2691
    %v2735 = vpop.f32.mrb[0].mxu0
    %v2736 = vadd.f32 %v190, %v2735
    %v2737 = vpop.f32.mrb[0].mxu0
    %v2738 = vadd.f32 %v194, %v2737
    %v2739 = vpop.f32.mrb[0].mxu0
    %v2740 = vpop.f32.mrb[0].mxu0
    %2741 = vdwg.mxu0
    %2742 = vmatprep.subr.bf16.mxu0 %v776
    %2743 = vmatpush1.bf16.msra.mxu0 %v775
    %2744 = vmatprep.subr.bf16.mxu0 %v778
    %2745 = vmatpush1.bf16.msra.mxu0 %v777
    %2746 = vmatprep.subr.bf16.mxu0 %v780
    %2747 = vmatpush1.bf16.msra.mxu0 %v779
    %2748 = vmatprep.subr.bf16.mxu0 %v782
    %2749 = vmatpush1.bf16.msra.mxu0 %v781
    %2750 = vmatprep.subr.bf16.mxu0 %v784
    %2751 = vmatpush1.bf16.msra.mxu0 %v783
    %2752 = vmatprep.subr.bf16.mxu0 %v786
    %2753 = vmatpush1.bf16.msra.mxu0 %v785
    %2754 = vmatprep.subr.bf16.mxu0 %v788
    %2755 = vmatpush1.bf16.msra.mxu0 %v787
    %2756 = vmatprep.subr.bf16.mxu0 %v790
    %2757 = vmatpush1.bf16.msra.mxu0 %v789
    %2758 = vmatprep.subr.bf16.mxu0 %v792
    %2759 = vmatpush1.bf16.msra.mxu0 %v791
    %2760 = vmatprep.subr.bf16.mxu0 %v794
    %2761 = vmatpush1.bf16.msra.mxu0 %v793
    %2762 = vmatprep.subr.bf16.mxu0 %v796
    %2763 = vmatpush1.bf16.msra.mxu0 %v795
    %2764 = vmatprep.subr.bf16.mxu0 %v798
    %2765 = vmatpush1.bf16.msra.mxu0 %v797
    %2766 = vmatprep.subr.bf16.mxu0 %v800
    %2767 = vmatpush1.bf16.msra.mxu0 %v799
    %2768 = vmatprep.subr.bf16.mxu0 %v802
    %2769 = vmatpush1.bf16.msra.mxu0 %v801
    %2770 = vmatprep.subr.bf16.mxu0 %v804
    %2771 = vmatpush1.bf16.msra.mxu0 %v803
    %2772 = vmatprep.subr.bf16.mxu0 %v806
    %2773 = vmatpush1.bf16.msra.mxu0 %v805
    %2774 = vmatprep.mubr.bf16.mxu0 %v2694
    %2775 = vmatmul.mubr.bf16.gmra.mrb[0].mxu0 %v2693
    %v2776 = vpop.f32.mrb[0].mxu0
    %v2777 = vadd.f32 %v2736, %v2776
    %v2778 = vpop.f32.mrb[0].mxu0
    %v2779 = vadd.f32 %v2738, %v2778
    %v2780 = vpop.f32.mrb[0].mxu0
    %v2781 = vpop.f32.mrb[0].mxu0
    %2782 = vdwg.mxu0
    %2783 = vmatprep.subr.bf16.mxu0 %v808
    %2784 = vmatpush1.bf16.msra.mxu0 %v807
    %2785 = vmatprep.subr.bf16.mxu0 %v810
    %2786 = vmatpush1.bf16.msra.mxu0 %v809
    %2787 = vmatprep.subr.bf16.mxu0 %v812
    %2788 = vmatpush1.bf16.msra.mxu0 %v811
    %2789 = vmatprep.subr.bf16.mxu0 %v814
    %2790 = vmatpush1.bf16.msra.mxu0 %v813
    %2791 = vmatprep.subr.bf16.mxu0 %v816
    %2792 = vmatpush1.bf16.msra.mxu0 %v815
    %2793 = vmatprep.subr.bf16.mxu0 %v818
    %2794 = vmatpush1.bf16.msra.mxu0 %v817
    %2795 = vmatprep.subr.bf16.mxu0 %v820
    %2796 = vmatpush1.bf16.msra.mxu0 %v819
    %2797 = vmatprep.subr.bf16.mxu0 %v822
    %2798 = vmatpush1.bf16.msra.mxu0 %v821
    %2799 = vmatprep.subr.bf16.mxu0 %v824
    %2800 = vmatpush1.bf16.msra.mxu0 %v823
    %2801 = vmatprep.subr.bf16.mxu0 %v826
    %2802 = vmatpush1.bf16.msra.mxu0 %v825
    %2803 = vmatprep.subr.bf16.mxu0 %v828
    %2804 = vmatpush1.bf16.msra.mxu0 %v827
    %2805 = vmatprep.subr.bf16.mxu0 %v830
    %2806 = vmatpush1.bf16.msra.mxu0 %v829
    %2807 = vmatprep.subr.bf16.mxu0 %v832
    %2808 = vmatpush1.bf16.msra.mxu0 %v831
    %2809 = vmatprep.subr.bf16.mxu0 %v834
    %2810 = vmatpush1.bf16.msra.mxu0 %v833
    %2811 = vmatprep.subr.bf16.mxu0 %v836
    %2812 = vmatpush1.bf16.msra.mxu0 %v835
    %2813 = vmatprep.subr.bf16.mxu0 %v838
    %2814 = vmatpush1.bf16.msra.mxu0 %v837
    %2815 = vmatprep.mubr.bf16.mxu0 %v2696
    %2816 = vmatmul.mubr.bf16.gmra.mrb[0].mxu0 %v2695
    %v2817 = vpop.f32.mrb[0].mxu0
    %v2818 = vadd.f32 %v2777, %v2817
    %v2819 = vpop.f32.mrb[0].mxu0
    %v2820 = vadd.f32 %v2779, %v2819
    %v2821 = vpop.f32.mrb[0].mxu0
    %v2822 = vpop.f32.mrb[0].mxu0
    %2823 = vdwg.mxu0
    %2824 = vmatprep.subr.bf16.mxu0 %v840
    %2825 = vmatpush1.bf16.msra.mxu0 %v839
    %2826 = vmatprep.subr.bf16.mxu0 %v842
    %2827 = vmatpush1.bf16.msra.mxu0 %v841
    %2828 = vmatprep.subr.bf16.mxu0 %v844
    %2829 = vmatpush1.bf16.msra.mxu0 %v843
    %2830 = vmatprep.subr.bf16.mxu0 %v846
    %2831 = vmatpush1.bf16.msra.mxu0 %v845
    %2832 = vmatprep.subr.bf16.mxu0 %v848
    %2833 = vmatpush1.bf16.msra.mxu0 %v847
    %2834 = vmatprep.subr.bf16.mxu0 %v850
    %2835 = vmatpush1.bf16.msra.mxu0 %v849
    %2836 = vmatprep.subr.bf16.mxu0 %v852
    %2837 = vmatpush1.bf16.msra.mxu0 %v851
    %2838 = vmatprep.subr.bf16.mxu0 %v854
    %2839 = vmatpush1.bf16.msra.mxu0 %v853
    %2840 = vmatprep.subr.bf16.mxu0 %v856
    %2841 = vmatpush1.bf16.msra.mxu0 %v855
    %2842 = vmatprep.subr.bf16.mxu0 %v858
    %2843 = vmatpush1.bf16.msra.mxu0 %v857
    %2844 = vmatprep.subr.bf16.mxu0 %v860
    %2845 = vmatpush1.bf16.msra.mxu0 %v859
    %2846 = vmatprep.subr.bf16.mxu0 %v862
    %2847 = vmatpush1.bf16.msra.mxu0 %v861
    %2848 = vmatprep.subr.bf16.mxu0 %v864
    %2849 = vmatpush1.bf16.msra.mxu0 %v863
    %2850 = vmatprep.subr.bf16.mxu0 %v866
    %2851 = vmatpush1.bf16.msra.mxu0 %v865
    %2852 = vmatprep.subr.bf16.mxu0 %v868
    %2853 = vmatpush1.bf16.msra.mxu0 %v867
    %2854 = vmatprep.subr.bf16.mxu0 %v870
    %2855 = vmatpush1.bf16.msra.mxu0 %v869
    %2856 = vmatprep.mubr.bf16.mxu0 %v2698
    %2857 = vmatmul.mubr.bf16.gmra.mrb[0].mxu0 %v2697
    %v2858 = vpop.f32.mrb[0].mxu0
    %v2859 = vadd.f32 %v2818, %v2858
    %v2860 = vpop.f32.mrb[0].mxu0
    %v2861 = vadd.f32 %v2820, %v2860
    %v2862 = vpop.f32.mrb[0].mxu0
    %v2863 = vpop.f32.mrb[0].mxu0
    %2864 = vdwg.mxu0
    %2865 = vmatprep.subr.bf16.mxu0 %v872
    %2866 = vmatpush1.bf16.msra.mxu0 %v871
    %2867 = vmatprep.subr.bf16.mxu0 %v874
    %2868 = vmatpush1.bf16.msra.mxu0 %v873
    %2869 = vmatprep.subr.bf16.mxu0 %v876
    %2870 = vmatpush1.bf16.msra.mxu0 %v875
    %2871 = vmatprep.subr.bf16.mxu0 %v878
    %2872 = vmatpush1.bf16.msra.mxu0 %v877
    %2873 = vmatprep.subr.bf16.mxu0 %v880
    %2874 = vmatpush1.bf16.msra.mxu0 %v879
    %2875 = vmatprep.subr.bf16.mxu0 %v882
    %2876 = vmatpush1.bf16.msra.mxu0 %v881
    %2877 = vmatprep.subr.bf16.mxu0 %v884
    %2878 = vmatpush1.bf16.msra.mxu0 %v883
    %2879 = vmatprep.subr.bf16.mxu0 %v886
    %2880 = vmatpush1.bf16.msra.mxu0 %v885
    %2881 = vmatprep.subr.bf16.mxu0 %v888
    %2882 = vmatpush1.bf16.msra.mxu0 %v887
    %2883 = vmatprep.subr.bf16.mxu0 %v890
    %2884 = vmatpush1.bf16.msra.mxu0 %v889
    %2885 = vmatprep.subr.bf16.mxu0 %v892
    %2886 = vmatpush1.bf16.msra.mxu0 %v891
    %2887 = vmatprep.subr.bf16.mxu0 %v894
    %2888 = vmatpush1.bf16.msra.mxu0 %v893
    %2889 = vmatprep.subr.bf16.mxu0 %v896
    %2890 = vmatpush1.bf16.msra.mxu0 %v895
    %2891 = vmatprep.subr.bf16.mxu0 %v898
    %2892 = vmatpush1.bf16.msra.mxu0 %v897
    %2893 = vmatprep.subr.bf16.mxu0 %v900
    %2894 = vmatpush1.bf16.msra.mxu0 %v899
    %2895 = vmatprep.subr.bf16.mxu0 %v902
    %2896 = vmatpush1.bf16.msra.mxu0 %v901
    %2897 = vmatprep.mubr.bf16.mxu0 %v2700
    %2898 = vmatmul.mubr.bf16.gmra.mrb[0].mxu0 %v2699
    %v2899 = vpop.f32.mrb[0].mxu0
    %v2900 = vadd.f32 %v2859, %v2899
    %v2901 = vpop.f32.mrb[0].mxu0
    %v2902 = vadd.f32 %v2861, %v2901
    %v2903 = vpop.f32.mrb[0].mxu0
    %v2904 = vpop.f32.mrb[0].mxu0
    %2905 = vdwg.mxu0
    %v2906 = vld [vmem:[%s0 + $0x8c] sm:$0xff]
    %v2907 = vld [vmem:[%s0 + $0x94] sm:$0xff]
    %v2908 = vld [vmem:[%s0 + $0x9c] sm:$0xf]
    %v2912 = vcombine.high %v2906, %v2906
    %v2914 = vunpack.c.l.s4 1983009808
    %v2915 = vunpack.c.0.s8 %v2914
    %v2916 = vlaneseq
    %v2917 = vshrl.u32 %v2916, 7
    %v2918 = vsub.s32 %v2915, %v2917
    %v2919 = vrot.slane %v2906, %v2918
    %v2921 = vunpack.c.l.s4 1983009808
    %v2922 = vunpack.c.0.s8 %v2921
    %v2923 = vlaneseq
    %v2924 = vshrl.u32 %v2923, 7
    %v2925 = vsub.s32 %v2922, %v2924
    %v2926 = vrot.slane %v2912, %v2925
    %v2927 = vcombine.high %v2919, %v2919
    %v2928 = vcombine.high %v2926, %v2926
    %v2929 = vcombine.high %v2907, %v2907
    %v2931 = vunpack.c.l.s4 1983009808
    %v2932 = vunpack.c.0.s8 %v2931
    %v2933 = vlaneseq
    %v2934 = vshrl.u32 %v2933, 7
    %v2935 = vsub.s32 %v2932, %v2934
    %v2936 = vrot.slane %v2907, %v2935
    %v2938 = vunpack.c.l.s4 1983009808
    %v2939 = vunpack.c.0.s8 %v2938
    %v2940 = vlaneseq
    %v2941 = vshrl.u32 %v2940, 7
    %v2942 = vsub.s32 %v2939, %v2941
    %v2943 = vrot.slane %v2929, %v2942
    %v2944 = vcombine.high %v2936, %v2936
    %v2945 = vcombine.high %v2943, %v2943
    %v2947 = vunpack.c.l.s4 1983009808
    %v2948 = vunpack.c.0.s8 %v2947
    %v2949 = vlaneseq
    %v2950 = vshrl.u32 %v2949, 7
    %v2951 = vsub.s32 %v2948, %v2950
    %v2952 = vrot.slane %v2908, %v2951
    %v2953 = vcombine.high %v2952, %v2952
    %v2964 = vpack.c.bf16 %v2919, %v2919
    %v2965 = vpack.c.bf16 %v2927, %v2927
    %v2966 = vpack.c.bf16 %v2926, %v2926
    %v2967 = vpack.c.bf16 %v2928, %v2928
    %v2968 = vpack.c.bf16 %v2936, %v2936
    %v2969 = vpack.c.bf16 %v2944, %v2944
    %v2970 = vpack.c.bf16 %v2943, %v2943
    %v2971 = vpack.c.bf16 %v2945, %v2945
    %v2972 = vpack.c.bf16 %v2952, %v2952
    %v2973 = vpack.c.bf16 %v2953, %v2953
    %2974 = vmatprep.subr.bf16.mxu0 %v744
    %2975 = vmatpush1.bf16.msra.mxu0 %v743
    %2976 = vmatprep.subr.bf16.mxu0 %v746
    %2977 = vmatpush1.bf16.msra.mxu0 %v745
    %2978 = vmatprep.subr.bf16.mxu0 %v748
    %2979 = vmatpush1.bf16.msra.mxu0 %v747
    %2980 = vmatprep.subr.bf16.mxu0 %v750
    %2981 = vmatpush1.bf16.msra.mxu0 %v749
    %2982 = vmatprep.subr.bf16.mxu0 %v752
    %2983 = vmatpush1.bf16.msra.mxu0 %v751
    %2984 = vmatprep.subr.bf16.mxu0 %v754
    %2985 = vmatpush1.bf16.msra.mxu0 %v753
    %2986 = vmatprep.subr.bf16.mxu0 %v756
    %2987 = vmatpush1.bf16.msra.mxu0 %v755
    %2988 = vmatprep.subr.bf16.mxu0 %v758
    %2989 = vmatpush1.bf16.msra.mxu0 %v757
    %2990 = vmatprep.subr.bf16.mxu0 %v760
    %2991 = vmatpush1.bf16.msra.mxu0 %v759
    %2992 = vmatprep.subr.bf16.mxu0 %v762
    %2993 = vmatpush1.bf16.msra.mxu0 %v761
    %2994 = vmatprep.subr.bf16.mxu0 %v764
    %2995 = vmatpush1.bf16.msra.mxu0 %v763
    %2996 = vmatprep.subr.bf16.mxu0 %v766
    %2997 = vmatpush1.bf16.msra.mxu0 %v765
    %2998 = vmatprep.subr.bf16.mxu0 %v768
    %2999 = vmatpush1.bf16.msra.mxu0 %v767
    %3000 = vmatprep.subr.bf16.mxu0 %v770
    %3001 = vmatpush1.bf16.msra.mxu0 %v769
    %3002 = vmatprep.subr.bf16.mxu0 %v772
    %3003 = vmatpush1.bf16.msra.mxu0 %v771
    %3004 = vmatprep.subr.bf16.mxu0 %v774
    %3005 = vmatpush1.bf16.msra.mxu0 %v773
    %3006 = vmatprep.mubr.bf16.mxu0 %v2965
    %3007 = vmatmul.mubr.bf16.gmra.mrb[0].mxu0 %v2964
    %v3008 = vpop.f32.mrb[0].mxu0
    %v3009 = vadd.f32 %v190, %v3008
    %v3010 = vpop.f32.mrb[0].mxu0
    %v3011 = vadd.f32 %v194, %v3010
    %v3012 = vpop.f32.mrb[0].mxu0
    %v3013 = vpop.f32.mrb[0].mxu0
    %3014 = vdwg.mxu0
    %3015 = vmatprep.subr.bf16.mxu0 %v776
    %3016 = vmatpush1.bf16.msra.mxu0 %v775
    %3017 = vmatprep.subr.bf16.mxu0 %v778
    %3018 = vmatpush1.bf16.msra.mxu0 %v777
    %3019 = vmatprep.subr.bf16.mxu0 %v780
    %3020 = vmatpush1.bf16.msra.mxu0 %v779
    %3021 = vmatprep.subr.bf16.mxu0 %v782
    %3022 = vmatpush1.bf16.msra.mxu0 %v781
    %3023 = vmatprep.subr.bf16.mxu0 %v784
    %3024 = vmatpush1.bf16.msra.mxu0 %v783
    %3025 = vmatprep.subr.bf16.mxu0 %v786
    %3026 = vmatpush1.bf16.msra.mxu0 %v785
    %3027 = vmatprep.subr.bf16.mxu0 %v788
    %3028 = vmatpush1.bf16.msra.mxu0 %v787
    %3029 = vmatprep.subr.bf16.mxu0 %v790
    %3030 = vmatpush1.bf16.msra.mxu0 %v789
    %3031 = vmatprep.subr.bf16.mxu0 %v792
    %3032 = vmatpush1.bf16.msra.mxu0 %v791
    %3033 = vmatprep.subr.bf16.mxu0 %v794
    %3034 = vmatpush1.bf16.msra.mxu0 %v793
    %3035 = vmatprep.subr.bf16.mxu0 %v796
    %3036 = vmatpush1.bf16.msra.mxu0 %v795
    %3037 = vmatprep.subr.bf16.mxu0 %v798
    %3038 = vmatpush1.bf16.msra.mxu0 %v797
    %3039 = vmatprep.subr.bf16.mxu0 %v800
    %3040 = vmatpush1.bf16.msra.mxu0 %v799
    %3041 = vmatprep.subr.bf16.mxu0 %v802
    %3042 = vmatpush1.bf16.msra.mxu0 %v801
    %3043 = vmatprep.subr.bf16.mxu0 %v804
    %3044 = vmatpush1.bf16.msra.mxu0 %v803
    %3045 = vmatprep.subr.bf16.mxu0 %v806
    %3046 = vmatpush1.bf16.msra.mxu0 %v805
    %3047 = vmatprep.mubr.bf16.mxu0 %v2967
    %3048 = vmatmul.mubr.bf16.gmra.mrb[0].mxu0 %v2966
    %v3049 = vpop.f32.mrb[0].mxu0
    %v3050 = vadd.f32 %v3009, %v3049
    %v3051 = vpop.f32.mrb[0].mxu0
    %v3052 = vadd.f32 %v3011, %v3051
    %v3053 = vpop.f32.mrb[0].mxu0
    %v3054 = vpop.f32.mrb[0].mxu0
    %3055 = vdwg.mxu0
    %3056 = vmatprep.subr.bf16.mxu0 %v808
    %3057 = vmatpush1.bf16.msra.mxu0 %v807
    %3058 = vmatprep.subr.bf16.mxu0 %v810
    %3059 = vmatpush1.bf16.msra.mxu0 %v809
    %3060 = vmatprep.subr.bf16.mxu0 %v812
    %3061 = vmatpush1.bf16.msra.mxu0 %v811
    %3062 = vmatprep.subr.bf16.mxu0 %v814
    %3063 = vmatpush1.bf16.msra.mxu0 %v813
    %3064 = vmatprep.subr.bf16.mxu0 %v816
    %3065 = vmatpush1.bf16.msra.mxu0 %v815
    %3066 = vmatprep.subr.bf16.mxu0 %v818
    %3067 = vmatpush1.bf16.msra.mxu0 %v817
    %3068 = vmatprep.subr.bf16.mxu0 %v820
    %3069 = vmatpush1.bf16.msra.mxu0 %v819
    %3070 = vmatprep.subr.bf16.mxu0 %v822
    %3071 = vmatpush1.bf16.msra.mxu0 %v821
    %3072 = vmatprep.subr.bf16.mxu0 %v824
    %3073 = vmatpush1.bf16.msra.mxu0 %v823
    %3074 = vmatprep.subr.bf16.mxu0 %v826
    %3075 = vmatpush1.bf16.msra.mxu0 %v825
    %3076 = vmatprep.subr.bf16.mxu0 %v828
    %3077 = vmatpush1.bf16.msra.mxu0 %v827
    %3078 = vmatprep.subr.bf16.mxu0 %v830
    %3079 = vmatpush1.bf16.msra.mxu0 %v829
    %3080 = vmatprep.subr.bf16.mxu0 %v832
    %3081 = vmatpush1.bf16.msra.mxu0 %v831
    %3082 = vmatprep.subr.bf16.mxu0 %v834
    %3083 = vmatpush1.bf16.msra.mxu0 %v833
    %3084 = vmatprep.subr.bf16.mxu0 %v836
    %3085 = vmatpush1.bf16.msra.mxu0 %v835
    %3086 = vmatprep.subr.bf16.mxu0 %v838
    %3087 = vmatpush1.bf16.msra.mxu0 %v837
    %3088 = vmatprep.mubr.bf16.mxu0 %v2969
    %3089 = vmatmul.mubr.bf16.gmra.mrb[0].mxu0 %v2968
    %v3090 = vpop.f32.mrb[0].mxu0
    %v3091 = vadd.f32 %v3050, %v3090
    %v3092 = vpop.f32.mrb[0].mxu0
    %v3093 = vadd.f32 %v3052, %v3092
    %v3094 = vpop.f32.mrb[0].mxu0
    %v3095 = vpop.f32.mrb[0].mxu0
    %3096 = vdwg.mxu0
    %3097 = vmatprep.subr.bf16.mxu0 %v840
    %3098 = vmatpush1.bf16.msra.mxu0 %v839
    %3099 = vmatprep.subr.bf16.mxu0 %v842
    %3100 = vmatpush1.bf16.msra.mxu0 %v841
    %3101 = vmatprep.subr.bf16.mxu0 %v844
    %3102 = vmatpush1.bf16.msra.mxu0 %v843
    %3103 = vmatprep.subr.bf16.mxu0 %v846
    %3104 = vmatpush1.bf16.msra.mxu0 %v845
    %3105 = vmatprep.subr.bf16.mxu0 %v848
    %3106 = vmatpush1.bf16.msra.mxu0 %v847
    %3107 = vmatprep.subr.bf16.mxu0 %v850
    %3108 = vmatpush1.bf16.msra.mxu0 %v849
    %3109 = vmatprep.subr.bf16.mxu0 %v852
    %3110 = vmatpush1.bf16.msra.mxu0 %v851
    %3111 = vmatprep.subr.bf16.mxu0 %v854
    %3112 = vmatpush1.bf16.msra.mxu0 %v853
    %3113 = vmatprep.subr.bf16.mxu0 %v856
    %3114 = vmatpush1.bf16.msra.mxu0 %v855
    %3115 = vmatprep.subr.bf16.mxu0 %v858
    %3116 = vmatpush1.bf16.msra.mxu0 %v857
    %3117 = vmatprep.subr.bf16.mxu0 %v860
    %3118 = vmatpush1.bf16.msra.mxu0 %v859
    %3119 = vmatprep.subr.bf16.mxu0 %v862
    %3120 = vmatpush1.bf16.msra.mxu0 %v861
    %3121 = vmatprep.subr.bf16.mxu0 %v864
    %3122 = vmatpush1.bf16.msra.mxu0 %v863
    %3123 = vmatprep.subr.bf16.mxu0 %v866
    %3124 = vmatpush1.bf16.msra.mxu0 %v865
    %3125 = vmatprep.subr.bf16.mxu0 %v868
    %3126 = vmatpush1.bf16.msra.mxu0 %v867
    %3127 = vmatprep.subr.bf16.mxu0 %v870
    %3128 = vmatpush1.bf16.msra.mxu0 %v869
    %3129 = vmatprep.mubr.bf16.mxu0 %v2971
    %3130 = vmatmul.mubr.bf16.gmra.mrb[0].mxu0 %v2970
    %v3131 = vpop.f32.mrb[0].mxu0
    %v3132 = vadd.f32 %v3091, %v3131
    %v3133 = vpop.f32.mrb[0].mxu0
    %v3134 = vadd.f32 %v3093, %v3133
    %v3135 = vpop.f32.mrb[0].mxu0
    %v3136 = vpop.f32.mrb[0].mxu0
    %3137 = vdwg.mxu0
    %3138 = vmatprep.subr.bf16.mxu0 %v872
    %3139 = vmatpush1.bf16.msra.mxu0 %v871
    %3140 = vmatprep.subr.bf16.mxu0 %v874
    %3141 = vmatpush1.bf16.msra.mxu0 %v873
    %3142 = vmatprep.subr.bf16.mxu0 %v876
    %3143 = vmatpush1.bf16.msra.mxu0 %v875
    %3144 = vmatprep.subr.bf16.mxu0 %v878
    %3145 = vmatpush1.bf16.msra.mxu0 %v877
    %3146 = vmatprep.subr.bf16.mxu0 %v880
    %3147 = vmatpush1.bf16.msra.mxu0 %v879
    %3148 = vmatprep.subr.bf16.mxu0 %v882
    %3149 = vmatpush1.bf16.msra.mxu0 %v881
    %3150 = vmatprep.subr.bf16.mxu0 %v884
    %3151 = vmatpush1.bf16.msra.mxu0 %v883
    %3152 = vmatprep.subr.bf16.mxu0 %v886
    %3153 = vmatpush1.bf16.msra.mxu0 %v885
    %3154 = vmatprep.subr.bf16.mxu0 %v888
    %3155 = vmatpush1.bf16.msra.mxu0 %v887
    %3156 = vmatprep.subr.bf16.mxu0 %v890
    %3157 = vmatpush1.bf16.msra.mxu0 %v889
    %3158 = vmatprep.subr.bf16.mxu0 %v892
    %3159 = vmatpush1.bf16.msra.mxu0 %v891
    %3160 = vmatprep.subr.bf16.mxu0 %v894
    %3161 = vmatpush1.bf16.msra.mxu0 %v893
    %3162 = vmatprep.subr.bf16.mxu0 %v896
    %3163 = vmatpush1.bf16.msra.mxu0 %v895
    %3164 = vmatprep.subr.bf16.mxu0 %v898
    %3165 = vmatpush1.bf16.msra.mxu0 %v897
    %3166 = vmatprep.subr.bf16.mxu0 %v900
    %3167 = vmatpush1.bf16.msra.mxu0 %v899
    %3168 = vmatprep.subr.bf16.mxu0 %v902
    %3169 = vmatpush1.bf16.msra.mxu0 %v901
    %3170 = vmatprep.mubr.bf16.mxu0 %v2973
    %3171 = vmatmul.mubr.bf16.gmra.mrb[0].mxu0 %v2972
    %v3172 = vpop.f32.mrb[0].mxu0
    %v3173 = vadd.f32 %v3132, %v3172
    %v3174 = vpop.f32.mrb[0].mxu0
    %v3175 = vadd.f32 %v3134, %v3174
    %v3176 = vpop.f32.mrb[0].mxu0
    %v3177 = vpop.f32.mrb[0].mxu0
    %3178 = vdwg.mxu0
    %v3179 = vld [vmem:[%s2] sm:$0xff]
    %v3180 = vld [vmem:[%s2 + $0x8] sm:$0xff]
    %v3181 = vld [vmem:[%s2 + $0x10] sm:$0xff]
    %v3182 = vld [vmem:[%s2 + $0x18] sm:$0xff]
    %v3183 = vld [vmem:[%s2 + $0x20] sm:$0xff]
    %v3184 = vld [vmem:[%s2 + $0x28] sm:$0xff]
    %v3185 = vld [vmem:[%s2 + $0x30] sm:$0xff]
    %v3186 = vld [vmem:[%s2 + $0x38] sm:$0xff]
    %v3195 = vunpack.c.l.b16 %v3179
    %v3196 = vunpack.c.h.b16 %v3179
    %v3197 = vunpack.c.l.b16 %v3180
    %v3198 = vunpack.c.h.b16 %v3180
    %v3199 = vunpack.c.l.b16 %v3181
    %v3200 = vunpack.c.h.b16 %v3181
    %v3201 = vunpack.c.l.b16 %v3182
    %v3202 = vunpack.c.h.b16 %v3182
    %v3203 = vunpack.c.l.b16 %v3183
    %v3204 = vunpack.c.h.b16 %v3183
    %v3205 = vunpack.c.l.b16 %v3184
    %v3206 = vunpack.c.h.b16 %v3184
    %v3207 = vunpack.c.l.b16 %v3185
    %v3208 = vunpack.c.h.b16 %v3185
    %v3209 = vunpack.c.l.b16 %v3186
    %v3210 = vunpack.c.h.b16 %v3186
    %v3211 = vpack.c.b16 %v3197, %v3195
    %v3212 = vpack.c.b16 %v3198, %v3196
    %v3213 = vpack.c.b16 %v3201, %v3199
    %v3214 = vpack.c.b16 %v3202, %v3200
    %v3215 = vpack.c.b16 %v3205, %v3203
    %v3216 = vpack.c.b16 %v3206, %v3204
    %v3217 = vpack.c.b16 %v3209, %v3207
    %v3218 = vpack.c.b16 %v3210, %v3208
    %vm3227 = vcmask 523264
    %v3229 = vsel %vm3227, 0, 0
    %3231 = vmatprep.subr.bf16.mxu0 %v3212
    %3232 = vmatpush1.bf16.msra.mxu0 %v3211
    %3233 = vmatprep.subr.bf16.mxu0 %v3214
    %3234 = vmatpush1.bf16.msra.mxu0 %v3213
    %3235 = vmatprep.subr.bf16.mxu0 %v3216
    %3236 = vmatpush1.bf16.msra.mxu0 %v3215
    %3237 = vmatprep.subr.bf16.mxu0 %v3218
    %3238 = vmatpush1.bf16.msra.mxu0 %v3217
    %3239 = vmatprep.subr.bf16.mxu0 0
    %3240 = vmatpush1.bf16.msra.mxu0 0
    %3241 = vmatprep.subr.bf16.mxu0 0
    %3242 = vmatpush1.bf16.msra.mxu0 0
    %3243 = vmatprep.subr.bf16.mxu0 0
    %3244 = vmatpush1.bf16.msra.mxu0 0
    %3245 = vmatprep.subr.bf16.mxu0 0
    %3246 = vmatpush1.bf16.msra.mxu0 0
    %3247 = vmatprep.subr.bf16.mxu0 0
    %3248 = vmatpush1.bf16.msra.mxu0 0
    %3249 = vmatprep.subr.bf16.mxu0 0
    %3250 = vmatpush1.bf16.msra.mxu0 0
    %3251 = vmatprep.subr.bf16.mxu0 0
    %3252 = vmatpush1.bf16.msra.mxu0 0
    %3253 = vmatprep.subr.bf16.mxu0 0
    %3254 = vmatpush1.bf16.msra.mxu0 0
    %3255 = vmatprep.subr.bf16.mxu0 0
    %3256 = vmatpush1.bf16.msra.mxu0 0
    %3257 = vmatprep.subr.bf16.mxu0 0
    %3258 = vmatpush1.bf16.msra.mxu0 0
    %3259 = vmatprep.subr.bf16.mxu0 0
    %3260 = vmatpush1.bf16.msra.mxu0 0
    %3261 = vmatprep.subr.bf16.mxu0 0
    %3262 = vmatpush1.bf16.msra.mxu0 0
    %3263 = vmatprep.mubr.bf16.mxu0 0
    %3264 = vmatmul.mubr.bf16.gmra.mrb[0].mxu0 %v3229
    %v3265 = vpop.f32.mrb[0].mxu0
    %v3266 = vadd.f32 0.0, %v3265
    %v3267 = vpop.f32.mrb[0].mxu0
    %v3268 = vadd.f32 0.0, %v3267
    %v3269 = vpop.f32.mrb[0].mxu0
    %v3270 = vpop.f32.mrb[0].mxu0
    %3271 = vdwg.mxu0
    %v3272 = vadd.f32 %v1262, %v3266
    %v3273 = vadd.f32 %v1264, %v3268
    %v3274 = vxor.u32 %v3272, 2147483648
    %v3275 = vxor.u32 %v3273, 2147483648
    %v3276 = vmul.f32 %v3274, 1.442695
    %v3277 = vpow.pop %v3276
    %v3278 = vmul.f32 %v3275, 1.442695
    %v3279 = vpow.pop %v3278
    %v3280 = vadd.f32 %v3277, 1.0
    %v3281 = vadd.f32 %v3279, 1.0
    %v3282 = vrcp.pop %v3280
    %v3283 = vmul.f32 1.0, %v3282
    %v3284 = vrcp.pop %v3281
    %v3285 = vmul.f32 1.0, %v3284
    %v3286 = vtanh.pop %v3273
    %v3287 = vmul.f32 %v3283, 0.0
    %3289 = vrot.lane.b32.xlu0 %v3286, 64
    %v3290 = vpop.permute.xlu0 %3289
    %v3292 = vmul.f32 %v3283, %v3290
    %3294 = vrot.lane.b32.xlu0 %v3292, 64
    %v3295 = vpop.permute.xlu0 %3294
    %v3297 = vadd.f32 %v3287, %v3295
    %v3298 = vtanh.pop %v3297
    %3300 = vrot.lane.b32.xlu0 %v3298, 64
    %v3301 = vpop.permute.xlu0 %3300
    %v3303 = vmul.f32 %v3285, %v3301
    %v3304 = vpack.c.bf16 %v3303, %v3303
    %v3306 = vsel %vm3227, %v3304, 0
    %3308 = vmatprep.subr.bf16.mxu0 %v3212
    %3309 = vmatpush1.bf16.msra.mxu0 %v3211
    %3310 = vmatprep.subr.bf16.mxu0 %v3214
    %3311 = vmatpush1.bf16.msra.mxu0 %v3213
    %3312 = vmatprep.subr.bf16.mxu0 %v3216
    %3313 = vmatpush1.bf16.msra.mxu0 %v3215
    %3314 = vmatprep.subr.bf16.mxu0 %v3218
    %3315 = vmatpush1.bf16.msra.mxu0 %v3217
    %3316 = vmatprep.subr.bf16.mxu0 0
    %3317 = vmatpush1.bf16.msra.mxu0 0
    %3318 = vmatprep.subr.bf16.mxu0 0
    %3319 = vmatpush1.bf16.msra.mxu0 0
    %3320 = vmatprep.subr.bf16.mxu0 0
    %3321 = vmatpush1.bf16.msra.mxu0 0
    %3322 = vmatprep.subr.bf16.mxu0 0
    %3323 = vmatpush1.bf16.msra.mxu0 0
    %3324 = vmatprep.subr.bf16.mxu0 0
    %3325 = vmatpush1.bf16.msra.mxu0 0
    %3326 = vmatprep.subr.bf16.mxu0 0
    %3327 = vmatpush1.bf16.msra.mxu0 0
    %3328 = vmatprep.subr.bf16.mxu0 0
    %3329 = vmatpush1.bf16.msra.mxu0 0
    %3330 = vmatprep.subr.bf16.mxu0 0
    %3331 = vmatpush1.bf16.msra.mxu0 0
    %3332 = vmatprep.subr.bf16.mxu0 0
    %3333 = vmatpush1.bf16.msra.mxu0 0
    %3334 = vmatprep.subr.bf16.mxu0 0
    %3335 = vmatpush1.bf16.msra.mxu0 0
    %3336 = vmatprep.subr.bf16.mxu0 0
    %3337 = vmatpush1.bf16.msra.mxu0 0
    %3338 = vmatprep.subr.bf16.mxu0 0
    %3339 = vmatpush1.bf16.msra.mxu0 0
    %3340 = vmatprep.mubr.bf16.mxu0 0
    %3341 = vmatmul.mubr.bf16.gmra.mrb[0].mxu0 %v3306
    %v3342 = vpop.f32.mrb[0].mxu0
    %v3343 = vadd.f32 0.0, %v3342
    %v3344 = vpop.f32.mrb[0].mxu0
    %v3345 = vadd.f32 0.0, %v3344
    %v3346 = vpop.f32.mrb[0].mxu0
    %v3347 = vpop.f32.mrb[0].mxu0
    %3348 = vdwg.mxu0
    %v3349 = vadd.f32 %v1535, %v3343
    %v3350 = vadd.f32 %v1537, %v3345
    %v3351 = vxor.u32 %v3349, 2147483648
    %v3352 = vxor.u32 %v3350, 2147483648
    %v3353 = vmul.f32 %v3351, 1.442695
    %v3354 = vpow.pop %v3353
    %v3355 = vmul.f32 %v3352, 1.442695
    %v3356 = vpow.pop %v3355
    %v3357 = vadd.f32 %v3354, 1.0
    %v3358 = vadd.f32 %v3356, 1.0
    %v3359 = vrcp.pop %v3357
    %v3360 = vmul.f32 1.0, %v3359
    %v3361 = vrcp.pop %v3358
    %v3362 = vmul.f32 1.0, %v3361
    %v3363 = vtanh.pop %v3350
    %v3364 = vmul.f32 %v3360, %v3297
    %3366 = vrot.lane.b32.xlu0 %v3363, 64
    %v3367 = vpop.permute.xlu0 %3366
    %v3369 = vmul.f32 %v3360, %v3367
    %3371 = vrot.lane.b32.xlu0 %v3369, 64
    %v3372 = vpop.permute.xlu0 %3371
    %v3374 = vadd.f32 %v3364, %v3372
    %v3375 = vtanh.pop %v3374
    %3377 = vrot.lane.b32.xlu0 %v3375, 64
    %v3378 = vpop.permute.xlu0 %3377
    %v3380 = vmul.f32 %v3362, %v3378
    %v3381 = vpack.c.bf16 %v3380, %v3380
    %v3383 = vsel %vm3227, %v3381, 0
    %3385 = vmatprep.subr.bf16.mxu0 %v3212
    %3386 = vmatpush1.bf16.msra.mxu0 %v3211
    %3387 = vmatprep.subr.bf16.mxu0 %v3214
    %3388 = vmatpush1.bf16.msra.mxu0 %v3213
    %3389 = vmatprep.subr.bf16.mxu0 %v3216
    %3390 = vmatpush1.bf16.msra.mxu0 %v3215
    %3391 = vmatprep.subr.bf16.mxu0 %v3218
    %3392 = vmatpush1.bf16.msra.mxu0 %v3217
    %3393 = vmatprep.subr.bf16.mxu0 0
    %3394 = vmatpush1.bf16.msra.mxu0 0
    %3395 = vmatprep.subr.bf16.mxu0 0
    %3396 = vmatpush1.bf16.msra.mxu0 0
    %3397 = vmatprep.subr.bf16.mxu0 0
    %3398 = vmatpush1.bf16.msra.mxu0 0
    %3399 = vmatprep.subr.bf16.mxu0 0
    %3400 = vmatpush1.bf16.msra.mxu0 0
    %3401 = vmatprep.subr.bf16.mxu0 0
    %3402 = vmatpush1.bf16.msra.mxu0 0
    %3403 = vmatprep.subr.bf16.mxu0 0
    %3404 = vmatpush1.bf16.msra.mxu0 0
    %3405 = vmatprep.subr.bf16.mxu0 0
    %3406 = vmatpush1.bf16.msra.mxu0 0
    %3407 = vmatprep.subr.bf16.mxu0 0
    %3408 = vmatpush1.bf16.msra.mxu0 0
    %3409 = vmatprep.subr.bf16.mxu0 0
    %3410 = vmatpush1.bf16.msra.mxu0 0
    %3411 = vmatprep.subr.bf16.mxu0 0
    %3412 = vmatpush1.bf16.msra.mxu0 0
    %3413 = vmatprep.subr.bf16.mxu0 0
    %3414 = vmatpush1.bf16.msra.mxu0 0
    %3415 = vmatprep.subr.bf16.mxu0 0
    %3416 = vmatpush1.bf16.msra.mxu0 0
    %3417 = vmatprep.mubr.bf16.mxu0 0
    %3418 = vmatmul.mubr.bf16.gmra.mrb[0].mxu0 %v3383
    %v3419 = vpop.f32.mrb[0].mxu0
    %v3420 = vadd.f32 0.0, %v3419
    %v3421 = vpop.f32.mrb[0].mxu0
    %v3422 = vadd.f32 0.0, %v3421
    %v3423 = vpop.f32.mrb[0].mxu0
    %v3424 = vpop.f32.mrb[0].mxu0
    %3425 = vdwg.mxu0
    %v3426 = vadd.f32 %v1808, %v3420
    %v3427 = vadd.f32 %v1810, %v3422
    %v3428 = vxor.u32 %v3426, 2147483648
    %v3429 = vxor.u32 %v3427, 2147483648
    %v3430 = vmul.f32 %v3428, 1.442695
    %v3431 = vpow.pop %v3430
    %v3432 = vmul.f32 %v3429, 1.442695
    %v3433 = vpow.pop %v3432
    %v3434 = vadd.f32 %v3431, 1.0
    %v3435 = vadd.f32 %v3433, 1.0
    %v3436 = vrcp.pop %v3434
    %v3437 = vmul.f32 1.0, %v3436
    %v3438 = vrcp.pop %v3435
    %v3439 = vmul.f32 1.0, %v3438
    %v3440 = vtanh.pop %v3427
    %v3441 = vmul.f32 %v3437, %v3374
    %3443 = vrot.lane.b32.xlu0 %v3440, 64
    %v3444 = vpop.permute.xlu0 %3443
    %v3446 = vmul.f32 %v3437, %v3444
    %3448 = vrot.lane.b32.xlu0 %v3446, 64
    %v3449 = vpop.permute.xlu0 %3448
    %v3451 = vadd.f32 %v3441, %v3449
    %v3452 = vtanh.pop %v3451
    %3454 = vrot.lane.b32.xlu0 %v3452, 64
    %v3455 = vpop.permute.xlu0 %3454
    %v3457 = vmul.f32 %v3439, %v3455
    %v3458 = vpack.c.bf16 %v3457, %v3457
    %v3460 = vsel %vm3227, %v3458, 0
    %3462 = vmatprep.subr.bf16.mxu0 %v3212
    %3463 = vmatpush1.bf16.msra.mxu0 %v3211
    %3464 = vmatprep.subr.bf16.mxu0 %v3214
    %3465 = vmatpush1.bf16.msra.mxu0 %v3213
    %3466 = vmatprep.subr.bf16.mxu0 %v3216
    %3467 = vmatpush1.bf16.msra.mxu0 %v3215
    %3468 = vmatprep.subr.bf16.mxu0 %v3218
    %3469 = vmatpush1.bf16.msra.mxu0 %v3217
    %3470 = vmatprep.subr.bf16.mxu0 0
    %3471 = vmatpush1.bf16.msra.mxu0 0
    %3472 = vmatprep.subr.bf16.mxu0 0
    %3473 = vmatpush1.bf16.msra.mxu0 0
    %3474 = vmatprep.subr.bf16.mxu0 0
    %3475 = vmatpush1.bf16.msra.mxu0 0
    %3476 = vmatprep.subr.bf16.mxu0 0
    %3477 = vmatpush1.bf16.msra.mxu0 0
    %3478 = vmatprep.subr.bf16.mxu0 0
    %3479 = vmatpush1.bf16.msra.mxu0 0
    %3480 = vmatprep.subr.bf16.mxu0 0
    %3481 = vmatpush1.bf16.msra.mxu0 0
    %3482 = vmatprep.subr.bf16.mxu0 0
    %3483 = vmatpush1.bf16.msra.mxu0 0
    %3484 = vmatprep.subr.bf16.mxu0 0
    %3485 = vmatpush1.bf16.msra.mxu0 0
    %3486 = vmatprep.subr.bf16.mxu0 0
    %3487 = vmatpush1.bf16.msra.mxu0 0
    %3488 = vmatprep.subr.bf16.mxu0 0
    %3489 = vmatpush1.bf16.msra.mxu0 0
    %3490 = vmatprep.subr.bf16.mxu0 0
    %3491 = vmatpush1.bf16.msra.mxu0 0
    %3492 = vmatprep.subr.bf16.mxu0 0
    %3493 = vmatpush1.bf16.msra.mxu0 0
    %3494 = vmatprep.mubr.bf16.mxu0 0
    %3495 = vmatmul.mubr.bf16.gmra.mrb[0].mxu0 %v3460
    %v3496 = vpop.f32.mrb[0].mxu0
    %v3497 = vadd.f32 0.0, %v3496
    %v3498 = vpop.f32.mrb[0].mxu0
    %v3499 = vadd.f32 0.0, %v3498
    %v3500 = vpop.f32.mrb[0].mxu0
    %v3501 = vpop.f32.mrb[0].mxu0
    %3502 = vdwg.mxu0
    %v3503 = vadd.f32 %v2081, %v3497
    %v3504 = vadd.f32 %v2083, %v3499
    %v3505 = vxor.u32 %v3503, 2147483648
    %v3506 = vxor.u32 %v3504, 2147483648
    %v3507 = vmul.f32 %v3505, 1.442695
    %v3508 = vpow.pop %v3507
    %v3509 = vmul.f32 %v3506, 1.442695
    %v3510 = vpow.pop %v3509
    %v3511 = vadd.f32 %v3508, 1.0
    %v3512 = vadd.f32 %v3510, 1.0
    %v3513 = vrcp.pop %v3511
    %v3514 = vmul.f32 1.0, %v3513
    %v3515 = vrcp.pop %v3512
    %v3516 = vmul.f32 1.0, %v3515
    %v3517 = vtanh.pop %v3504
    %v3518 = vmul.f32 %v3514, %v3451
    %3520 = vrot.lane.b32.xlu0 %v3517, 64
    %v3521 = vpop.permute.xlu0 %3520
    %v3523 = vmul.f32 %v3514, %v3521
    %3525 = vrot.lane.b32.xlu0 %v3523, 64
    %v3526 = vpop.permute.xlu0 %3525
    %v3528 = vadd.f32 %v3518, %v3526
    %v3529 = vtanh.pop %v3528
    %3531 = vrot.lane.b32.xlu0 %v3529, 64
    %v3532 = vpop.permute.xlu0 %3531
    %v3534 = vmul.f32 %v3516, %v3532
    %v3535 = vpack.c.bf16 %v3534, %v3534
    %v3537 = vsel %vm3227, %v3535, 0
    %3539 = vmatprep.subr.bf16.mxu0 %v3212
    %3540 = vmatpush1.bf16.msra.mxu0 %v3211
    %3541 = vmatprep.subr.bf16.mxu0 %v3214
    %3542 = vmatpush1.bf16.msra.mxu0 %v3213
    %3543 = vmatprep.subr.bf16.mxu0 %v3216
    %3544 = vmatpush1.bf16.msra.mxu0 %v3215
    %3545 = vmatprep.subr.bf16.mxu0 %v3218
    %3546 = vmatpush1.bf16.msra.mxu0 %v3217
    %3547 = vmatprep.subr.bf16.mxu0 0
    %3548 = vmatpush1.bf16.msra.mxu0 0
    %3549 = vmatprep.subr.bf16.mxu0 0
    %3550 = vmatpush1.bf16.msra.mxu0 0
    %3551 = vmatprep.subr.bf16.mxu0 0
    %3552 = vmatpush1.bf16.msra.mxu0 0
    %3553 = vmatprep.subr.bf16.mxu0 0
    %3554 = vmatpush1.bf16.msra.mxu0 0
    %3555 = vmatprep.subr.bf16.mxu0 0
    %3556 = vmatpush1.bf16.msra.mxu0 0
    %3557 = vmatprep.subr.bf16.mxu0 0
    %3558 = vmatpush1.bf16.msra.mxu0 0
    %3559 = vmatprep.subr.bf16.mxu0 0
    %3560 = vmatpush1.bf16.msra.mxu0 0
    %3561 = vmatprep.subr.bf16.mxu0 0
    %3562 = vmatpush1.bf16.msra.mxu0 0
    %3563 = vmatprep.subr.bf16.mxu0 0
    %3564 = vmatpush1.bf16.msra.mxu0 0
    %3565 = vmatprep.subr.bf16.mxu0 0
    %3566 = vmatpush1.bf16.msra.mxu0 0
    %3567 = vmatprep.subr.bf16.mxu0 0
    %3568 = vmatpush1.bf16.msra.mxu0 0
    %3569 = vmatprep.subr.bf16.mxu0 0
    %3570 = vmatpush1.bf16.msra.mxu0 0
    %3571 = vmatprep.mubr.bf16.mxu0 0
    %3572 = vmatmul.mubr.bf16.gmra.mrb[0].mxu0 %v3537
    %v3573 = vpop.f32.mrb[0].mxu0
    %v3574 = vadd.f32 0.0, %v3573
    %v3575 = vpop.f32.mrb[0].mxu0
    %v3576 = vadd.f32 0.0, %v3575
    %v3577 = vpop.f32.mrb[0].mxu0
    %v3578 = vpop.f32.mrb[0].mxu0
    %3579 = vdwg.mxu0
    %v3580 = vadd.f32 %v2354, %v3574
    %v3581 = vadd.f32 %v2356, %v3576
    %v3582 = vxor.u32 %v3580, 2147483648
    %v3583 = vxor.u32 %v3581, 2147483648
    %v3584 = vmul.f32 %v3582, 1.442695
    %v3585 = vpow.pop %v3584
    %v3586 = vmul.f32 %v3583, 1.442695
    %v3587 = vpow.pop %v3586
    %v3588 = vadd.f32 %v3585, 1.0
    %v3589 = vadd.f32 %v3587, 1.0
    %v3590 = vrcp.pop %v3588
    %v3591 = vmul.f32 1.0, %v3590
    %v3592 = vrcp.pop %v3589
    %v3593 = vmul.f32 1.0, %v3592
    %v3594 = vtanh.pop %v3581
    %v3595 = vmul.f32 %v3591, %v3528
    %3597 = vrot.lane.b32.xlu0 %v3594, 64
    %v3598 = vpop.permute.xlu0 %3597
    %v3600 = vmul.f32 %v3591, %v3598
    %3602 = vrot.lane.b32.xlu0 %v3600, 64
    %v3603 = vpop.permute.xlu0 %3602
    %v3605 = vadd.f32 %v3595, %v3603
    %v3606 = vtanh.pop %v3605
    %3608 = vrot.lane.b32.xlu0 %v3606, 64
    %v3609 = vpop.permute.xlu0 %3608
    %v3611 = vmul.f32 %v3593, %v3609
    %v3612 = vpack.c.bf16 %v3611, %v3611
    %v3614 = vsel %vm3227, %v3612, 0
    %3616 = vmatprep.subr.bf16.mxu0 %v3212
    %3617 = vmatpush1.bf16.msra.mxu0 %v3211
    %3618 = vmatprep.subr.bf16.mxu0 %v3214
    %3619 = vmatpush1.bf16.msra.mxu0 %v3213
    %3620 = vmatprep.subr.bf16.mxu0 %v3216
    %3621 = vmatpush1.bf16.msra.mxu0 %v3215
    %3622 = vmatprep.subr.bf16.mxu0 %v3218
    %3623 = vmatpush1.bf16.msra.mxu0 %v3217
    %3624 = vmatprep.subr.bf16.mxu0 0
    %3625 = vmatpush1.bf16.msra.mxu0 0
    %3626 = vmatprep.subr.bf16.mxu0 0
    %3627 = vmatpush1.bf16.msra.mxu0 0
    %3628 = vmatprep.subr.bf16.mxu0 0
    %3629 = vmatpush1.bf16.msra.mxu0 0
    %3630 = vmatprep.subr.bf16.mxu0 0
    %3631 = vmatpush1.bf16.msra.mxu0 0
    %3632 = vmatprep.subr.bf16.mxu0 0
    %3633 = vmatpush1.bf16.msra.mxu0 0
    %3634 = vmatprep.subr.bf16.mxu0 0
    %3635 = vmatpush1.bf16.msra.mxu0 0
    %3636 = vmatprep.subr.bf16.mxu0 0
    %3637 = vmatpush1.bf16.msra.mxu0 0
    %3638 = vmatprep.subr.bf16.mxu0 0
    %3639 = vmatpush1.bf16.msra.mxu0 0
    %3640 = vmatprep.subr.bf16.mxu0 0
    %3641 = vmatpush1.bf16.msra.mxu0 0
    %3642 = vmatprep.subr.bf16.mxu0 0
    %3643 = vmatpush1.bf16.msra.mxu0 0
    %3644 = vmatprep.subr.bf16.mxu0 0
    %3645 = vmatpush1.bf16.msra.mxu0 0
    %3646 = vmatprep.subr.bf16.mxu0 0
    %3647 = vmatpush1.bf16.msra.mxu0 0
    %3648 = vmatprep.mubr.bf16.mxu0 0
    %3649 = vmatmul.mubr.bf16.gmra.mrb[0].mxu0 %v3614
    %v3650 = vpop.f32.mrb[0].mxu0
    %v3651 = vadd.f32 0.0, %v3650
    %v3652 = vpop.f32.mrb[0].mxu0
    %v3653 = vadd.f32 0.0, %v3652
    %v3654 = vpop.f32.mrb[0].mxu0
    %v3655 = vpop.f32.mrb[0].mxu0
    %3656 = vdwg.mxu0
    %v3657 = vadd.f32 %v2627, %v3651
    %v3658 = vadd.f32 %v2629, %v3653
    %v3659 = vxor.u32 %v3657, 2147483648
    %v3660 = vxor.u32 %v3658, 2147483648
    %v3661 = vmul.f32 %v3659, 1.442695
    %v3662 = vpow.pop %v3661
    %v3663 = vmul.f32 %v3660, 1.442695
    %v3664 = vpow.pop %v3663
    %v3665 = vadd.f32 %v3662, 1.0
    %v3666 = vadd.f32 %v3664, 1.0
    %v3667 = vrcp.pop %v3665
    %v3668 = vmul.f32 1.0, %v3667
    %v3669 = vrcp.pop %v3666
    %v3670 = vmul.f32 1.0, %v3669
    %v3671 = vtanh.pop %v3658
    %v3672 = vmul.f32 %v3668, %v3605
    %3674 = vrot.lane.b32.xlu0 %v3671, 64
    %v3675 = vpop.permute.xlu0 %3674
    %v3677 = vmul.f32 %v3668, %v3675
    %3679 = vrot.lane.b32.xlu0 %v3677, 64
    %v3680 = vpop.permute.xlu0 %3679
    %v3682 = vadd.f32 %v3672, %v3680
    %v3683 = vtanh.pop %v3682
    %3685 = vrot.lane.b32.xlu0 %v3683, 64
    %v3686 = vpop.permute.xlu0 %3685
    %v3688 = vmul.f32 %v3670, %v3686
    %v3689 = vpack.c.bf16 %v3688, %v3688
    %v3691 = vsel %vm3227, %v3689, 0
    %3693 = vmatprep.subr.bf16.mxu0 %v3212
    %3694 = vmatpush1.bf16.msra.mxu0 %v3211
    %3695 = vmatprep.subr.bf16.mxu0 %v3214
    %3696 = vmatpush1.bf16.msra.mxu0 %v3213
    %3697 = vmatprep.subr.bf16.mxu0 %v3216
    %3698 = vmatpush1.bf16.msra.mxu0 %v3215
    %3699 = vmatprep.subr.bf16.mxu0 %v3218
    %3700 = vmatpush1.bf16.msra.mxu0 %v3217
    %3701 = vmatprep.subr.bf16.mxu0 0
    %3702 = vmatpush1.bf16.msra.mxu0 0
    %3703 = vmatprep.subr.bf16.mxu0 0
    %3704 = vmatpush1.bf16.msra.mxu0 0
    %3705 = vmatprep.subr.bf16.mxu0 0
    %3706 = vmatpush1.bf16.msra.mxu0 0
    %3707 = vmatprep.subr.bf16.mxu0 0
    %3708 = vmatpush1.bf16.msra.mxu0 0
    %3709 = vmatprep.subr.bf16.mxu0 0
    %3710 = vmatpush1.bf16.msra.mxu0 0
    %3711 = vmatprep.subr.bf16.mxu0 0
    %3712 = vmatpush1.bf16.msra.mxu0 0
    %3713 = vmatprep.subr.bf16.mxu0 0
    %3714 = vmatpush1.bf16.msra.mxu0 0
    %3715 = vmatprep.subr.bf16.mxu0 0
    %3716 = vmatpush1.bf16.msra.mxu0 0
    %3717 = vmatprep.subr.bf16.mxu0 0
    %3718 = vmatpush1.bf16.msra.mxu0 0
    %3719 = vmatprep.subr.bf16.mxu0 0
    %3720 = vmatpush1.bf16.msra.mxu0 0
    %3721 = vmatprep.subr.bf16.mxu0 0
    %3722 = vmatpush1.bf16.msra.mxu0 0
    %3723 = vmatprep.subr.bf16.mxu0 0
    %3724 = vmatpush1.bf16.msra.mxu0 0
    %3725 = vmatprep.mubr.bf16.mxu0 0
    %3726 = vmatmul.mubr.bf16.gmra.mrb[0].mxu0 %v3691
    %v3727 = vpop.f32.mrb[0].mxu0
    %v3728 = vadd.f32 0.0, %v3727
    %v3729 = vpop.f32.mrb[0].mxu0
    %v3730 = vadd.f32 0.0, %v3729
    %v3731 = vpop.f32.mrb[0].mxu0
    %v3732 = vpop.f32.mrb[0].mxu0
    %3733 = vdwg.mxu0
    %v3734 = vadd.f32 %v2900, %v3728
    %v3735 = vadd.f32 %v2902, %v3730
    %v3736 = vxor.u32 %v3734, 2147483648
    %v3737 = vxor.u32 %v3735, 2147483648
    %v3738 = vmul.f32 %v3736, 1.442695
    %v3739 = vpow.pop %v3738
    %v3740 = vmul.f32 %v3737, 1.442695
    %v3741 = vpow.pop %v3740
    %v3742 = vadd.f32 %v3739, 1.0
    %v3743 = vadd.f32 %v3741, 1.0
    %v3744 = vrcp.pop %v3742
    %v3745 = vmul.f32 1.0, %v3744
    %v3746 = vrcp.pop %v3743
    %v3747 = vmul.f32 1.0, %v3746
    %v3748 = vtanh.pop %v3735
    %v3749 = vmul.f32 %v3745, %v3682
    %3751 = vrot.lane.b32.xlu0 %v3748, 64
    %v3752 = vpop.permute.xlu0 %3751
    %v3754 = vmul.f32 %v3745, %v3752
    %3756 = vrot.lane.b32.xlu0 %v3754, 64
    %v3757 = vpop.permute.xlu0 %3756
    %v3759 = vadd.f32 %v3749, %v3757
    %v3760 = vtanh.pop %v3759
    %3762 = vrot.lane.b32.xlu0 %v3760, 64
    %v3763 = vpop.permute.xlu0 %3762
    %v3765 = vmul.f32 %v3747, %v3763
    %v3766 = vpack.c.bf16 %v3765, %v3765
    %v3768 = vsel %vm3227, %v3766, 0
    %3770 = vmatprep.subr.bf16.mxu0 %v3212
    %3771 = vmatpush1.bf16.msra.mxu0 %v3211
    %3772 = vmatprep.subr.bf16.mxu0 %v3214
    %3773 = vmatpush1.bf16.msra.mxu0 %v3213
    %3774 = vmatprep.subr.bf16.mxu0 %v3216
    %3775 = vmatpush1.bf16.msra.mxu0 %v3215
    %3776 = vmatprep.subr.bf16.mxu0 %v3218
    %3777 = vmatpush1.bf16.msra.mxu0 %v3217
    %3778 = vmatprep.subr.bf16.mxu0 0
    %3779 = vmatpush1.bf16.msra.mxu0 0
    %3780 = vmatprep.subr.bf16.mxu0 0
    %3781 = vmatpush1.bf16.msra.mxu0 0
    %3782 = vmatprep.subr.bf16.mxu0 0
    %3783 = vmatpush1.bf16.msra.mxu0 0
    %3784 = vmatprep.subr.bf16.mxu0 0
    %3785 = vmatpush1.bf16.msra.mxu0 0
    %3786 = vmatprep.subr.bf16.mxu0 0
    %3787 = vmatpush1.bf16.msra.mxu0 0
    %3788 = vmatprep.subr.bf16.mxu0 0
    %3789 = vmatpush1.bf16.msra.mxu0 0
    %3790 = vmatprep.subr.bf16.mxu0 0
    %3791 = vmatpush1.bf16.msra.mxu0 0
    %3792 = vmatprep.subr.bf16.mxu0 0
    %3793 = vmatpush1.bf16.msra.mxu0 0
    %3794 = vmatprep.subr.bf16.mxu0 0
    %3795 = vmatpush1.bf16.msra.mxu0 0
    %3796 = vmatprep.subr.bf16.mxu0 0
    %3797 = vmatpush1.bf16.msra.mxu0 0
    %3798 = vmatprep.subr.bf16.mxu0 0
    %3799 = vmatpush1.bf16.msra.mxu0 0
    %3800 = vmatprep.subr.bf16.mxu0 0
    %3801 = vmatpush1.bf16.msra.mxu0 0
    %3802 = vmatprep.mubr.bf16.mxu0 0
    %3803 = vmatmul.mubr.bf16.gmra.mrb[0].mxu0 %v3768
    %v3804 = vpop.f32.mrb[0].mxu0
    %v3805 = vadd.f32 0.0, %v3804
    %v3806 = vpop.f32.mrb[0].mxu0
    %v3807 = vadd.f32 0.0, %v3806
    %v3808 = vpop.f32.mrb[0].mxu0
    %v3809 = vpop.f32.mrb[0].mxu0
    %3810 = vdwg.mxu0
    %v3811 = vadd.f32 %v3173, %v3805
    %v3812 = vadd.f32 %v3175, %v3807
    %v3813 = vxor.u32 %v3811, 2147483648
    %v3814 = vxor.u32 %v3812, 2147483648
    %v3815 = vmul.f32 %v3813, 1.442695
    %v3816 = vpow.pop %v3815
    %v3817 = vmul.f32 %v3814, 1.442695
    %v3818 = vpow.pop %v3817
    %v3819 = vadd.f32 %v3816, 1.0
    %v3820 = vadd.f32 %v3818, 1.0
    %v3821 = vrcp.pop %v3819
    %v3822 = vmul.f32 1.0, %v3821
    %v3823 = vrcp.pop %v3820
    %v3824 = vmul.f32 1.0, %v3823
    %v3825 = vtanh.pop %v3812
    %v3826 = vmul.f32 %v3822, %v3759
    %3828 = vrot.lane.b32.xlu0 %v3825, 64
    %v3829 = vpop.permute.xlu0 %3828
    %v3831 = vmul.f32 %v3822, %v3829
    %3833 = vrot.lane.b32.xlu0 %v3831, 64
    %v3834 = vpop.permute.xlu0 %3833
    %v3836 = vadd.f32 %v3826, %v3834
    %v3837 = vtanh.pop %v3836
    %3839 = vrot.lane.b32.xlu0 %v3837, 64
    %v3840 = vpop.permute.xlu0 %3839
    %v3842 = vmul.f32 %v3824, %v3840
    %v3843 = vld [vmem:[%s3] sm:$0xff]
    %v3844 = vld [vmem:[%s3 + $0x8] sm:$0xff]
    %v3845 = vld [vmem:[%s3 + $0x10] sm:$0xff]
    %v3846 = vld [vmem:[%s3 + $0x18] sm:$0xff]
    %v3847 = vld [vmem:[%s3 + $0x20] sm:$0xff]
    %v3848 = vld [vmem:[%s3 + $0x28] sm:$0xff]
    %v3849 = vld [vmem:[%s3 + $0x30] sm:$0xff]
    %v3850 = vld [vmem:[%s3 + $0x38] sm:$0xff]
    %v3851 = vld [vmem:[%s3 + $0x40] sm:$0xff]
    %v3852 = vld [vmem:[%s3 + $0x48] sm:$0xff]
    %v3853 = vld [vmem:[%s3 + $0x50] sm:$0xff]
    %v3854 = vld [vmem:[%s3 + $0x58] sm:$0xff]
    %v3855 = vld [vmem:[%s3 + $0x60] sm:$0xff]
    %v3856 = vld [vmem:[%s3 + $0x68] sm:$0xff]
    %v3857 = vld [vmem:[%s3 + $0x70] sm:$0xff]
    %v3858 = vld [vmem:[%s3 + $0x78] sm:$0xff]
    %v3859 = vld [vmem:[%s3 + $0x80] sm:$0xff]
    %v3860 = vld [vmem:[%s3 + $0x88] sm:$0xff]
    %v3861 = vld [vmem:[%s3 + $0x90] sm:$0xff]
    %v3862 = vld [vmem:[%s3 + $0x98] sm:$0xff]
    %v3863 = vld [vmem:[%s3 + $0xa0] sm:$0xff]
    %v3864 = vld [vmem:[%s3 + $0xa8] sm:$0xff]
    %v3865 = vld [vmem:[%s3 + $0xb0] sm:$0xff]
    %v3866 = vld [vmem:[%s3 + $0xb8] sm:$0xff]
    %v3867 = vld [vmem:[%s3 + $0xc0] sm:$0xff]
    %v3868 = vld [vmem:[%s3 + $0xc8] sm:$0xff]
    %v3869 = vld [vmem:[%s3 + $0xd0] sm:$0xff]
    %v3870 = vld [vmem:[%s3 + $0xd8] sm:$0xff]
    %v3871 = vld [vmem:[%s3 + $0xe0] sm:$0xff]
    %v3872 = vld [vmem:[%s3 + $0xe8] sm:$0xff]
    %v3873 = vld [vmem:[%s3 + $0xf0] sm:$0xff]
    %v3874 = vld [vmem:[%s3 + $0xf8] sm:$0xff]
    %v3875 = vld [vmem:[%s3 + $0x100] sm:$0xff]
    %v3876 = vld [vmem:[%s3 + $0x108] sm:$0xff]
    %v3877 = vld [vmem:[%s3 + $0x110] sm:$0xff]
    %v3878 = vld [vmem:[%s3 + $0x118] sm:$0xff]
    %v3879 = vld [vmem:[%s3 + $0x120] sm:$0xff]
    %v3880 = vld [vmem:[%s3 + $0x128] sm:$0xff]
    %v3881 = vld [vmem:[%s3 + $0x130] sm:$0xff]
    %v3882 = vld [vmem:[%s3 + $0x138] sm:$0xff]
    %v3883 = vld [vmem:[%s3 + $0x140] sm:$0xff]
    %v3884 = vld [vmem:[%s3 + $0x148] sm:$0xff]
    %v3885 = vld [vmem:[%s3 + $0x150] sm:$0xff]
    %v3886 = vld [vmem:[%s3 + $0x158] sm:$0xff]
    %v3887 = vld [vmem:[%s3 + $0x160] sm:$0xff]
    %v3888 = vld [vmem:[%s3 + $0x168] sm:$0xff]
    %v3889 = vld [vmem:[%s3 + $0x170] sm:$0xff]
    %v3890 = vld [vmem:[%s3 + $0x178] sm:$0xff]
    %v3891 = vld [vmem:[%s3 + $0x180] sm:$0xff]
    %v3892 = vld [vmem:[%s3 + $0x188] sm:$0xff]
    %v3893 = vld [vmem:[%s3 + $0x190] sm:$0xff]
    %v3894 = vld [vmem:[%s3 + $0x198] sm:$0xff]
    %v3895 = vld [vmem:[%s3 + $0x1a0] sm:$0xff]
    %v3896 = vld [vmem:[%s3 + $0x1a8] sm:$0xff]
    %v3897 = vld [vmem:[%s3 + $0x1b0] sm:$0xff]
    %v3898 = vld [vmem:[%s3 + $0x1b8] sm:$0xff]
    %v3899 = vld [vmem:[%s3 + $0x1c0] sm:$0xff]
    %v3900 = vld [vmem:[%s3 + $0x1c8] sm:$0xff]
    %v3901 = vld [vmem:[%s3 + $0x1d0] sm:$0xff]
    %v3902 = vld [vmem:[%s3 + $0x1d8] sm:$0xff]
    %v3903 = vld [vmem:[%s3 + $0x1e0] sm:$0xff]
    %v3904 = vld [vmem:[%s3 + $0x1e8] sm:$0xff]
    %v3905 = vld [vmem:[%s3 + $0x1f0] sm:$0xff]
    %v3906 = vld [vmem:[%s3 + $0x1f8] sm:$0xff]
    %v3907 = vld [vmem:[%s3 + $0x200] sm:$0xff]
    %v3908 = vld [vmem:[%s3 + $0x208] sm:$0xff]
    %v3909 = vld [vmem:[%s3 + $0x210] sm:$0xff]
    %v3910 = vld [vmem:[%s3 + $0x218] sm:$0xff]
    %v3911 = vld [vmem:[%s3 + $0x220] sm:$0xff]
    %v3912 = vld [vmem:[%s3 + $0x228] sm:$0xff]
    %v3913 = vld [vmem:[%s3 + $0x230] sm:$0xff]
    %v3914 = vld [vmem:[%s3 + $0x238] sm:$0xff]
    %v3915 = vld [vmem:[%s3 + $0x240] sm:$0xff]
    %v3916 = vld [vmem:[%s3 + $0x248] sm:$0xff]
    %v3917 = vld [vmem:[%s3 + $0x250] sm:$0xff]
    %v3918 = vld [vmem:[%s3 + $0x258] sm:$0xff]
    %v3919 = vld [vmem:[%s3 + $0x260] sm:$0xff]
    %v3920 = vld [vmem:[%s3 + $0x268] sm:$0xff]
    %v3921 = vld [vmem:[%s3 + $0x270] sm:$0xff]
    %v3922 = vld [vmem:[%s3 + $0x278] sm:$0xff]
    %v3923 = vld [vmem:[%s3 + $0x280] sm:$0xff]
    %v3924 = vld [vmem:[%s3 + $0x288] sm:$0xff]
    %v3925 = vld [vmem:[%s3 + $0x290] sm:$0xff]
    %v3926 = vld [vmem:[%s3 + $0x298] sm:$0xff]
    %v3927 = vld [vmem:[%s3 + $0x2a0] sm:$0xff]
    %v3928 = vld [vmem:[%s3 + $0x2a8] sm:$0xff]
    %v3929 = vld [vmem:[%s3 + $0x2b0] sm:$0xff]
    %v3930 = vld [vmem:[%s3 + $0x2b8] sm:$0xff]
    %v3931 = vld [vmem:[%s3 + $0x2c0] sm:$0xff]
    %v3932 = vld [vmem:[%s3 + $0x2c8] sm:$0xff]
    %v3933 = vld [vmem:[%s3 + $0x2d0] sm:$0xff]
    %v3934 = vld [vmem:[%s3 + $0x2d8] sm:$0xff]
    %v3935 = vld [vmem:[%s3 + $0x2e0] sm:$0xff]
    %v3936 = vld [vmem:[%s3 + $0x2e8] sm:$0xff]
    %v3937 = vld [vmem:[%s3 + $0x2f0] sm:$0xff]
    %v3938 = vld [vmem:[%s3 + $0x2f8] sm:$0xff]
    %v3939 = vld [vmem:[%s3 + $0x300] sm:$0xff]
    %v3940 = vld [vmem:[%s3 + $0x308] sm:$0xff]
    %v3941 = vld [vmem:[%s3 + $0x310] sm:$0xff]
    %v3942 = vld [vmem:[%s3 + $0x318] sm:$0xff]
    %v3943 = vld [vmem:[%s3 + $0x320] sm:$0xff]
    %v3944 = vld [vmem:[%s3 + $0x328] sm:$0xff]
    %v3945 = vld [vmem:[%s3 + $0x330] sm:$0xff]
    %v3946 = vld [vmem:[%s3 + $0x338] sm:$0xff]
    %v3947 = vld [vmem:[%s3 + $0x340] sm:$0xff]
    %v3948 = vld [vmem:[%s3 + $0x348] sm:$0xff]
    %v3949 = vld [vmem:[%s3 + $0x350] sm:$0xff]
    %v3950 = vld [vmem:[%s3 + $0x358] sm:$0xff]
    %v3951 = vld [vmem:[%s3 + $0x360] sm:$0xff]
    %v3952 = vld [vmem:[%s3 + $0x368] sm:$0xff]
    %v3953 = vld [vmem:[%s3 + $0x370] sm:$0xff]
    %v3954 = vld [vmem:[%s3 + $0x378] sm:$0xff]
    %v3955 = vld [vmem:[%s3 + $0x380] sm:$0xff]
    %v3956 = vld [vmem:[%s3 + $0x388] sm:$0xff]
    %v3957 = vld [vmem:[%s3 + $0x390] sm:$0xff]
    %v3958 = vld [vmem:[%s3 + $0x398] sm:$0xff]
    %v3959 = vld [vmem:[%s3 + $0x3a0] sm:$0xff]
    %v3960 = vld [vmem:[%s3 + $0x3a8] sm:$0xff]
    %v3961 = vld [vmem:[%s3 + $0x3b0] sm:$0xff]
    %v3962 = vld [vmem:[%s3 + $0x3b8] sm:$0xff]
    %v3963 = vld [vmem:[%s3 + $0x3c0] sm:$0xff]
    %v3964 = vld [vmem:[%s3 + $0x3c8] sm:$0xff]
    %v3965 = vld [vmem:[%s3 + $0x3d0] sm:$0xff]
    %v3966 = vld [vmem:[%s3 + $0x3d8] sm:$0xff]
    %v3967 = vld [vmem:[%s3 + $0x3e0] sm:$0xff]
    %v3968 = vld [vmem:[%s3 + $0x3e8] sm:$0xff]
    %v3969 = vld [vmem:[%s3 + $0x3f0] sm:$0xff]
    %v3970 = vld [vmem:[%s3 + $0x3f8] sm:$0xff]
    %v3971 = vld [vmem:[%s3 + $0x400] sm:$0xff]
    %v3972 = vld [vmem:[%s3 + $0x408] sm:$0xff]
    %v3973 = vld [vmem:[%s3 + $0x410] sm:$0xff]
    %v3974 = vld [vmem:[%s3 + $0x418] sm:$0xff]
    %v3975 = vld [vmem:[%s3 + $0x420] sm:$0xff]
    %v3976 = vld [vmem:[%s3 + $0x428] sm:$0xff]
    %v3977 = vld [vmem:[%s3 + $0x430] sm:$0xff]
    %v3978 = vld [vmem:[%s3 + $0x438] sm:$0xff]
    %v3979 = vld [vmem:[%s3 + $0x440] sm:$0xff]
    %v3980 = vld [vmem:[%s3 + $0x448] sm:$0xff]
    %v3981 = vld [vmem:[%s3 + $0x450] sm:$0xff]
    %v3982 = vld [vmem:[%s3 + $0x458] sm:$0xff]
    %v3983 = vld [vmem:[%s3 + $0x460] sm:$0xff]
    %v3984 = vld [vmem:[%s3 + $0x468] sm:$0xff]
    %v3985 = vld [vmem:[%s3 + $0x470] sm:$0xff]
    %v3986 = vld [vmem:[%s3 + $0x478] sm:$0xff]
    %v3987 = vld [vmem:[%s3 + $0x480] sm:$0xff]
    %v3988 = vld [vmem:[%s3 + $0x488] sm:$0xff]
    %v3989 = vld [vmem:[%s3 + $0x490] sm:$0xff]
    %v3990 = vld [vmem:[%s3 + $0x498] sm:$0xff]
    %v3991 = vld [vmem:[%s3 + $0x4a0] sm:$0xff]
    %v3992 = vld [vmem:[%s3 + $0x4a8] sm:$0xff]
    %v3993 = vld [vmem:[%s3 + $0x4b0] sm:$0xff]
    %v3994 = vld [vmem:[%s3 + $0x4b8] sm:$0xff]
    %v3995 = vld [vmem:[%s3 + $0x4c0] sm:$0xff]
    %v3996 = vld [vmem:[%s3 + $0x4c8] sm:$0xff]
    %v3997 = vld [vmem:[%s3 + $0x4d0] sm:$0xff]
    %v3998 = vld [vmem:[%s3 + $0x4d8] sm:$0xff]
    %v3999 = vld [vmem:[%s3 + $0x4e0] sm:$0xff]
    %v4000 = vld [vmem:[%s3 + $0x4e8] sm:$0xff]
    %v4001 = vld [vmem:[%s3 + $0x4f0] sm:$0xff]
    %v4002 = vld [vmem:[%s3 + $0x4f8] sm:$0xff]
    %v4003 = vlaneseq
    %v4004 = vshrl.u32 %v4003, 7
    %v4005 = vsub.s32 1, %v4004
    %v4006 = vrot.slane %v25, %v4005
    %v4007 = vlaneseq
    %v4008 = vshrl.u32 %v4007, 7
    %v4009 = vsub.s32 1, %v4008
    %v4010 = vrot.slane %v26, %v4009
    %v4171 = vunpack.c.l.b16 %v3843
    %v4172 = vunpack.c.h.b16 %v3843
    %v4173 = vunpack.c.l.b16 %v3844
    %v4174 = vunpack.c.h.b16 %v3844
    %v4175 = vunpack.c.l.b16 %v3845
    %v4176 = vunpack.c.h.b16 %v3845
    %v4177 = vunpack.c.l.b16 %v3846
    %v4178 = vunpack.c.h.b16 %v3846
    %v4179 = vunpack.c.l.b16 %v3847
    %v4180 = vunpack.c.h.b16 %v3847
    %v4181 = vunpack.c.l.b16 %v3848
    %v4182 = vunpack.c.h.b16 %v3848
    %v4183 = vunpack.c.l.b16 %v3849
    %v4184 = vunpack.c.h.b16 %v3849
    %v4185 = vunpack.c.l.b16 %v3850
    %v4186 = vunpack.c.h.b16 %v3850
    %v4187 = vunpack.c.l.b16 %v3851
    %v4188 = vunpack.c.h.b16 %v3851
    %v4189 = vunpack.c.l.b16 %v3852
    %v4190 = vunpack.c.h.b16 %v3852
    %v4191 = vunpack.c.l.b16 %v3853
    %v4192 = vunpack.c.h.b16 %v3853
    %v4193 = vunpack.c.l.b16 %v3854
    %v4194 = vunpack.c.h.b16 %v3854
    %v4195 = vunpack.c.l.b16 %v3855
    %v4196 = vunpack.c.h.b16 %v3855
    %v4197 = vunpack.c.l.b16 %v3856
    %v4198 = vunpack.c.h.b16 %v3856
    %v4199 = vunpack.c.l.b16 %v3857
    %v4200 = vunpack.c.h.b16 %v3857
    %v4201 = vunpack.c.l.b16 %v3858
    %v4202 = vunpack.c.h.b16 %v3858
    %v4203 = vunpack.c.l.b16 %v3859
    %v4204 = vunpack.c.h.b16 %v3859
    %v4205 = vunpack.c.l.b16 %v3860
    %v4206 = vunpack.c.h.b16 %v3860
    %v4207 = vunpack.c.l.b16 %v3861
    %v4208 = vunpack.c.h.b16 %v3861
    %v4209 = vunpack.c.l.b16 %v3862
    %v4210 = vunpack.c.h.b16 %v3862
    %v4211 = vunpack.c.l.b16 %v3863
    %v4212 = vunpack.c.h.b16 %v3863
    %v4213 = vunpack.c.l.b16 %v3864
    %v4214 = vunpack.c.h.b16 %v3864
    %v4215 = vunpack.c.l.b16 %v3865
    %v4216 = vunpack.c.h.b16 %v3865
    %v4217 = vunpack.c.l.b16 %v3866
    %v4218 = vunpack.c.h.b16 %v3866
    %v4219 = vunpack.c.l.b16 %v3867
    %v4220 = vunpack.c.h.b16 %v3867
    %v4221 = vunpack.c.l.b16 %v3868
    %v4222 = vunpack.c.h.b16 %v3868
    %v4223 = vunpack.c.l.b16 %v3869
    %v4224 = vunpack.c.h.b16 %v3869
    %v4225 = vunpack.c.l.b16 %v3870
    %v4226 = vunpack.c.h.b16 %v3870
    %v4227 = vunpack.c.l.b16 %v3871
    %v4228 = vunpack.c.h.b16 %v3871
    %v4229 = vunpack.c.l.b16 %v3872
    %v4230 = vunpack.c.h.b16 %v3872
    %v4231 = vunpack.c.l.b16 %v3873
    %v4232 = vunpack.c.h.b16 %v3873
    %v4233 = vunpack.c.l.b16 %v3874
    %v4234 = vunpack.c.h.b16 %v3874
    %v4235 = vunpack.c.l.b16 %v3875
    %v4236 = vunpack.c.h.b16 %v3875
    %v4237 = vunpack.c.l.b16 %v3876
    %v4238 = vunpack.c.h.b16 %v3876
    %v4239 = vunpack.c.l.b16 %v3877
    %v4240 = vunpack.c.h.b16 %v3877
    %v4241 = vunpack.c.l.b16 %v3878
    %v4242 = vunpack.c.h.b16 %v3878
    %v4243 = vunpack.c.l.b16 %v3879
    %v4244 = vunpack.c.h.b16 %v3879
    %v4245 = vunpack.c.l.b16 %v3880
    %v4246 = vunpack.c.h.b16 %v3880
    %v4247 = vunpack.c.l.b16 %v3881
    %v4248 = vunpack.c.h.b16 %v3881
    %v4249 = vunpack.c.l.b16 %v3882
    %v4250 = vunpack.c.h.b16 %v3882
    %v4251 = vunpack.c.l.b16 %v3883
    %v4252 = vunpack.c.h.b16 %v3883
    %v4253 = vunpack.c.l.b16 %v3884
    %v4254 = vunpack.c.h.b16 %v3884
    %v4255 = vunpack.c.l.b16 %v3885
    %v4256 = vunpack.c.h.b16 %v3885
    %v4257 = vunpack.c.l.b16 %v3886
    %v4258 = vunpack.c.h.b16 %v3886
    %v4259 = vunpack.c.l.b16 %v3887
    %v4260 = vunpack.c.h.b16 %v3887
    %v4261 = vunpack.c.l.b16 %v3888
    %v4262 = vunpack.c.h.b16 %v3888
    %v4263 = vunpack.c.l.b16 %v3889
    %v4264 = vunpack.c.h.b16 %v3889
    %v4265 = vunpack.c.l.b16 %v3890
    %v4266 = vunpack.c.h.b16 %v3890
    %v4267 = vunpack.c.l.b16 %v3891
    %v4268 = vunpack.c.h.b16 %v3891
    %v4269 = vunpack.c.l.b16 %v3892
    %v4270 = vunpack.c.h.b16 %v3892
    %v4271 = vunpack.c.l.b16 %v3893
    %v4272 = vunpack.c.h.b16 %v3893
    %v4273 = vunpack.c.l.b16 %v3894
    %v4274 = vunpack.c.h.b16 %v3894
    %v4275 = vunpack.c.l.b16 %v3895
    %v4276 = vunpack.c.h.b16 %v3895
    %v4277 = vunpack.c.l.b16 %v3896
    %v4278 = vunpack.c.h.b16 %v3896
    %v4279 = vunpack.c.l.b16 %v3897
    %v4280 = vunpack.c.h.b16 %v3897
    %v4281 = vunpack.c.l.b16 %v3898
    %v4282 = vunpack.c.h.b16 %v3898
    %v4283 = vunpack.c.l.b16 %v3899
    %v4284 = vunpack.c.h.b16 %v3899
    %v4285 = vunpack.c.l.b16 %v3900
    %v4286 = vunpack.c.h.b16 %v3900
    %v4287 = vunpack.c.l.b16 %v3901
    %v4288 = vunpack.c.h.b16 %v3901
    %v4289 = vunpack.c.l.b16 %v3902
    %v4290 = vunpack.c.h.b16 %v3902
    %v4291 = vunpack.c.l.b16 %v3903
    %v4292 = vunpack.c.h.b16 %v3903
    %v4293 = vunpack.c.l.b16 %v3904
    %v4294 = vunpack.c.h.b16 %v3904
    %v4295 = vunpack.c.l.b16 %v3905
    %v4296 = vunpack.c.h.b16 %v3905
    %v4297 = vunpack.c.l.b16 %v3906
    %v4298 = vunpack.c.h.b16 %v3906
    %v4299 = vunpack.c.l.b16 %v3907
    %v4300 = vunpack.c.h.b16 %v3907
    %v4301 = vunpack.c.l.b16 %v3908
    %v4302 = vunpack.c.h.b16 %v3908
    %v4303 = vunpack.c.l.b16 %v3909
    %v4304 = vunpack.c.h.b16 %v3909
    %v4305 = vunpack.c.l.b16 %v3910
    %v4306 = vunpack.c.h.b16 %v3910
    %v4307 = vunpack.c.l.b16 %v3911
    %v4308 = vunpack.c.h.b16 %v3911
    %v4309 = vunpack.c.l.b16 %v3912
    %v4310 = vunpack.c.h.b16 %v3912
    %v4311 = vunpack.c.l.b16 %v3913
    %v4312 = vunpack.c.h.b16 %v3913
    %v4313 = vunpack.c.l.b16 %v3914
    %v4314 = vunpack.c.h.b16 %v3914
    %v4315 = vunpack.c.l.b16 %v3915
    %v4316 = vunpack.c.h.b16 %v3915
    %v4317 = vunpack.c.l.b16 %v3916
    %v4318 = vunpack.c.h.b16 %v3916
    %v4319 = vunpack.c.l.b16 %v3917
    %v4320 = vunpack.c.h.b16 %v3917
    %v4321 = vunpack.c.l.b16 %v3918
    %v4322 = vunpack.c.h.b16 %v3918
    %v4323 = vunpack.c.l.b16 %v3919
    %v4324 = vunpack.c.h.b16 %v3919
    %v4325 = vunpack.c.l.b16 %v3920
    %v4326 = vunpack.c.h.b16 %v3920
    %v4327 = vunpack.c.l.b16 %v3921
    %v4328 = vunpack.c.h.b16 %v3921
    %v4329 = vunpack.c.l.b16 %v3922
    %v4330 = vunpack.c.h.b16 %v3922
    %v4331 = vunpack.c.l.b16 %v3923
    %v4332 = vunpack.c.h.b16 %v3923
    %v4333 = vunpack.c.l.b16 %v3924
    %v4334 = vunpack.c.h.b16 %v3924
    %v4335 = vunpack.c.l.b16 %v3925
    %v4336 = vunpack.c.h.b16 %v3925
    %v4337 = vunpack.c.l.b16 %v3926
    %v4338 = vunpack.c.h.b16 %v3926
    %v4339 = vunpack.c.l.b16 %v3927
    %v4340 = vunpack.c.h.b16 %v3927
    %v4341 = vunpack.c.l.b16 %v3928
    %v4342 = vunpack.c.h.b16 %v3928
    %v4343 = vunpack.c.l.b16 %v3929
    %v4344 = vunpack.c.h.b16 %v3929
    %v4345 = vunpack.c.l.b16 %v3930
    %v4346 = vunpack.c.h.b16 %v3930
    %v4347 = vunpack.c.l.b16 %v3931
    %v4348 = vunpack.c.h.b16 %v3931
    %v4349 = vunpack.c.l.b16 %v3932
    %v4350 = vunpack.c.h.b16 %v3932
    %v4351 = vunpack.c.l.b16 %v3933
    %v4352 = vunpack.c.h.b16 %v3933
    %v4353 = vunpack.c.l.b16 %v3934
    %v4354 = vunpack.c.h.b16 %v3934
    %v4355 = vunpack.c.l.b16 %v3935
    %v4356 = vunpack.c.h.b16 %v3935
    %v4357 = vunpack.c.l.b16 %v3936
    %v4358 = vunpack.c.h.b16 %v3936
    %v4359 = vunpack.c.l.b16 %v3937
    %v4360 = vunpack.c.h.b16 %v3937
    %v4361 = vunpack.c.l.b16 %v3938
    %v4362 = vunpack.c.h.b16 %v3938
    %v4363 = vunpack.c.l.b16 %v3939
    %v4364 = vunpack.c.h.b16 %v3939
    %v4365 = vunpack.c.l.b16 %v3940
    %v4366 = vunpack.c.h.b16 %v3940
    %v4367 = vunpack.c.l.b16 %v3941
    %v4368 = vunpack.c.h.b16 %v3941
    %v4369 = vunpack.c.l.b16 %v3942
    %v4370 = vunpack.c.h.b16 %v3942
    %v4371 = vunpack.c.l.b16 %v3943
    %v4372 = vunpack.c.h.b16 %v3943
    %v4373 = vunpack.c.l.b16 %v3944
    %v4374 = vunpack.c.h.b16 %v3944
    %v4375 = vunpack.c.l.b16 %v3945
    %v4376 = vunpack.c.h.b16 %v3945
    %v4377 = vunpack.c.l.b16 %v3946
    %v4378 = vunpack.c.h.b16 %v3946
    %v4379 = vunpack.c.l.b16 %v3947
    %v4380 = vunpack.c.h.b16 %v3947
    %v4381 = vunpack.c.l.b16 %v3948
    %v4382 = vunpack.c.h.b16 %v3948
    %v4383 = vunpack.c.l.b16 %v3949
    %v4384 = vunpack.c.h.b16 %v3949
    %v4385 = vunpack.c.l.b16 %v3950
    %v4386 = vunpack.c.h.b16 %v3950
    %v4387 = vunpack.c.l.b16 %v3951
    %v4388 = vunpack.c.h.b16 %v3951
    %v4389 = vunpack.c.l.b16 %v3952
    %v4390 = vunpack.c.h.b16 %v3952
    %v4391 = vunpack.c.l.b16 %v3953
    %v4392 = vunpack.c.h.b16 %v3953
    %v4393 = vunpack.c.l.b16 %v3954
    %v4394 = vunpack.c.h.b16 %v3954
    %v4395 = vunpack.c.l.b16 %v3955
    %v4396 = vunpack.c.h.b16 %v3955
    %v4397 = vunpack.c.l.b16 %v3956
    %v4398 = vunpack.c.h.b16 %v3956
    %v4399 = vunpack.c.l.b16 %v3957
    %v4400 = vunpack.c.h.b16 %v3957
    %v4401 = vunpack.c.l.b16 %v3958
    %v4402 = vunpack.c.h.b16 %v3958
    %v4403 = vunpack.c.l.b16 %v3959
    %v4404 = vunpack.c.h.b16 %v3959
    %v4405 = vunpack.c.l.b16 %v3960
    %v4406 = vunpack.c.h.b16 %v3960
    %v4407 = vunpack.c.l.b16 %v3961
    %v4408 = vunpack.c.h.b16 %v3961
    %v4409 = vunpack.c.l.b16 %v3962
    %v4410 = vunpack.c.h.b16 %v3962
    %v4411 = vunpack.c.l.b16 %v3963
    %v4412 = vunpack.c.h.b16 %v3963
    %v4413 = vunpack.c.l.b16 %v3964
    %v4414 = vunpack.c.h.b16 %v3964
    %v4415 = vunpack.c.l.b16 %v3965
    %v4416 = vunpack.c.h.b16 %v3965
    %v4417 = vunpack.c.l.b16 %v3966
    %v4418 = vunpack.c.h.b16 %v3966
    %v4419 = vunpack.c.l.b16 %v3967
    %v4420 = vunpack.c.h.b16 %v3967
    %v4421 = vunpack.c.l.b16 %v3968
    %v4422 = vunpack.c.h.b16 %v3968
    %v4423 = vunpack.c.l.b16 %v3969
    %v4424 = vunpack.c.h.b16 %v3969
    %v4425 = vunpack.c.l.b16 %v3970
    %v4426 = vunpack.c.h.b16 %v3970
    %v4427 = vunpack.c.l.b16 %v3971
    %v4428 = vunpack.c.h.b16 %v3971
    %v4429 = vunpack.c.l.b16 %v3972
    %v4430 = vunpack.c.h.b16 %v3972
    %v4431 = vunpack.c.l.b16 %v3973
    %v4432 = vunpack.c.h.b16 %v3973
    %v4433 = vunpack.c.l.b16 %v3974
    %v4434 = vunpack.c.h.b16 %v3974
    %v4435 = vunpack.c.l.b16 %v3975
    %v4436 = vunpack.c.h.b16 %v3975
    %v4437 = vunpack.c.l.b16 %v3976
    %v4438 = vunpack.c.h.b16 %v3976
    %v4439 = vunpack.c.l.b16 %v3977
    %v4440 = vunpack.c.h.b16 %v3977
    %v4441 = vunpack.c.l.b16 %v3978
    %v4442 = vunpack.c.h.b16 %v3978
    %v4443 = vunpack.c.l.b16 %v3979
    %v4444 = vunpack.c.h.b16 %v3979
    %v4445 = vunpack.c.l.b16 %v3980
    %v4446 = vunpack.c.h.b16 %v3980
    %v4447 = vunpack.c.l.b16 %v3981
    %v4448 = vunpack.c.h.b16 %v3981
    %v4449 = vunpack.c.l.b16 %v3982
    %v4450 = vunpack.c.h.b16 %v3982
    %v4451 = vunpack.c.l.b16 %v3983
    %v4452 = vunpack.c.h.b16 %v3983
    %v4453 = vunpack.c.l.b16 %v3984
    %v4454 = vunpack.c.h.b16 %v3984
    %v4455 = vunpack.c.l.b16 %v3985
    %v4456 = vunpack.c.h.b16 %v3985
    %v4457 = vunpack.c.l.b16 %v3986
    %v4458 = vunpack.c.h.b16 %v3986
    %v4459 = vunpack.c.l.b16 %v3987
    %v4460 = vunpack.c.h.b16 %v3987
    %v4461 = vunpack.c.l.b16 %v3988
    %v4462 = vunpack.c.h.b16 %v3988
    %v4463 = vunpack.c.l.b16 %v3989
    %v4464 = vunpack.c.h.b16 %v3989
    %v4465 = vunpack.c.l.b16 %v3990
    %v4466 = vunpack.c.h.b16 %v3990
    %v4467 = vunpack.c.l.b16 %v3991
    %v4468 = vunpack.c.h.b16 %v3991
    %v4469 = vunpack.c.l.b16 %v3992
    %v4470 = vunpack.c.h.b16 %v3992
    %v4471 = vunpack.c.l.b16 %v3993
    %v4472 = vunpack.c.h.b16 %v3993
    %v4473 = vunpack.c.l.b16 %v3994
    %v4474 = vunpack.c.h.b16 %v3994
    %v4475 = vunpack.c.l.b16 %v3995
    %v4476 = vunpack.c.h.b16 %v3995
    %v4477 = vunpack.c.l.b16 %v3996
    %v4478 = vunpack.c.h.b16 %v3996
    %v4479 = vunpack.c.l.b16 %v3997
    %v4480 = vunpack.c.h.b16 %v3997
    %v4481 = vunpack.c.l.b16 %v3998
    %v4482 = vunpack.c.h.b16 %v3998
    %v4483 = vunpack.c.l.b16 %v3999
    %v4484 = vunpack.c.h.b16 %v3999
    %v4485 = vunpack.c.l.b16 %v4000
    %v4486 = vunpack.c.h.b16 %v4000
    %v4487 = vunpack.c.l.b16 %v4001
    %v4488 = vunpack.c.h.b16 %v4001
    %v4489 = vunpack.c.l.b16 %v4002
    %v4490 = vunpack.c.h.b16 %v4002
    %v4491 = vpack.c.b16 %v4173, %v4171
    %v4492 = vpack.c.b16 %v4174, %v4172
    %v4493 = vpack.c.b16 %v4177, %v4175
    %v4494 = vpack.c.b16 %v4178, %v4176
    %v4495 = vpack.c.b16 %v4181, %v4179
    %v4496 = vpack.c.b16 %v4182, %v4180
    %v4497 = vpack.c.b16 %v4185, %v4183
    %v4498 = vpack.c.b16 %v4186, %v4184
    %v4499 = vpack.c.b16 %v4189, %v4187
    %v4500 = vpack.c.b16 %v4190, %v4188
    %v4501 = vpack.c.b16 %v4193, %v4191
    %v4502 = vpack.c.b16 %v4194, %v4192
    %v4503 = vpack.c.b16 %v4197, %v4195
    %v4504 = vpack.c.b16 %v4198, %v4196
    %v4505 = vpack.c.b16 %v4201, %v4199
    %v4506 = vpack.c.b16 %v4202, %v4200
    %v4507 = vpack.c.b16 %v4205, %v4203
    %v4508 = vpack.c.b16 %v4206, %v4204
    %v4509 = vpack.c.b16 %v4209, %v4207
    %v4510 = vpack.c.b16 %v4210, %v4208
    %v4511 = vpack.c.b16 %v4213, %v4211
    %v4512 = vpack.c.b16 %v4214, %v4212
    %v4513 = vpack.c.b16 %v4217, %v4215
    %v4514 = vpack.c.b16 %v4218, %v4216
    %v4515 = vpack.c.b16 %v4221, %v4219
    %v4516 = vpack.c.b16 %v4222, %v4220
    %v4517 = vpack.c.b16 %v4225, %v4223
    %v4518 = vpack.c.b16 %v4226, %v4224
    %v4519 = vpack.c.b16 %v4229, %v4227
    %v4520 = vpack.c.b16 %v4230, %v4228
    %v4521 = vpack.c.b16 %v4233, %v4231
    %v4522 = vpack.c.b16 %v4234, %v4232
    %v4523 = vpack.c.b16 %v4237, %v4235
    %v4524 = vpack.c.b16 %v4238, %v4236
    %v4525 = vpack.c.b16 %v4241, %v4239
    %v4526 = vpack.c.b16 %v4242, %v4240
    %v4527 = vpack.c.b16 %v4245, %v4243
    %v4528 = vpack.c.b16 %v4246, %v4244
    %v4529 = vpack.c.b16 %v4249, %v4247
    %v4530 = vpack.c.b16 %v4250, %v4248
    %v4531 = vpack.c.b16 %v4253, %v4251
    %v4532 = vpack.c.b16 %v4254, %v4252
    %v4533 = vpack.c.b16 %v4257, %v4255
    %v4534 = vpack.c.b16 %v4258, %v4256
    %v4535 = vpack.c.b16 %v4261, %v4259
    %v4536 = vpack.c.b16 %v4262, %v4260
    %v4537 = vpack.c.b16 %v4265, %v4263
    %v4538 = vpack.c.b16 %v4266, %v4264
    %v4539 = vpack.c.b16 %v4269, %v4267
    %v4540 = vpack.c.b16 %v4270, %v4268
    %v4541 = vpack.c.b16 %v4273, %v4271
    %v4542 = vpack.c.b16 %v4274, %v4272
    %v4543 = vpack.c.b16 %v4277, %v4275
    %v4544 = vpack.c.b16 %v4278, %v4276
    %v4545 = vpack.c.b16 %v4281, %v4279
    %v4546 = vpack.c.b16 %v4282, %v4280
    %v4547 = vpack.c.b16 %v4285, %v4283
    %v4548 = vpack.c.b16 %v4286, %v4284
    %v4549 = vpack.c.b16 %v4289, %v4287
    %v4550 = vpack.c.b16 %v4290, %v4288
    %v4551 = vpack.c.b16 %v4293, %v4291
    %v4552 = vpack.c.b16 %v4294, %v4292
    %v4553 = vpack.c.b16 %v4297, %v4295
    %v4554 = vpack.c.b16 %v4298, %v4296
    %v4555 = vpack.c.b16 %v4301, %v4299
    %v4556 = vpack.c.b16 %v4302, %v4300
    %v4557 = vpack.c.b16 %v4305, %v4303
    %v4558 = vpack.c.b16 %v4306, %v4304
    %v4559 = vpack.c.b16 %v4309, %v4307
    %v4560 = vpack.c.b16 %v4310, %v4308
    %v4561 = vpack.c.b16 %v4313, %v4311
    %v4562 = vpack.c.b16 %v4314, %v4312
    %v4563 = vpack.c.b16 %v4317, %v4315
    %v4564 = vpack.c.b16 %v4318, %v4316
    %v4565 = vpack.c.b16 %v4321, %v4319
    %v4566 = vpack.c.b16 %v4322, %v4320
    %v4567 = vpack.c.b16 %v4325, %v4323
    %v4568 = vpack.c.b16 %v4326, %v4324
    %v4569 = vpack.c.b16 %v4329, %v4327
    %v4570 = vpack.c.b16 %v4330, %v4328
    %v4571 = vpack.c.b16 %v4333, %v4331
    %v4572 = vpack.c.b16 %v4334, %v4332
    %v4573 = vpack.c.b16 %v4337, %v4335
    %v4574 = vpack.c.b16 %v4338, %v4336
    %v4575 = vpack.c.b16 %v4341, %v4339
    %v4576 = vpack.c.b16 %v4342, %v4340
    %v4577 = vpack.c.b16 %v4345, %v4343
    %v4578 = vpack.c.b16 %v4346, %v4344
    %v4579 = vpack.c.b16 %v4349, %v4347
    %v4580 = vpack.c.b16 %v4350, %v4348
    %v4581 = vpack.c.b16 %v4353, %v4351
    %v4582 = vpack.c.b16 %v4354, %v4352
    %v4583 = vpack.c.b16 %v4357, %v4355
    %v4584 = vpack.c.b16 %v4358, %v4356
    %v4585 = vpack.c.b16 %v4361, %v4359
    %v4586 = vpack.c.b16 %v4362, %v4360
    %v4587 = vpack.c.b16 %v4365, %v4363
    %v4588 = vpack.c.b16 %v4366, %v4364
    %v4589 = vpack.c.b16 %v4369, %v4367
    %v4590 = vpack.c.b16 %v4370, %v4368
    %v4591 = vpack.c.b16 %v4373, %v4371
    %v4592 = vpack.c.b16 %v4374, %v4372
    %v4593 = vpack.c.b16 %v4377, %v4375
    %v4594 = vpack.c.b16 %v4378, %v4376
    %v4595 = vpack.c.b16 %v4381, %v4379
    %v4596 = vpack.c.b16 %v4382, %v4380
    %v4597 = vpack.c.b16 %v4385, %v4383
    %v4598 = vpack.c.b16 %v4386, %v4384
    %v4599 = vpack.c.b16 %v4389, %v4387
    %v4600 = vpack.c.b16 %v4390, %v4388
    %v4601 = vpack.c.b16 %v4393, %v4391
    %v4602 = vpack.c.b16 %v4394, %v4392
    %v4603 = vpack.c.b16 %v4397, %v4395
    %v4604 = vpack.c.b16 %v4398, %v4396
    %v4605 = vpack.c.b16 %v4401, %v4399
    %v4606 = vpack.c.b16 %v4402, %v4400
    %v4607 = vpack.c.b16 %v4405, %v4403
    %v4608 = vpack.c.b16 %v4406, %v4404
    %v4609 = vpack.c.b16 %v4409, %v4407
    %v4610 = vpack.c.b16 %v4410, %v4408
    %v4611 = vpack.c.b16 %v4413, %v4411
    %v4612 = vpack.c.b16 %v4414, %v4412
    %v4613 = vpack.c.b16 %v4417, %v4415
    %v4614 = vpack.c.b16 %v4418, %v4416
    %v4615 = vpack.c.b16 %v4421, %v4419
    %v4616 = vpack.c.b16 %v4422, %v4420
    %v4617 = vpack.c.b16 %v4425, %v4423
    %v4618 = vpack.c.b16 %v4426, %v4424
    %v4619 = vpack.c.b16 %v4429, %v4427
    %v4620 = vpack.c.b16 %v4430, %v4428
    %v4621 = vpack.c.b16 %v4433, %v4431
    %v4622 = vpack.c.b16 %v4434, %v4432
    %v4623 = vpack.c.b16 %v4437, %v4435
    %v4624 = vpack.c.b16 %v4438, %v4436
    %v4625 = vpack.c.b16 %v4441, %v4439
    %v4626 = vpack.c.b16 %v4442, %v4440
    %v4627 = vpack.c.b16 %v4445, %v4443
    %v4628 = vpack.c.b16 %v4446, %v4444
    %v4629 = vpack.c.b16 %v4449, %v4447
    %v4630 = vpack.c.b16 %v4450, %v4448
    %v4631 = vpack.c.b16 %v4453, %v4451
    %v4632 = vpack.c.b16 %v4454, %v4452
    %v4633 = vpack.c.b16 %v4457, %v4455
    %v4634 = vpack.c.b16 %v4458, %v4456
    %v4635 = vpack.c.b16 %v4461, %v4459
    %v4636 = vpack.c.b16 %v4462, %v4460
    %v4637 = vpack.c.b16 %v4465, %v4463
    %v4638 = vpack.c.b16 %v4466, %v4464
    %v4639 = vpack.c.b16 %v4469, %v4467
    %v4640 = vpack.c.b16 %v4470, %v4468
    %v4641 = vpack.c.b16 %v4473, %v4471
    %v4642 = vpack.c.b16 %v4474, %v4472
    %v4643 = vpack.c.b16 %v4477, %v4475
    %v4644 = vpack.c.b16 %v4478, %v4476
    %v4645 = vpack.c.b16 %v4481, %v4479
    %v4646 = vpack.c.b16 %v4482, %v4480
    %v4647 = vpack.c.b16 %v4485, %v4483
    %v4648 = vpack.c.b16 %v4486, %v4484
    %v4649 = vpack.c.b16 %v4489, %v4487
    %v4650 = vpack.c.b16 %v4490, %v4488
    %4811 = vmatprep.subr.bf16.mxu0 %v4492
    %4812 = vmatpush1.bf16.msra.mxu0 %v4491
    %4813 = vmatprep.subr.bf16.mxu0 %v4494
    %4814 = vmatpush1.bf16.msra.mxu0 %v4493
    %4815 = vmatprep.subr.bf16.mxu0 %v4496
    %4816 = vmatpush1.bf16.msra.mxu0 %v4495
    %4817 = vmatprep.subr.bf16.mxu0 %v4498
    %4818 = vmatpush1.bf16.msra.mxu0 %v4497
    %4819 = vmatprep.subr.bf16.mxu0 %v4500
    %4820 = vmatpush1.bf16.msra.mxu0 %v4499
    %4821 = vmatprep.subr.bf16.mxu0 %v4502
    %4822 = vmatpush1.bf16.msra.mxu0 %v4501
    %4823 = vmatprep.subr.bf16.mxu0 %v4504
    %4824 = vmatpush1.bf16.msra.mxu0 %v4503
    %4825 = vmatprep.subr.bf16.mxu0 %v4506
    %4826 = vmatpush1.bf16.msra.mxu0 %v4505
    %4827 = vmatprep.subr.bf16.mxu0 %v4508
    %4828 = vmatpush1.bf16.msra.mxu0 %v4507
    %4829 = vmatprep.subr.bf16.mxu0 %v4510
    %4830 = vmatpush1.bf16.msra.mxu0 %v4509
    %4831 = vmatprep.subr.bf16.mxu0 %v4512
    %4832 = vmatpush1.bf16.msra.mxu0 %v4511
    %4833 = vmatprep.subr.bf16.mxu0 %v4514
    %4834 = vmatpush1.bf16.msra.mxu0 %v4513
    %4835 = vmatprep.subr.bf16.mxu0 %v4516
    %4836 = vmatpush1.bf16.msra.mxu0 %v4515
    %4837 = vmatprep.subr.bf16.mxu0 %v4518
    %4838 = vmatpush1.bf16.msra.mxu0 %v4517
    %4839 = vmatprep.subr.bf16.mxu0 %v4520
    %4840 = vmatpush1.bf16.msra.mxu0 %v4519
    %4841 = vmatprep.subr.bf16.mxu0 %v4522
    %4842 = vmatpush1.bf16.msra.mxu0 %v4521
    %4843 = vmatprep.mubr.bf16.mxu0 %v2965
    %4844 = vmatmul.mubr.bf16.gmra.mrb[0].mxu0 %v2964
    %v4845 = vpop.f32.mrb[0].mxu0
    %v4846 = vadd.f32 %v4006, %v4845
    %v4847 = vpop.f32.mrb[0].mxu0
    %v4848 = vadd.f32 %v4010, %v4847
    %v4849 = vpop.f32.mrb[0].mxu0
    %v4850 = vpop.f32.mrb[0].mxu0
    %4851 = vdwg.mxu0
    %4852 = vmatprep.subr.bf16.mxu0 %v4524
    %4853 = vmatpush1.bf16.msra.mxu0 %v4523
    %4854 = vmatprep.subr.bf16.mxu0 %v4526
    %4855 = vmatpush1.bf16.msra.mxu0 %v4525
    %4856 = vmatprep.subr.bf16.mxu0 %v4528
    %4857 = vmatpush1.bf16.msra.mxu0 %v4527
    %4858 = vmatprep.subr.bf16.mxu0 %v4530
    %4859 = vmatpush1.bf16.msra.mxu0 %v4529
    %4860 = vmatprep.subr.bf16.mxu0 %v4532
    %4861 = vmatpush1.bf16.msra.mxu0 %v4531
    %4862 = vmatprep.subr.bf16.mxu0 %v4534
    %4863 = vmatpush1.bf16.msra.mxu0 %v4533
    %4864 = vmatprep.subr.bf16.mxu0 %v4536
    %4865 = vmatpush1.bf16.msra.mxu0 %v4535
    %4866 = vmatprep.subr.bf16.mxu0 %v4538
    %4867 = vmatpush1.bf16.msra.mxu0 %v4537
    %4868 = vmatprep.subr.bf16.mxu0 %v4540
    %4869 = vmatpush1.bf16.msra.mxu0 %v4539
    %4870 = vmatprep.subr.bf16.mxu0 %v4542
    %4871 = vmatpush1.bf16.msra.mxu0 %v4541
    %4872 = vmatprep.subr.bf16.mxu0 %v4544
    %4873 = vmatpush1.bf16.msra.mxu0 %v4543
    %4874 = vmatprep.subr.bf16.mxu0 %v4546
    %4875 = vmatpush1.bf16.msra.mxu0 %v4545
    %4876 = vmatprep.subr.bf16.mxu0 %v4548
    %4877 = vmatpush1.bf16.msra.mxu0 %v4547
    %4878 = vmatprep.subr.bf16.mxu0 %v4550
    %4879 = vmatpush1.bf16.msra.mxu0 %v4549
    %4880 = vmatprep.subr.bf16.mxu0 %v4552
    %4881 = vmatpush1.bf16.msra.mxu0 %v4551
    %4882 = vmatprep.subr.bf16.mxu0 %v4554
    %4883 = vmatpush1.bf16.msra.mxu0 %v4553
    %4884 = vmatprep.mubr.bf16.mxu0 %v2967
    %4885 = vmatmul.mubr.bf16.gmra.mrb[0].mxu0 %v2966
    %v4886 = vpop.f32.mrb[0].mxu0
    %v4887 = vadd.f32 %v4846, %v4886
    %v4888 = vpop.f32.mrb[0].mxu0
    %v4889 = vadd.f32 %v4848, %v4888
    %v4890 = vpop.f32.mrb[0].mxu0
    %v4891 = vpop.f32.mrb[0].mxu0
    %4892 = vdwg.mxu0
    %4893 = vmatprep.subr.bf16.mxu0 %v4556
    %4894 = vmatpush1.bf16.msra.mxu0 %v4555
    %4895 = vmatprep.subr.bf16.mxu0 %v4558
    %4896 = vmatpush1.bf16.msra.mxu0 %v4557
    %4897 = vmatprep.subr.bf16.mxu0 %v4560
    %4898 = vmatpush1.bf16.msra.mxu0 %v4559
    %4899 = vmatprep.subr.bf16.mxu0 %v4562
    %4900 = vmatpush1.bf16.msra.mxu0 %v4561
    %4901 = vmatprep.subr.bf16.mxu0 %v4564
    %4902 = vmatpush1.bf16.msra.mxu0 %v4563
    %4903 = vmatprep.subr.bf16.mxu0 %v4566
    %4904 = vmatpush1.bf16.msra.mxu0 %v4565
    %4905 = vmatprep.subr.bf16.mxu0 %v4568
    %4906 = vmatpush1.bf16.msra.mxu0 %v4567
    %4907 = vmatprep.subr.bf16.mxu0 %v4570
    %4908 = vmatpush1.bf16.msra.mxu0 %v4569
    %4909 = vmatprep.subr.bf16.mxu0 %v4572
    %4910 = vmatpush1.bf16.msra.mxu0 %v4571
    %4911 = vmatprep.subr.bf16.mxu0 %v4574
    %4912 = vmatpush1.bf16.msra.mxu0 %v4573
    %4913 = vmatprep.subr.bf16.mxu0 %v4576
    %4914 = vmatpush1.bf16.msra.mxu0 %v4575
    %4915 = vmatprep.subr.bf16.mxu0 %v4578
    %4916 = vmatpush1.bf16.msra.mxu0 %v4577
    %4917 = vmatprep.subr.bf16.mxu0 %v4580
    %4918 = vmatpush1.bf16.msra.mxu0 %v4579
    %4919 = vmatprep.subr.bf16.mxu0 %v4582
    %4920 = vmatpush1.bf16.msra.mxu0 %v4581
    %4921 = vmatprep.subr.bf16.mxu0 %v4584
    %4922 = vmatpush1.bf16.msra.mxu0 %v4583
    %4923 = vmatprep.subr.bf16.mxu0 %v4586
    %4924 = vmatpush1.bf16.msra.mxu0 %v4585
    %4925 = vmatprep.mubr.bf16.mxu0 %v2969
    %4926 = vmatmul.mubr.bf16.gmra.mrb[0].mxu0 %v2968
    %v4927 = vpop.f32.mrb[0].mxu0
    %v4928 = vadd.f32 %v4887, %v4927
    %v4929 = vpop.f32.mrb[0].mxu0
    %v4930 = vadd.f32 %v4889, %v4929
    %v4931 = vpop.f32.mrb[0].mxu0
    %v4932 = vpop.f32.mrb[0].mxu0
    %4933 = vdwg.mxu0
    %4934 = vmatprep.subr.bf16.mxu0 %v4588
    %4935 = vmatpush1.bf16.msra.mxu0 %v4587
    %4936 = vmatprep.subr.bf16.mxu0 %v4590
    %4937 = vmatpush1.bf16.msra.mxu0 %v4589
    %4938 = vmatprep.subr.bf16.mxu0 %v4592
    %4939 = vmatpush1.bf16.msra.mxu0 %v4591
    %4940 = vmatprep.subr.bf16.mxu0 %v4594
    %4941 = vmatpush1.bf16.msra.mxu0 %v4593
    %4942 = vmatprep.subr.bf16.mxu0 %v4596
    %4943 = vmatpush1.bf16.msra.mxu0 %v4595
    %4944 = vmatprep.subr.bf16.mxu0 %v4598
    %4945 = vmatpush1.bf16.msra.mxu0 %v4597
    %4946 = vmatprep.subr.bf16.mxu0 %v4600
    %4947 = vmatpush1.bf16.msra.mxu0 %v4599
    %4948 = vmatprep.subr.bf16.mxu0 %v4602
    %4949 = vmatpush1.bf16.msra.mxu0 %v4601
    %4950 = vmatprep.subr.bf16.mxu0 %v4604
    %4951 = vmatpush1.bf16.msra.mxu0 %v4603
    %4952 = vmatprep.subr.bf16.mxu0 %v4606
    %4953 = vmatpush1.bf16.msra.mxu0 %v4605
    %4954 = vmatprep.subr.bf16.mxu0 %v4608
    %4955 = vmatpush1.bf16.msra.mxu0 %v4607
    %4956 = vmatprep.subr.bf16.mxu0 %v4610
    %4957 = vmatpush1.bf16.msra.mxu0 %v4609
    %4958 = vmatprep.subr.bf16.mxu0 %v4612
    %4959 = vmatpush1.bf16.msra.mxu0 %v4611
    %4960 = vmatprep.subr.bf16.mxu0 %v4614
    %4961 = vmatpush1.bf16.msra.mxu0 %v4613
    %4962 = vmatprep.subr.bf16.mxu0 %v4616
    %4963 = vmatpush1.bf16.msra.mxu0 %v4615
    %4964 = vmatprep.subr.bf16.mxu0 %v4618
    %4965 = vmatpush1.bf16.msra.mxu0 %v4617
    %4966 = vmatprep.mubr.bf16.mxu0 %v2971
    %4967 = vmatmul.mubr.bf16.gmra.mrb[0].mxu0 %v2970
    %v4968 = vpop.f32.mrb[0].mxu0
    %v4969 = vadd.f32 %v4928, %v4968
    %v4970 = vpop.f32.mrb[0].mxu0
    %v4971 = vadd.f32 %v4930, %v4970
    %v4972 = vpop.f32.mrb[0].mxu0
    %v4973 = vpop.f32.mrb[0].mxu0
    %4974 = vdwg.mxu0
    %4975 = vmatprep.subr.bf16.mxu0 %v4620
    %4976 = vmatpush1.bf16.msra.mxu0 %v4619
    %4977 = vmatprep.subr.bf16.mxu0 %v4622
    %4978 = vmatpush1.bf16.msra.mxu0 %v4621
    %4979 = vmatprep.subr.bf16.mxu0 %v4624
    %4980 = vmatpush1.bf16.msra.mxu0 %v4623
    %4981 = vmatprep.subr.bf16.mxu0 %v4626
    %4982 = vmatpush1.bf16.msra.mxu0 %v4625
    %4983 = vmatprep.subr.bf16.mxu0 %v4628
    %4984 = vmatpush1.bf16.msra.mxu0 %v4627
    %4985 = vmatprep.subr.bf16.mxu0 %v4630
    %4986 = vmatpush1.bf16.msra.mxu0 %v4629
    %4987 = vmatprep.subr.bf16.mxu0 %v4632
    %4988 = vmatpush1.bf16.msra.mxu0 %v4631
    %4989 = vmatprep.subr.bf16.mxu0 %v4634
    %4990 = vmatpush1.bf16.msra.mxu0 %v4633
    %4991 = vmatprep.subr.bf16.mxu0 %v4636
    %4992 = vmatpush1.bf16.msra.mxu0 %v4635
    %4993 = vmatprep.subr.bf16.mxu0 %v4638
    %4994 = vmatpush1.bf16.msra.mxu0 %v4637
    %4995 = vmatprep.subr.bf16.mxu0 %v4640
    %4996 = vmatpush1.bf16.msra.mxu0 %v4639
    %4997 = vmatprep.subr.bf16.mxu0 %v4642
    %4998 = vmatpush1.bf16.msra.mxu0 %v4641
    %4999 = vmatprep.subr.bf16.mxu0 %v4644
    %5000 = vmatpush1.bf16.msra.mxu0 %v4643
    %5001 = vmatprep.subr.bf16.mxu0 %v4646
    %5002 = vmatpush1.bf16.msra.mxu0 %v4645
    %5003 = vmatprep.subr.bf16.mxu0 %v4648
    %5004 = vmatpush1.bf16.msra.mxu0 %v4647
    %5005 = vmatprep.subr.bf16.mxu0 %v4650
    %5006 = vmatpush1.bf16.msra.mxu0 %v4649
    %5007 = vmatprep.mubr.bf16.mxu0 %v2973
    %5008 = vmatmul.mubr.bf16.gmra.mrb[0].mxu0 %v2972
    %v5009 = vpop.f32.mrb[0].mxu0
    %v5010 = vadd.f32 %v4969, %v5009
    %v5011 = vpop.f32.mrb[0].mxu0
    %v5012 = vadd.f32 %v4971, %v5011
    %v5013 = vpop.f32.mrb[0].mxu0
    %v5014 = vpop.f32.mrb[0].mxu0
    %5015 = vdwg.mxu0
    %v5016 = vxor.u32 %v5010, 2147483648
    %v5017 = vxor.u32 %v5012, 2147483648
    %v5018 = vmul.f32 %v5016, 1.442695
    %v5019 = vpow.pop %v5018
    %v5020 = vmul.f32 %v5017, 1.442695
    %v5021 = vpow.pop %v5020
    %v5022 = vadd.f32 %v5019, 1.0
    %v5023 = vadd.f32 %v5021, 1.0
    %v5024 = vrcp.pop %v5022
    %v5025 = vmul.f32 1.0, %v5024
    %v5026 = vrcp.pop %v5023
    %v5027 = vmul.f32 1.0, %v5026
    %v5028 = vtanh.pop %v5012
    %5030 = vrot.lane.b32.xlu0 %v5028, 64
    %v5031 = vpop.permute.xlu0 %5030
    %v5033 = vmul.f32 %v5025, %v5031
    %v5034 = vtanh.pop %v5033
    %v5035 = vmul.f32 %v5027, %v5034
    %vm5036 = vcmask 517120
    %v5037 = vsel %vm5036, %v3842, 0.0
    %5038 = vadd.xlane.f32.xlu0 %v5037
    %v5039 = vpop.xlane.xlu0 %5038
    %v5040 = vsel %vm5036, %v5035, 0.0
    %5041 = vadd.xlane.f32.xlu0 %v5040
    %v5042 = vpop.xlane.xlu0 %5041
    %v5043 = vadd.f32 %v5039, %v5042
    %v5044 = vmul.f32 %v5043, 0.0078125
    %v5045 = vmul.f32 %v3842, %v3842
    %v5046 = vsel %vm5036, %v5045, 0.0
    %5047 = vadd.xlane.f32.xlu0 %v5046
    %v5048 = vpop.xlane.xlu0 %5047
    %v5049 = vmul.f32 %v5035, %v5035
    %v5050 = vsel %vm5036, %v5049, 0.0
    %5051 = vadd.xlane.f32.xlu0 %v5050
    %v5052 = vpop.xlane.xlu0 %5051
    %v5053 = vadd.f32 %v5048, %v5052
    %v5054 = vmul.f32 %v5053, 0.0078125
    %v5055 = vmul.f32 %v5044, %v5044
    %v5056 = vsub.f32 %v5054, %v5055
    %v5057 = vmax.f32 %v5056, 0.0
    %v5058 = vadd.f32 %v5057, 1e-05
    %v5059 = vrsqrt.pop %v5058
    %v5060 = vsub.f32 %v3842, %v5044
    %v5061 = vmul.f32 %v5060, %v5059
    %v5062 = vlaneseq
    %v5063 = vshrl.u32 %v5062, 7
    %v5064 = vsub.s32 2, %v5063
    %v5065 = vrot.slane %v25, %v5064
    %v5066 = vmul.f32 %v5061, %v5065
    %v5067 = vlaneseq
    %v5068 = vshrl.u32 %v5067, 7
    %v5069 = vsub.s32 2, %v5068
    %v5070 = vrot.slane %v26, %v5069
    %v5071 = vadd.f32 %v5066, %v5070
    %v5072 = vsub.f32 %v5035, %v5044
    %v5073 = vmul.f32 %v5072, %v5059
    %5075 = vrot.lane.b32.xlu0 %v5065, 64
    %v5076 = vpop.permute.xlu0 %5075
    %v5078 = vmul.f32 %v5073, %v5076
    %5080 = vrot.lane.b32.xlu0 %v5070, 64
    %v5081 = vpop.permute.xlu0 %5080
    %v5083 = vadd.f32 %v5078, %v5081
    %v5084 = vld [vmem:[%s4] sm:$0xff]
    %v5085 = vld [vmem:[%s4 + $0x8] sm:$0xff]
    %v5086 = vld [vmem:[%s4 + $0x10] sm:$0xff]
    %v5087 = vld [vmem:[%s4 + $0x18] sm:$0xff]
    %v5088 = vld [vmem:[%s4 + $0x20] sm:$0xff]
    %v5089 = vld [vmem:[%s4 + $0x28] sm:$0xff]
    %v5090 = vld [vmem:[%s4 + $0x30] sm:$0xff]
    %v5091 = vld [vmem:[%s4 + $0x38] sm:$0xff]
    %v5092 = vld [vmem:[%s4 + $0x40] sm:$0xff]
    %v5093 = vld [vmem:[%s4 + $0x48] sm:$0xff]
    %v5094 = vld [vmem:[%s4 + $0x50] sm:$0xff]
    %v5095 = vld [vmem:[%s4 + $0x58] sm:$0xff]
    %v5096 = vld [vmem:[%s4 + $0x60] sm:$0xff]
    %v5097 = vld [vmem:[%s4 + $0x68] sm:$0xff]
    %v5098 = vld [vmem:[%s4 + $0x70] sm:$0xff]
    %v5099 = vld [vmem:[%s4 + $0x78] sm:$0xff]
    %v5101 = vsel %vm3227, %v5083, 0
    %5103 = vmatprep.subr.mxu0 0.0
    %5104 = vmatpush1.msra.mxu0 %v5092
    %5105 = vmatprep.subr.mxu0 0.0
    %5106 = vmatpush1.msra.mxu0 %v5093
    %5107 = vmatprep.subr.mxu0 0.0
    %5108 = vmatpush1.msra.mxu0 %v5094
    %5109 = vmatprep.subr.mxu0 0.0
    %5110 = vmatpush1.msra.mxu0 %v5095
    %5111 = vmatprep.subr.mxu0 0.0
    %5112 = vmatpush1.msra.mxu0 %v5096
    %5113 = vmatprep.subr.mxu0 0.0
    %5114 = vmatpush1.msra.mxu0 %v5097
    %5115 = vmatprep.subr.mxu0 0.0
    %5116 = vmatpush1.msra.mxu0 %v5098
    %5117 = vmatprep.subr.mxu0 0.0
    %5118 = vmatpush1.msra.mxu0 %v5099
    %5119 = vmatprep.subr.mxu0 0.0
    %5120 = vmatpush1.msra.mxu0 0.0
    %5121 = vmatprep.subr.mxu0 0.0
    %5122 = vmatpush1.msra.mxu0 0.0
    %5123 = vmatprep.subr.mxu0 0.0
    %5124 = vmatpush1.msra.mxu0 0.0
    %5125 = vmatprep.subr.mxu0 0.0
    %5126 = vmatpush1.msra.mxu0 0.0
    %5127 = vmatprep.subr.mxu0 0.0
    %5128 = vmatpush1.msra.mxu0 0.0
    %5129 = vmatprep.subr.mxu0 0.0
    %5130 = vmatpush1.msra.mxu0 0.0
    %5131 = vmatprep.subr.mxu0 0.0
    %5132 = vmatpush1.msra.mxu0 0.0
    %5133 = vmatprep.subr.mxu0 0.0
    %5134 = vmatpush1.msra.mxu0 0.0
    %5135 = vmatprep.subr.mxu0 0.0
    %5136 = vmatpush1.msra.mxu0 0.0
    %5137 = vmatprep.subr.mxu0 0.0
    %5138 = vmatpush1.msra.mxu0 0.0
    %5139 = vmatprep.subr.mxu0 0.0
    %5140 = vmatpush1.msra.mxu0 0.0
    %5141 = vmatprep.subr.mxu0 0.0
    %5142 = vmatpush1.msra.mxu0 0.0
    %5143 = vmatprep.subr.mxu0 0.0
    %5144 = vmatpush1.msra.mxu0 0.0
    %5145 = vmatprep.subr.mxu0 0.0
    %5146 = vmatpush1.msra.mxu0 0.0
    %5147 = vmatprep.subr.mxu0 0.0
    %5148 = vmatpush1.msra.mxu0 0.0
    %5149 = vmatprep.subr.mxu0 0.0
    %5150 = vmatpush1.msra.mxu0 0.0
    %5151 = vmatprep.subr.mxu0 0.0
    %5152 = vmatpush1.msra.mxu0 0.0
    %5153 = vmatprep.subr.mxu0 0.0
    %5154 = vmatpush1.msra.mxu0 0.0
    %5155 = vmatprep.subr.mxu0 0.0
    %5156 = vmatpush1.msra.mxu0 0.0
    %5157 = vmatprep.subr.mxu0 0.0
    %5158 = vmatpush1.msra.mxu0 0.0
    %5159 = vmatprep.subr.mxu0 0.0
    %5160 = vmatpush1.msra.mxu0 0.0
    %5161 = vmatprep.subr.mxu0 0.0
    %5162 = vmatpush1.msra.mxu0 0.0
    %5163 = vmatprep.subr.mxu0 0.0
    %5164 = vmatpush1.msra.mxu0 0.0
    %5165 = vmatprep.subr.mxu0 0.0
    %5166 = vmatpush1.msra.mxu0 0.0
    %5167 = vmatprep.mubr.f32.mxu0 0.0
    %5168 = vmatmul.mubr.f32.gmra.mrb[0].mxu0 %v5101
    %v5169 = vpop.f32.mrb[0].mxu0
    %v5170 = vadd.f32 0.0, %v5169
    %v5171 = vpop.f32.mrb[0].mxu0
    %5172 = vdwg.mxu0
    %v5174 = vsel %vm3227, %v5071, 0
    %5176 = vmatprep.subr.mxu0 0.0
    %5177 = vmatpush1.msra.mxu0 %v5084
    %5178 = vmatprep.subr.mxu0 0.0
    %5179 = vmatpush1.msra.mxu0 %v5085
    %5180 = vmatprep.subr.mxu0 0.0
    %5181 = vmatpush1.msra.mxu0 %v5086
    %5182 = vmatprep.subr.mxu0 0.0
    %5183 = vmatpush1.msra.mxu0 %v5087
    %5184 = vmatprep.subr.mxu0 0.0
    %5185 = vmatpush1.msra.mxu0 %v5088
    %5186 = vmatprep.subr.mxu0 0.0
    %5187 = vmatpush1.msra.mxu0 %v5089
    %5188 = vmatprep.subr.mxu0 0.0
    %5189 = vmatpush1.msra.mxu0 %v5090
    %5190 = vmatprep.subr.mxu0 0.0
    %5191 = vmatpush1.msra.mxu0 %v5091
    %5192 = vmatprep.subr.mxu0 0.0
    %5193 = vmatpush1.msra.mxu0 0.0
    %5194 = vmatprep.subr.mxu0 0.0
    %5195 = vmatpush1.msra.mxu0 0.0
    %5196 = vmatprep.subr.mxu0 0.0
    %5197 = vmatpush1.msra.mxu0 0.0
    %5198 = vmatprep.subr.mxu0 0.0
    %5199 = vmatpush1.msra.mxu0 0.0
    %5200 = vmatprep.subr.mxu0 0.0
    %5201 = vmatpush1.msra.mxu0 0.0
    %5202 = vmatprep.subr.mxu0 0.0
    %5203 = vmatpush1.msra.mxu0 0.0
    %5204 = vmatprep.subr.mxu0 0.0
    %5205 = vmatpush1.msra.mxu0 0.0
    %5206 = vmatprep.subr.mxu0 0.0
    %5207 = vmatpush1.msra.mxu0 0.0
    %5208 = vmatprep.subr.mxu0 0.0
    %5209 = vmatpush1.msra.mxu0 0.0
    %5210 = vmatprep.subr.mxu0 0.0
    %5211 = vmatpush1.msra.mxu0 0.0
    %5212 = vmatprep.subr.mxu0 0.0
    %5213 = vmatpush1.msra.mxu0 0.0
    %5214 = vmatprep.subr.mxu0 0.0
    %5215 = vmatpush1.msra.mxu0 0.0
    %5216 = vmatprep.subr.mxu0 0.0
    %5217 = vmatpush1.msra.mxu0 0.0
    %5218 = vmatprep.subr.mxu0 0.0
    %5219 = vmatpush1.msra.mxu0 0.0
    %5220 = vmatprep.subr.mxu0 0.0
    %5221 = vmatpush1.msra.mxu0 0.0
    %5222 = vmatprep.subr.mxu0 0.0
    %5223 = vmatpush1.msra.mxu0 0.0
    %5224 = vmatprep.subr.mxu0 0.0
    %5225 = vmatpush1.msra.mxu0 0.0
    %5226 = vmatprep.subr.mxu0 0.0
    %5227 = vmatpush1.msra.mxu0 0.0
    %5228 = vmatprep.subr.mxu0 0.0
    %5229 = vmatpush1.msra.mxu0 0.0
    %5230 = vmatprep.subr.mxu0 0.0
    %5231 = vmatpush1.msra.mxu0 0.0
    %5232 = vmatprep.subr.mxu0 0.0
    %5233 = vmatpush1.msra.mxu0 0.0
    %5234 = vmatprep.subr.mxu0 0.0
    %5235 = vmatpush1.msra.mxu0 0.0
    %5236 = vmatprep.subr.mxu0 0.0
    %5237 = vmatpush1.msra.mxu0 0.0
    %5238 = vmatprep.subr.mxu0 0.0
    %5239 = vmatpush1.msra.mxu0 0.0
    %5240 = vmatprep.mubr.f32.mxu0 0.0
    %5241 = vmatmul.mubr.f32.gmra.mrb[0].mxu0 %v5174
    %v5242 = vpop.f32.mrb[0].mxu0
    %v5243 = vadd.f32 %v5170, %v5242
    %v5244 = vpop.f32.mrb[0].mxu0
    %5245 = vdwg.mxu0
    %v5246 = vlaneseq
    %v5247 = vshrl.u32 %v5246, 7
    %v5248 = vsub.s32 3, %v5247
    %v5249 = vrot.slane %v25, %v5248
    %v5250 = vadd.f32 %v5243, %v5249
    %5251 = vst [vmem:[#allocation2] sm:$0x3] %v5250
    // Predicated region
    $region26: #{balanced_bilstm.1} parent=1 // pred_check
      _
    $region27: #{balanced_bilstm.1} parent=1 // pred_check_branch
      %5253 = sbr.rel (0) target = $region29
    $region28: #{balanced_bilstm.1} parent=1 // pred_region
      %s5255 = ssub.s32 32, 32
      %5256 = vsyncadd [#allocation3], %s5255
      %s5258 = sshll.u32 [#allocation2], 4
      %s5259 = int_to_ptr.vmem [resolvable:$true] %s5258
      %5261 = dma.vmem_to_hbm [thread:$0]  %s5259, 32, %s6, [#allocation3]
    $region29: #{balanced_bilstm.1} parent=1 // pred_fallthru
      _
    // Predicated region
    $region30: #{balanced_bilstm.1} parent=1 // pred_check
      _
    $region31: #{balanced_bilstm.1} parent=1 // pred_check_branch
      %5263 = sbr.rel (0) target = $region33
    $region32: #{balanced_bilstm.1} parent=1 // pred_region
      %5264 = dma.done [#allocation3], 32
    $region33: #{balanced_bilstm.1} parent=1 // pred_fallthru
      _
    %5265 = vsyncpa [#allocation3], 1

</llo_original>
